<compile_context>
chip_gen: v7x
topology: tpu7x:2x2x1
jax: 0.10.0
libtpu: 0.0.40
codegen_flags: <defaults>
</compile_context>

<pallas_src>
import functools

import jax
import jax.numpy as jnp
from jax import lax
from jax.experimental import pallas as pl
from jax.experimental.pallas import tpu as pltpu


def _round_up(x, m):
    return ((x + m - 1) // m) * m


def _spd_rectify_kernel(u_ref, s_ref, o_ref, *, epsilon, n, groups):
    # u_ref: VMEM (TB, N, G*N) packed eigenvectors (G matrices share the lanes)
    # s_ref: VMEM (TB, 1, G*N) packed eigenvalues
    # o_ref: VMEM (TB, N, G*N) packed output (lane-dense store)
    u = u_ref[...]
    s = s_ref[...]
    # SVD of a symmetric matrix has singular values |lambda|; clamp at epsilon.
    s_cl = jnp.maximum(jnp.abs(s), epsilon)
    us = u * s_cl                      # u @ diag(s): scale columns (lane-dense VPU op)
    outs = []
    for g in range(groups):            # static unroll; groups == 1 for N >= 128
        sl = slice(g * n, (g + 1) * n)
        # out_g[b, i, j] = sum_k us[b, i, k] * u[b, j, k]   (no u.T materialized)
        outs.append(
            lax.dot_general(
                us[:, :, sl], u[:, :, sl],
                dimension_numbers=(((2,), (2,)), ((0,), (0,))),
                preferred_element_type=jnp.float32,
                precision=lax.Precision.HIGHEST,
            )
        )
    o_ref[...] = outs[0] if groups == 1 else jnp.concatenate(outs, axis=-1)


def _vmem_budget():
    """(vmem_limit_bytes, usable_tile_budget_bytes) for this TPU generation."""
    try:
        cap = pltpu.get_tpu_info().vmem_capacity_bytes
    except Exception:
        cap = 64 << 20                      # unknown: assume the small (v7x) VMEM
    if cap <= (64 << 20):                   # v7x-class: 64 MiB per TensorCore
        limit = 40 << 20
    else:                                   # v5e / v6e: 128 MiB per TensorCore
        limit = 80 << 20
    return limit, limit - (8 << 20)         # headroom for compiler-internal scratch


def _pick_batch_tile(num_groups, group_bytes, budget_bytes):
    """Largest per-step tile (in packed groups) that fits the VMEM budget; then,
    if the blocks can stay >= 512 KiB, split further so the grid has an even
    number of steps >= 4 (balanced over 2 TensorCores on v7x, with >= 2 steps
    per core so DMA/compute still overlap)."""
    cap = max(1, budget_bytes // max(group_bytes, 1))
    divisors = [d for d in range(1, num_groups + 1)
                if num_groups % d == 0 and d <= cap]
    tb = max(divisors)                      # biggest block that fits
    if num_groups // tb < 4:
        for d in sorted(divisors, reverse=True):
            steps = num_groups // d
            if steps >= 4 and steps % 2 == 0 and d * group_bytes >= (512 << 10):
                tb = d
                break
    return tb


def spd_rectified(x, epsilon=1e-4):
    """SPDRectified forward. x: (B, N, N) float32 symmetric (SPD) matrices."""
    B, N, _ = x.shape
    x = x.astype(jnp.float32)

    # TODO(synk): no Pallas-native SVD/eigendecomposition; jnp.linalg.eigh is
    # used here (identical reconstruction for symmetric input, see header).
    s, u = jnp.linalg.eigh(x)               # s: (B, N), u: (B, N, N)
    s = s.astype(jnp.float32)
    u = u.astype(jnp.float32)

    # ---- small-N lane packing: G matrices share the 128-lane axis ----------
    groups = 1
    if N < 128:
        groups = min(max(1, 128 // N), B)
        while B % groups != 0:               # keep it a divisor of B
            groups -= 1
    L = groups * N
    Bg = B // groups
    if groups > 1:
        # Layout plumbing only (one XLA transpose pass each way); every kernel
        # block / DMA / store becomes lane-dense for N < 128.
        u_p = u.reshape(Bg, groups, N, N).transpose(0, 2, 1, 3).reshape(Bg, N, L)
        s_p = s.reshape(Bg, 1, L)
    else:
        u_p = u
        s_p = s.reshape(B, 1, N)

    # ---- VMEM-aware batch tile, accounting for (8,128) layout padding ------
    vmem_limit, budget = _vmem_budget()
    n_pad = _round_up(N, 8)
    l_pad = _round_up(L, 128)
    # Per packed group per step: u + out blocks double-buffered (4x), the `us`
    # temporary and the dot/concat results (~2x), plus the padded s row (2x).
    group_bytes = 4 * n_pad * l_pad * 6 + 4 * 8 * l_pad * 2
    tb = _pick_batch_tile(Bg, group_bytes, budget)
    grid = (Bg // tb,)

    kernel = functools.partial(
        _spd_rectify_kernel, epsilon=float(epsilon), n=N, groups=groups)

    cost = pl.CostEstimate(
        flops=2 * B * N * N * N + 2 * B * N * N,
        transcendentals=0,
        bytes_accessed=4 * (2 * Bg * N * L + Bg * L),
    )

    # TODO(synk): no row/K tiling over N yet; at tb=1 a single matrix needs
    # ~24*N^2 bytes of VMEM, so very large N (~>1200 in f32, earlier on v7x)
    # would need a second grid axis over output rows plus a K-split accumulator.
    out_p = pl.pallas_call(
        kernel,
        out_shape=jax.ShapeDtypeStruct((Bg, N, L), jnp.float32),
        grid_spec=pltpu.PrefetchScalarGridSpec(
            num_scalar_prefetch=0,
            grid=grid,
            in_specs=[
                pl.BlockSpec((tb, N, L), lambda b: (b, 0, 0)),   # packed u
                pl.BlockSpec((tb, 1, L), lambda b: (b, 0, 0)),   # packed s
            ],
            out_specs=pl.BlockSpec((tb, N, L), lambda b: (b, 0, 0)),
        ),
        compiler_params=pltpu.CompilerParams(
            dimension_semantics=("parallel",),
            vmem_limit_bytes=vmem_limit,
        ),
        cost_estimate=cost,
    )(u_p, s_p)

    if groups > 1:
        out = out_p.reshape(Bg, N, groups, N).transpose(0, 2, 1, 3).reshape(B, N, N)
    else:
        out = out_p
    return out


def _reference(x, epsilon=1e-4):
    # Pure-JAX reference mirroring the PyTorch loop (SVD-based).
    def one(m):
        u, s, _ = jnp.linalg.svd(m)
        s = jnp.where(s < epsilon, epsilon, s)
        return u @ jnp.diag(s) @ u.T
    return jax.vmap(one)(x)


if __name__ == "__main__":
    key = jax.random.PRNGKey(0)
    B, N = 8, 16
    a = jax.random.normal(key, (B, N, N), dtype=jnp.float32)
    # Symmetric positive-definite-ish inputs (as the module expects SPD).
    x = jnp.einsum("bij,bkj->bik", a, a) / N + 1e-3 * jnp.eye(N)[None]

    out = jax.block_until_ready(spd_rectified(x, epsilon=1e-4))
    ref = _reference(x, epsilon=1e-4)

    assert out.shape == (B, N, N)
    # Tolerance leaves headroom for MXU pass-precision differences vs. the f32
    # SVD reference (the kernel requests Precision.HIGHEST, so the observed
    # error should be far below this).
    assert jnp.allclose(out, ref, atol=1e-2, rtol=1e-2), "mismatch vs reference"
    print("KERNEL_OK")
</pallas_src>

<mosaic_0001>
module attributes {stable_mosaic.version = 11 : i64} {
  func.func @_spd_rectify_kernel(%arg0: i32, %arg1: memref<1x16x128xf32, #tpu.memory_space<vmem>>, %arg2: memref<1x1x128xf32, #tpu.memory_space<vmem>>, %arg3: memref<1x16x128xf32, #tpu.memory_space<vmem>>) attributes {dimension_semantics = [#tpu.dimension_semantics<parallel>], iteration_bounds = array<i64: 1>, scalar_prefetch = 0 : i64, scratch_operands = 0 : i64, tpu.core_type = #tpu.core_type<tc>, window_params = [{transform_indices = @transform_0, window_bounds = array<i64: 1, 16, 128>}, {transform_indices = @transform_1, window_bounds = array<i64: 1, 1, 128>}, {transform_indices = @transform_2, window_bounds = array<i64: 1, 16, 128>}]} {
    %c0 = arith.constant 0 : index
    %c0_0 = arith.constant 0 : index
    %c0_1 = arith.constant 0 : index
    %0 = vector.load %arg1[%c0, %c0_0, %c0_1] : memref<1x16x128xf32, #tpu.memory_space<vmem>>, vector<1x16x128xf32>
    %c0_2 = arith.constant 0 : index
    %c0_3 = arith.constant 0 : index
    %c0_4 = arith.constant 0 : index
    %1 = vector.load %arg2[%c0_2, %c0_3, %c0_4] : memref<1x1x128xf32, #tpu.memory_space<vmem>>, vector<1x1x128xf32>
    %2 = math.absf %1 : vector<1x1x128xf32>
    %cst = arith.constant 9.99999974E-5 : f32
    %3 = vector.broadcast %cst : f32 to vector<1x1x128xf32>
    %4 = arith.maximumf %2, %3 : vector<1x1x128xf32>
    %5 = vector.broadcast %4 : vector<1x1x128xf32> to vector<1x16x128xf32>
    %6 = arith.mulf %0, %5 : vector<1x16x128xf32>
    %7 = vector.extract_strided_slice %6 {offsets = [0, 0, 0], sizes = [1, 16, 16], strides = [1, 1, 1]} : vector<1x16x128xf32> to vector<1x16x16xf32>
    %8 = vector.extract_strided_slice %0 {offsets = [0, 0, 0], sizes = [1, 16, 16], strides = [1, 1, 1]} : vector<1x16x128xf32> to vector<1x16x16xf32>
    %cst_5 = arith.constant dense<0.000000e+00> : vector<1x16x16xf32>
    %9 = tpu.matmul %7, %8, %cst_5 {dimension_numbers = #tpu.dot_dimension_numbers<[2], [2], [1], [1], [0, 0, 0, 1, 1, 1], [0], [0]>, precision = #tpu.contract_precision<fp32>} : vector<1x16x16xf32>, vector<1x16x16xf32>, vector<1x16x16xf32> -> vector<1x16x16xf32>
    %10 = vector.extract_strided_slice %6 {offsets = [0, 0, 16], sizes = [1, 16, 16], strides = [1, 1, 1]} : vector<1x16x128xf32> to vector<1x16x16xf32>
    %11 = vector.extract_strided_slice %0 {offsets = [0, 0, 16], sizes = [1, 16, 16], strides = [1, 1, 1]} : vector<1x16x128xf32> to vector<1x16x16xf32>
    %cst_6 = arith.constant dense<0.000000e+00> : vector<1x16x16xf32>
    %12 = tpu.matmul %10, %11, %cst_6 {dimension_numbers = #tpu.dot_dimension_numbers<[2], [2], [1], [1], [0, 0, 0, 1, 1, 1], [0], [0]>, precision = #tpu.contract_precision<fp32>} : vector<1x16x16xf32>, vector<1x16x16xf32>, vector<1x16x16xf32> -> vector<1x16x16xf32>
    %13 = vector.extract_strided_slice %6 {offsets = [0, 0, 32], sizes = [1, 16, 16], strides = [1, 1, 1]} : vector<1x16x128xf32> to vector<1x16x16xf32>
    %14 = vector.extract_strided_slice %0 {offsets = [0, 0, 32], sizes = [1, 16, 16], strides = [1, 1, 1]} : vector<1x16x128xf32> to vector<1x16x16xf32>
    %cst_7 = arith.constant dense<0.000000e+00> : vector<1x16x16xf32>
    %15 = tpu.matmul %13, %14, %cst_7 {dimension_numbers = #tpu.dot_dimension_numbers<[2], [2], [1], [1], [0, 0, 0, 1, 1, 1], [0], [0]>, precision = #tpu.contract_precision<fp32>} : vector<1x16x16xf32>, vector<1x16x16xf32>, vector<1x16x16xf32> -> vector<1x16x16xf32>
    %16 = vector.extract_strided_slice %6 {offsets = [0, 0, 48], sizes = [1, 16, 16], strides = [1, 1, 1]} : vector<1x16x128xf32> to vector<1x16x16xf32>
    %17 = vector.extract_strided_slice %0 {offsets = [0, 0, 48], sizes = [1, 16, 16], strides = [1, 1, 1]} : vector<1x16x128xf32> to vector<1x16x16xf32>
    %cst_8 = arith.constant dense<0.000000e+00> : vector<1x16x16xf32>
    %18 = tpu.matmul %16, %17, %cst_8 {dimension_numbers = #tpu.dot_dimension_numbers<[2], [2], [1], [1], [0, 0, 0, 1, 1, 1], [0], [0]>, precision = #tpu.contract_precision<fp32>} : vector<1x16x16xf32>, vector<1x16x16xf32>, vector<1x16x16xf32> -> vector<1x16x16xf32>
    %19 = vector.extract_strided_slice %6 {offsets = [0, 0, 64], sizes = [1, 16, 16], strides = [1, 1, 1]} : vector<1x16x128xf32> to vector<1x16x16xf32>
    %20 = vector.extract_strided_slice %0 {offsets = [0, 0, 64], sizes = [1, 16, 16], strides = [1, 1, 1]} : vector<1x16x128xf32> to vector<1x16x16xf32>
    %cst_9 = arith.constant dense<0.000000e+00> : vector<1x16x16xf32>
    %21 = tpu.matmul %19, %20, %cst_9 {dimension_numbers = #tpu.dot_dimension_numbers<[2], [2], [1], [1], [0, 0, 0, 1, 1, 1], [0], [0]>, precision = #tpu.contract_precision<fp32>} : vector<1x16x16xf32>, vector<1x16x16xf32>, vector<1x16x16xf32> -> vector<1x16x16xf32>
    %22 = vector.extract_strided_slice %6 {offsets = [0, 0, 80], sizes = [1, 16, 16], strides = [1, 1, 1]} : vector<1x16x128xf32> to vector<1x16x16xf32>
    %23 = vector.extract_strided_slice %0 {offsets = [0, 0, 80], sizes = [1, 16, 16], strides = [1, 1, 1]} : vector<1x16x128xf32> to vector<1x16x16xf32>
    %cst_10 = arith.constant dense<0.000000e+00> : vector<1x16x16xf32>
    %24 = tpu.matmul %22, %23, %cst_10 {dimension_numbers = #tpu.dot_dimension_numbers<[2], [2], [1], [1], [0, 0, 0, 1, 1, 1], [0], [0]>, precision = #tpu.contract_precision<fp32>} : vector<1x16x16xf32>, vector<1x16x16xf32>, vector<1x16x16xf32> -> vector<1x16x16xf32>
    %25 = vector.extract_strided_slice %6 {offsets = [0, 0, 96], sizes = [1, 16, 16], strides = [1, 1, 1]} : vector<1x16x128xf32> to vector<1x16x16xf32>
    %26 = vector.extract_strided_slice %0 {offsets = [0, 0, 96], sizes = [1, 16, 16], strides = [1, 1, 1]} : vector<1x16x128xf32> to vector<1x16x16xf32>
    %cst_11 = arith.constant dense<0.000000e+00> : vector<1x16x16xf32>
    %27 = tpu.matmul %25, %26, %cst_11 {dimension_numbers = #tpu.dot_dimension_numbers<[2], [2], [1], [1], [0, 0, 0, 1, 1, 1], [0], [0]>, precision = #tpu.contract_precision<fp32>} : vector<1x16x16xf32>, vector<1x16x16xf32>, vector<1x16x16xf32> -> vector<1x16x16xf32>
    %28 = vector.extract_strided_slice %6 {offsets = [0, 0, 112], sizes = [1, 16, 16], strides = [1, 1, 1]} : vector<1x16x128xf32> to vector<1x16x16xf32>
    %29 = vector.extract_strided_slice %0 {offsets = [0, 0, 112], sizes = [1, 16, 16], strides = [1, 1, 1]} : vector<1x16x128xf32> to vector<1x16x16xf32>
    %cst_12 = arith.constant dense<0.000000e+00> : vector<1x16x16xf32>
    %30 = tpu.matmul %28, %29, %cst_12 {dimension_numbers = #tpu.dot_dimension_numbers<[2], [2], [1], [1], [0, 0, 0, 1, 1, 1], [0], [0]>, precision = #tpu.contract_precision<fp32>} : vector<1x16x16xf32>, vector<1x16x16xf32>, vector<1x16x16xf32> -> vector<1x16x16xf32>
    %31 = tpu.concatenate %9, %12, %15, %18, %21, %24, %27, %30 in 2 : vector<1x16x16xf32>, vector<1x16x16xf32>, vector<1x16x16xf32>, vector<1x16x16xf32>, vector<1x16x16xf32>, vector<1x16x16xf32>, vector<1x16x16xf32>, vector<1x16x16xf32> -> vector<1x16x128xf32>
    %c0_13 = arith.constant 0 : index
    %c0_14 = arith.constant 0 : index
    %c0_15 = arith.constant 0 : index
    %32 = vector.load %arg3[%c0_13, %c0_14, %c0_15] : memref<1x16x128xf32, #tpu.memory_space<vmem>>, vector<1x16x128xf32>
    tpu.vector_store %arg3[%c0_13, %c0_14, %c0_15], %31 {strides = array<i32>} : memref<1x16x128xf32, #tpu.memory_space<vmem>>, vector<1x16x128xf32>,
    return
  }
  func.func @transform_0(%arg0: i32) -> (i32, i32, i32) {
    %c0_i32 = arith.constant 0 : i32
    %c0_i32_0 = arith.constant 0 : i32
    %c0_i32_1 = arith.constant 0 : i32
    return %arg0, %c0_i32, %c0_i32_0 : i32, i32, i32
  }
  func.func @transform_1(%arg0: i32) -> (i32, i32, i32) {
    %c0_i32 = arith.constant 0 : i32
    %c0_i32_0 = arith.constant 0 : i32
    %c0_i32_1 = arith.constant 0 : i32
    return %arg0, %c0_i32, %c0_i32_0 : i32, i32, i32
  }
  func.func @transform_2(%arg0: i32) -> (i32, i32, i32) {
    %c0_i32 = arith.constant 0 : i32
    %c0_i32_0 = arith.constant 0 : i32
    %c0_i32_1 = arith.constant 0 : i32
    return %arg0, %c0_i32, %c0_i32_0 : i32, i32, i32
  }
}

</mosaic_0001>

<llo_original>
// kernel: tpu_custom_call.1
$region0: #{tpu_custom_call.1}
  #allocation0 [shape = 'u32[]', space=smem, size = 0x4, offset = 0x4, fixed_abs, tag = 'smem constant byte address 0x4 - core index']
  #allocation1 [shape = 'u32[144,128]{1,0:T(1,128)}', space=vmem, size = 0x12000, scoped, tag = 'internal scratch']
  %s0 = inlined_call_operand.hbm [shape: f32[1,16,128], index: 0, kind: input, shape index: {}]
  %s1 = inlined_call_operand.vmem [shape: f32[1,1,128], index: 1, kind: input, shape index: {}]
  %s2 = inlined_call_operand.hbm [shape: f32[1,16,128], index: 2, kind: output, shape index: {}]
  %s3 = sld [smem:[#allocation0]]
  $region22: #{tpu_custom_call.1} parent=0
    _
  %s5 = ssub.s32 1, %s3
  %s6 = scalar_select 0, %s5, %s3
  $region1: #{tpu_custom_call.1} parent=0
    #allocation2 [shape = 'u8[8192]{0}', space=vmem, size = 0x2000, scoped, tag = 'input window, operand 0, single buffered']
    #allocation3 [shape = 's32[1]{0}', space=sflag, size = 0x4, scoped, tag = 'scoped memory for tpu_custom_call.1']
    #allocation4 [shape = 's32[1]{0}', space=sflag, size = 0x4, scoped, tag = 'scoped memory for tpu_custom_call.1']
    #allocation5 [shape = 'u8[8192]{0}', space=vmem, size = 0x2000, scoped, tag = 'output window, operand 0, single buffered']
    %7 = vsyncpa [#allocation3], 0
    %8 = vsyncpa [#allocation4], 0
    // Predicated region
    $region2: #{tpu_custom_call.1} parent=1 // pred_check
      _
    $region3: #{tpu_custom_call.1} parent=1 // pred_check_branch
      %10 = sbr.rel (0) target = $region5
    $region4: #{tpu_custom_call.1} parent=1 // pred_region
      %s12 = ssub.s32 256, 256
      %13 = vsyncadd [#allocation3], %s12
      %s14 = sshll.u32 [#allocation2], 4
      %s15 = int_to_ptr.vmem [resolvable:$true] %s14
      %20 = dma.hbm_to_vmem [thread:$0]  %s0, 256, %s15, [#allocation3], 128, 128, 8
    $region5: #{tpu_custom_call.1} parent=1 // pred_fallthru
      _
    // Predicated region
    $region6: #{tpu_custom_call.1} parent=1 // pred_check
      _
    $region7: #{tpu_custom_call.1} parent=1 // pred_check_branch
      %22 = sbr.rel (0) target = $region9
    $region8: #{tpu_custom_call.1} parent=1 // pred_region
      _
    $region9: #{tpu_custom_call.1} parent=1 // pred_fallthru
      _
    // Predicated region
    $region10: #{tpu_custom_call.1} parent=1 // pred_check
      _
    $region11: #{tpu_custom_call.1} parent=1 // pred_check_branch
      %24 = sbr.rel (0) target = $region13
    $region12: #{tpu_custom_call.1} parent=1 // pred_region
      %25 = dma.done [#allocation3], 256
    $region13: #{tpu_custom_call.1} parent=1 // pred_fallthru
      _
    %v26 = vld [vmem:[#allocation2] sm:$0xff]
    %v27 = vld [vmem:[#allocation2 + $0x8] sm:$0xff]
    %v28 = vld [vmem:[%s1] sm:$0x1]
    %v29 = vand.u32 2147483647, %v28
    %v30 = vmax.f32 %v29, 0.0001
    %v32 = vlaneseq
    %v33 = vshrl.u32 %v32, 7
    %v34 = vsub.s32 0, %v33
    %v35 = vrot.slane %v30, %v34
    %v37 = vmul.f32 %v26, %v35
    %v38 = vmul.f32 %v27, %v35
    %vm39 = vcmask 130048
    %v41 = vsel %vm39, %v37, 0
    %v44 = vsel %vm39, %v38, 0
    %v47 = vsel %vm39, %v26, 0
    %v50 = vsel %vm39, %v27, 0
    %52 = vmatprep.subr.mxu0 0.0
    %v53 = vand.u32 %v47, 4294901760
    %54 = vmatpush1.xpose.msra.mxu0 %v53
    %55 = vmatprep.subr.mxu0 0.0
    %v56 = vand.u32 %v50, 4294901760
    %57 = vmatpush1.xpose.msra.mxu0 %v56
    %58 = vmatprep.subr.mxu0 0.0
    %59 = vmatpush1.xpose.msra.mxu0 0.0
    %60 = vmatprep.subr.mxu0 0.0
    %61 = vmatpush1.xpose.msra.mxu0 0.0
    %62 = vmatprep.subr.mxu0 0.0
    %63 = vmatpush1.xpose.msra.mxu0 0.0
    %64 = vmatprep.subr.mxu0 0.0
    %65 = vmatpush1.xpose.msra.mxu0 0.0
    %66 = vmatprep.subr.mxu0 0.0
    %67 = vmatpush1.xpose.msra.mxu0 0.0
    %68 = vmatprep.subr.mxu0 0.0
    %69 = vmatpush1.xpose.msra.mxu0 0.0
    %70 = vmatprep.subr.mxu0 0.0
    %71 = vmatpush1.xpose.msra.mxu0 0.0
    %72 = vmatprep.subr.mxu0 0.0
    %73 = vmatpush1.xpose.msra.mxu0 0.0
    %74 = vmatprep.subr.mxu0 0.0
    %75 = vmatpush1.xpose.msra.mxu0 0.0
    %76 = vmatprep.subr.mxu0 0.0
    %77 = vmatpush1.xpose.msra.mxu0 0.0
    %78 = vmatprep.subr.mxu0 0.0
    %79 = vmatpush1.xpose.msra.mxu0 0.0
    %80 = vmatprep.subr.mxu0 0.0
    %81 = vmatpush1.xpose.msra.mxu0 0.0
    %82 = vmatprep.subr.mxu0 0.0
    %83 = vmatpush1.xpose.msra.mxu0 0.0
    %84 = vmatprep.subr.mxu0 0.0
    %85 = vmatpush1.xpose.msra.mxu0 0.0
    %86 = vmatprep.subr.mxu0 0.0
    %87 = vmatpush1.xpose.msra.mxu0 0.0
    %88 = vmatprep.subr.mxu0 0.0
    %89 = vmatpush1.xpose.msra.mxu0 0.0
    %90 = vmatprep.subr.mxu0 0.0
    %91 = vmatpush1.xpose.msra.mxu0 0.0
    %92 = vmatprep.subr.mxu0 0.0
    %93 = vmatpush1.xpose.msra.mxu0 0.0
    %94 = vmatprep.subr.mxu0 0.0
    %95 = vmatpush1.xpose.msra.mxu0 0.0
    %96 = vmatprep.subr.mxu0 0.0
    %97 = vmatpush1.xpose.msra.mxu0 0.0
    %98 = vmatprep.subr.mxu0 0.0
    %99 = vmatpush1.xpose.msra.mxu0 0.0
    %100 = vmatprep.subr.mxu0 0.0
    %101 = vmatpush1.xpose.msra.mxu0 0.0
    %102 = vmatprep.subr.mxu0 0.0
    %103 = vmatpush1.xpose.msra.mxu0 0.0
    %104 = vmatprep.subr.mxu0 0.0
    %105 = vmatpush1.xpose.msra.mxu0 0.0
    %106 = vmatprep.subr.mxu0 0.0
    %107 = vmatpush1.xpose.msra.mxu0 0.0
    %108 = vmatprep.subr.mxu0 0.0
    %109 = vmatpush1.xpose.msra.mxu0 0.0
    %110 = vmatprep.subr.mxu0 0.0
    %111 = vmatpush1.xpose.msra.mxu0 0.0
    %112 = vmatprep.subr.mxu0 0.0
    %113 = vmatpush1.xpose.msra.mxu0 0.0
    %114 = vmatprep.subr.mxu0 0.0
    %115 = vmatpush1.xpose.msra.mxu0 0.0
    %116 = vmatprep.subr.mxu0 0.0
    %117 = vmatpush1.xpose.msra.mxu0 0.0
    %118 = vmatprep.mubr.f32.mxu0 0.0
    %v119 = vand.u32 %v41, 4294901760
    %v120 = vsub.f32 %v41, %v119
    %v121 = vand.u32 %v120, 4294901760
    %v122 = vsub.f32 %v120, %v121
    %v123 = vand.u32 %v122, 4294901760
    %124 = vmatmul.mubr.f32.gmra.mrb[0].mxu0 %v123
    %v125 = vpop.f32.mrb[0].mxu0
    %v126 = vadd.f32 0.0, %v125
    %v127 = vpop.f32.mrb[0].mxu0
    %128 = vmatprep.mubr.f32.mxu0 0.0
    %v129 = vand.u32 %v44, 4294901760
    %v130 = vsub.f32 %v44, %v129
    %v131 = vand.u32 %v130, 4294901760
    %v132 = vsub.f32 %v130, %v131
    %v133 = vand.u32 %v132, 4294901760
    %134 = vmatmul.mubr.f32.gmra.mrb[0].mxu0 %v133
    %v135 = vpop.f32.mrb[0].mxu0
    %v136 = vadd.f32 0.0, %v135
    %v137 = vpop.f32.mrb[0].mxu0
    %138 = vdwg.mxu0
    %139 = vmatprep.subr.mxu0 0.0
    %v140 = vand.u32 %v47, 4294901760
    %v141 = vsub.f32 %v47, %v140
    %v142 = vand.u32 %v141, 4294901760
    %v143 = vsub.f32 %v141, %v142
    %v144 = vand.u32 %v143, 4294901760
    %145 = vmatpush1.xpose.msra.mxu0 %v144
    %146 = vmatprep.subr.mxu0 0.0
    %v147 = vand.u32 %v50, 4294901760
    %v148 = vsub.f32 %v50, %v147
    %v149 = vand.u32 %v148, 4294901760
    %v150 = vsub.f32 %v148, %v149
    %v151 = vand.u32 %v150, 4294901760
    %152 = vmatpush1.xpose.msra.mxu0 %v151
    %153 = vmatprep.subr.mxu0 0.0
    %154 = vmatpush1.xpose.msra.mxu0 0.0
    %155 = vmatprep.subr.mxu0 0.0
    %156 = vmatpush1.xpose.msra.mxu0 0.0
    %157 = vmatprep.subr.mxu0 0.0
    %158 = vmatpush1.xpose.msra.mxu0 0.0
    %159 = vmatprep.subr.mxu0 0.0
    %160 = vmatpush1.xpose.msra.mxu0 0.0
    %161 = vmatprep.subr.mxu0 0.0
    %162 = vmatpush1.xpose.msra.mxu0 0.0
    %163 = vmatprep.subr.mxu0 0.0
    %164 = vmatpush1.xpose.msra.mxu0 0.0
    %165 = vmatprep.subr.mxu0 0.0
    %166 = vmatpush1.xpose.msra.mxu0 0.0
    %167 = vmatprep.subr.mxu0 0.0
    %168 = vmatpush1.xpose.msra.mxu0 0.0
    %169 = vmatprep.subr.mxu0 0.0
    %170 = vmatpush1.xpose.msra.mxu0 0.0
    %171 = vmatprep.subr.mxu0 0.0
    %172 = vmatpush1.xpose.msra.mxu0 0.0
    %173 = vmatprep.subr.mxu0 0.0
    %174 = vmatpush1.xpose.msra.mxu0 0.0
    %175 = vmatprep.subr.mxu0 0.0
    %176 = vmatpush1.xpose.msra.mxu0 0.0
    %177 = vmatprep.subr.mxu0 0.0
    %178 = vmatpush1.xpose.msra.mxu0 0.0
    %179 = vmatprep.subr.mxu0 0.0
    %180 = vmatpush1.xpose.msra.mxu0 0.0
    %181 = vmatprep.subr.mxu0 0.0
    %182 = vmatpush1.xpose.msra.mxu0 0.0
    %183 = vmatprep.subr.mxu0 0.0
    %184 = vmatpush1.xpose.msra.mxu0 0.0
    %185 = vmatprep.subr.mxu0 0.0
    %186 = vmatpush1.xpose.msra.mxu0 0.0
    %187 = vmatprep.subr.mxu0 0.0
    %188 = vmatpush1.xpose.msra.mxu0 0.0
    %189 = vmatprep.subr.mxu0 0.0
    %190 = vmatpush1.xpose.msra.mxu0 0.0
    %191 = vmatprep.subr.mxu0 0.0
    %192 = vmatpush1.xpose.msra.mxu0 0.0
    %193 = vmatprep.subr.mxu0 0.0
    %194 = vmatpush1.xpose.msra.mxu0 0.0
    %195 = vmatprep.subr.mxu0 0.0
    %196 = vmatpush1.xpose.msra.mxu0 0.0
    %197 = vmatprep.subr.mxu0 0.0
    %198 = vmatpush1.xpose.msra.mxu0 0.0
    %199 = vmatprep.subr.mxu0 0.0
    %200 = vmatpush1.xpose.msra.mxu0 0.0
    %201 = vmatprep.subr.mxu0 0.0
    %202 = vmatpush1.xpose.msra.mxu0 0.0
    %203 = vmatprep.subr.mxu0 0.0
    %204 = vmatpush1.xpose.msra.mxu0 0.0
    %205 = vmatprep.subr.mxu0 0.0
    %206 = vmatpush1.xpose.msra.mxu0 0.0
    %207 = vmatprep.subr.mxu0 0.0
    %208 = vmatpush1.xpose.msra.mxu0 0.0
    %209 = vmatprep.subr.mxu0 0.0
    %210 = vmatpush1.xpose.msra.mxu0 0.0
    %211 = vmatprep.subr.mxu0 0.0
    %212 = vmatpush1.xpose.msra.mxu0 0.0
    %213 = vmatprep.mubr.f32.mxu0 0.0
    %v214 = vand.u32 %v41, 4294901760
    %215 = vmatmul.mubr.f32.gmra.mrb[0].mxu0 %v214
    %v216 = vpop.f32.mrb[0].mxu0
    %v217 = vadd.f32 %v126, %v216
    %v218 = vpop.f32.mrb[0].mxu0
    %219 = vmatprep.mubr.f32.mxu0 0.0
    %v220 = vand.u32 %v44, 4294901760
    %221 = vmatmul.mubr.f32.gmra.mrb[0].mxu0 %v220
    %v222 = vpop.f32.mrb[0].mxu0
    %v223 = vadd.f32 %v136, %v222
    %v224 = vpop.f32.mrb[0].mxu0
    %225 = vdwg.mxu0
    %226 = vmatprep.subr.mxu0 0.0
    %v227 = vand.u32 %v47, 4294901760
    %v228 = vsub.f32 %v47, %v227
    %229 = vmatpush1.xpose.msra.mxu0 %v228
    %230 = vmatprep.subr.mxu0 0.0
    %v231 = vand.u32 %v50, 4294901760
    %v232 = vsub.f32 %v50, %v231
    %233 = vmatpush1.xpose.msra.mxu0 %v232
    %234 = vmatprep.subr.mxu0 0.0
    %235 = vmatpush1.xpose.msra.mxu0 0.0
    %236 = vmatprep.subr.mxu0 0.0
    %237 = vmatpush1.xpose.msra.mxu0 0.0
    %238 = vmatprep.subr.mxu0 0.0
    %239 = vmatpush1.xpose.msra.mxu0 0.0
    %240 = vmatprep.subr.mxu0 0.0
    %241 = vmatpush1.xpose.msra.mxu0 0.0
    %242 = vmatprep.subr.mxu0 0.0
    %243 = vmatpush1.xpose.msra.mxu0 0.0
    %244 = vmatprep.subr.mxu0 0.0
    %245 = vmatpush1.xpose.msra.mxu0 0.0
    %246 = vmatprep.subr.mxu0 0.0
    %247 = vmatpush1.xpose.msra.mxu0 0.0
    %248 = vmatprep.subr.mxu0 0.0
    %249 = vmatpush1.xpose.msra.mxu0 0.0
    %250 = vmatprep.subr.mxu0 0.0
    %251 = vmatpush1.xpose.msra.mxu0 0.0
    %252 = vmatprep.subr.mxu0 0.0
    %253 = vmatpush1.xpose.msra.mxu0 0.0
    %254 = vmatprep.subr.mxu0 0.0
    %255 = vmatpush1.xpose.msra.mxu0 0.0
    %256 = vmatprep.subr.mxu0 0.0
    %257 = vmatpush1.xpose.msra.mxu0 0.0
    %258 = vmatprep.subr.mxu0 0.0
    %259 = vmatpush1.xpose.msra.mxu0 0.0
    %260 = vmatprep.subr.mxu0 0.0
    %261 = vmatpush1.xpose.msra.mxu0 0.0
    %262 = vmatprep.subr.mxu0 0.0
    %263 = vmatpush1.xpose.msra.mxu0 0.0
    %264 = vmatprep.subr.mxu0 0.0
    %265 = vmatpush1.xpose.msra.mxu0 0.0
    %266 = vmatprep.subr.mxu0 0.0
    %267 = vmatpush1.xpose.msra.mxu0 0.0
    %268 = vmatprep.subr.mxu0 0.0
    %269 = vmatpush1.xpose.msra.mxu0 0.0
    %270 = vmatprep.subr.mxu0 0.0
    %271 = vmatpush1.xpose.msra.mxu0 0.0
    %272 = vmatprep.subr.mxu0 0.0
    %273 = vmatpush1.xpose.msra.mxu0 0.0
    %274 = vmatprep.subr.mxu0 0.0
    %275 = vmatpush1.xpose.msra.mxu0 0.0
    %276 = vmatprep.subr.mxu0 0.0
    %277 = vmatpush1.xpose.msra.mxu0 0.0
    %278 = vmatprep.subr.mxu0 0.0
    %279 = vmatpush1.xpose.msra.mxu0 0.0
    %280 = vmatprep.subr.mxu0 0.0
    %281 = vmatpush1.xpose.msra.mxu0 0.0
    %282 = vmatprep.subr.mxu0 0.0
    %283 = vmatpush1.xpose.msra.mxu0 0.0
    %284 = vmatprep.subr.mxu0 0.0
    %285 = vmatpush1.xpose.msra.mxu0 0.0
    %286 = vmatprep.subr.mxu0 0.0
    %287 = vmatpush1.xpose.msra.mxu0 0.0
    %288 = vmatprep.subr.mxu0 0.0
    %289 = vmatpush1.xpose.msra.mxu0 0.0
    %290 = vmatprep.subr.mxu0 0.0
    %291 = vmatpush1.xpose.msra.mxu0 0.0
    %292 = vmatprep.subr.mxu0 0.0
    %293 = vmatpush1.xpose.msra.mxu0 0.0
    %294 = vmatprep.mubr.f32.mxu0 0.0
    %v295 = vand.u32 %v41, 4294901760
    %v296 = vsub.f32 %v41, %v295
    %297 = vmatmul.mubr.f32.gmra.mrb[0].mxu0 %v296
    %v298 = vpop.f32.mrb[0].mxu0
    %v299 = vadd.f32 %v217, %v298
    %v300 = vpop.f32.mrb[0].mxu0
    %301 = vmatprep.mubr.f32.mxu0 0.0
    %v302 = vand.u32 %v44, 4294901760
    %v303 = vsub.f32 %v44, %v302
    %304 = vmatmul.mubr.f32.gmra.mrb[0].mxu0 %v303
    %v305 = vpop.f32.mrb[0].mxu0
    %v306 = vadd.f32 %v223, %v305
    %v307 = vpop.f32.mrb[0].mxu0
    %308 = vdwg.mxu0
    %309 = vmatprep.subr.mxu0 0.0
    %v310 = vand.u32 %v47, 4294901760
    %311 = vmatpush1.xpose.msra.mxu0 %v310
    %312 = vmatprep.subr.mxu0 0.0
    %v313 = vand.u32 %v50, 4294901760
    %314 = vmatpush1.xpose.msra.mxu0 %v313
    %315 = vmatprep.subr.mxu0 0.0
    %316 = vmatpush1.xpose.msra.mxu0 0.0
    %317 = vmatprep.subr.mxu0 0.0
    %318 = vmatpush1.xpose.msra.mxu0 0.0
    %319 = vmatprep.subr.mxu0 0.0
    %320 = vmatpush1.xpose.msra.mxu0 0.0
    %321 = vmatprep.subr.mxu0 0.0
    %322 = vmatpush1.xpose.msra.mxu0 0.0
    %323 = vmatprep.subr.mxu0 0.0
    %324 = vmatpush1.xpose.msra.mxu0 0.0
    %325 = vmatprep.subr.mxu0 0.0
    %326 = vmatpush1.xpose.msra.mxu0 0.0
    %327 = vmatprep.subr.mxu0 0.0
    %328 = vmatpush1.xpose.msra.mxu0 0.0
    %329 = vmatprep.subr.mxu0 0.0
    %330 = vmatpush1.xpose.msra.mxu0 0.0
    %331 = vmatprep.subr.mxu0 0.0
    %332 = vmatpush1.xpose.msra.mxu0 0.0
    %333 = vmatprep.subr.mxu0 0.0
    %334 = vmatpush1.xpose.msra.mxu0 0.0
    %335 = vmatprep.subr.mxu0 0.0
    %336 = vmatpush1.xpose.msra.mxu0 0.0
    %337 = vmatprep.subr.mxu0 0.0
    %338 = vmatpush1.xpose.msra.mxu0 0.0
    %339 = vmatprep.subr.mxu0 0.0
    %340 = vmatpush1.xpose.msra.mxu0 0.0
    %341 = vmatprep.subr.mxu0 0.0
    %342 = vmatpush1.xpose.msra.mxu0 0.0
    %343 = vmatprep.subr.mxu0 0.0
    %344 = vmatpush1.xpose.msra.mxu0 0.0
    %345 = vmatprep.subr.mxu0 0.0
    %346 = vmatpush1.xpose.msra.mxu0 0.0
    %347 = vmatprep.subr.mxu0 0.0
    %348 = vmatpush1.xpose.msra.mxu0 0.0
    %349 = vmatprep.subr.mxu0 0.0
    %350 = vmatpush1.xpose.msra.mxu0 0.0
    %351 = vmatprep.subr.mxu0 0.0
    %352 = vmatpush1.xpose.msra.mxu0 0.0
    %353 = vmatprep.subr.mxu0 0.0
    %354 = vmatpush1.xpose.msra.mxu0 0.0
    %355 = vmatprep.subr.mxu0 0.0
    %356 = vmatpush1.xpose.msra.mxu0 0.0
    %357 = vmatprep.subr.mxu0 0.0
    %358 = vmatpush1.xpose.msra.mxu0 0.0
    %359 = vmatprep.subr.mxu0 0.0
    %360 = vmatpush1.xpose.msra.mxu0 0.0
    %361 = vmatprep.subr.mxu0 0.0
    %362 = vmatpush1.xpose.msra.mxu0 0.0
    %363 = vmatprep.subr.mxu0 0.0
    %364 = vmatpush1.xpose.msra.mxu0 0.0
    %365 = vmatprep.subr.mxu0 0.0
    %366 = vmatpush1.xpose.msra.mxu0 0.0
    %367 = vmatprep.subr.mxu0 0.0
    %368 = vmatpush1.xpose.msra.mxu0 0.0
    %369 = vmatprep.subr.mxu0 0.0
    %370 = vmatpush1.xpose.msra.mxu0 0.0
    %371 = vmatprep.subr.mxu0 0.0
    %372 = vmatpush1.xpose.msra.mxu0 0.0
    %373 = vmatprep.subr.mxu0 0.0
    %374 = vmatpush1.xpose.msra.mxu0 0.0
    %375 = vmatprep.mubr.f32.mxu0 0.0
    %v376 = vand.u32 %v41, 4294901760
    %v377 = vsub.f32 %v41, %v376
    %v378 = vand.u32 %v377, 4294901760
    %379 = vmatmul.mubr.f32.gmra.mrb[0].mxu0 %v378
    %v380 = vpop.f32.mrb[0].mxu0
    %v381 = vadd.f32 %v299, %v380
    %v382 = vpop.f32.mrb[0].mxu0
    %383 = vmatprep.mubr.f32.mxu0 0.0
    %v384 = vand.u32 %v44, 4294901760
    %v385 = vsub.f32 %v44, %v384
    %v386 = vand.u32 %v385, 4294901760
    %387 = vmatmul.mubr.f32.gmra.mrb[0].mxu0 %v386
    %v388 = vpop.f32.mrb[0].mxu0
    %v389 = vadd.f32 %v306, %v388
    %v390 = vpop.f32.mrb[0].mxu0
    %391 = vdwg.mxu0
    %392 = vmatprep.subr.mxu0 0.0
    %v393 = vand.u32 %v47, 4294901760
    %v394 = vsub.f32 %v47, %v393
    %v395 = vand.u32 %v394, 4294901760
    %396 = vmatpush1.xpose.msra.mxu0 %v395
    %397 = vmatprep.subr.mxu0 0.0
    %v398 = vand.u32 %v50, 4294901760
    %v399 = vsub.f32 %v50, %v398
    %v400 = vand.u32 %v399, 4294901760
    %401 = vmatpush1.xpose.msra.mxu0 %v400
    %402 = vmatprep.subr.mxu0 0.0
    %403 = vmatpush1.xpose.msra.mxu0 0.0
    %404 = vmatprep.subr.mxu0 0.0
    %405 = vmatpush1.xpose.msra.mxu0 0.0
    %406 = vmatprep.subr.mxu0 0.0
    %407 = vmatpush1.xpose.msra.mxu0 0.0
    %408 = vmatprep.subr.mxu0 0.0
    %409 = vmatpush1.xpose.msra.mxu0 0.0
    %410 = vmatprep.subr.mxu0 0.0
    %411 = vmatpush1.xpose.msra.mxu0 0.0
    %412 = vmatprep.subr.mxu0 0.0
    %413 = vmatpush1.xpose.msra.mxu0 0.0
    %414 = vmatprep.subr.mxu0 0.0
    %415 = vmatpush1.xpose.msra.mxu0 0.0
    %416 = vmatprep.subr.mxu0 0.0
    %417 = vmatpush1.xpose.msra.mxu0 0.0
    %418 = vmatprep.subr.mxu0 0.0
    %419 = vmatpush1.xpose.msra.mxu0 0.0
    %420 = vmatprep.subr.mxu0 0.0
    %421 = vmatpush1.xpose.msra.mxu0 0.0
    %422 = vmatprep.subr.mxu0 0.0
    %423 = vmatpush1.xpose.msra.mxu0 0.0
    %424 = vmatprep.subr.mxu0 0.0
    %425 = vmatpush1.xpose.msra.mxu0 0.0
    %426 = vmatprep.subr.mxu0 0.0
    %427 = vmatpush1.xpose.msra.mxu0 0.0
    %428 = vmatprep.subr.mxu0 0.0
    %429 = vmatpush1.xpose.msra.mxu0 0.0
    %430 = vmatprep.subr.mxu0 0.0
    %431 = vmatpush1.xpose.msra.mxu0 0.0
    %432 = vmatprep.subr.mxu0 0.0
    %433 = vmatpush1.xpose.msra.mxu0 0.0
    %434 = vmatprep.subr.mxu0 0.0
    %435 = vmatpush1.xpose.msra.mxu0 0.0
    %436 = vmatprep.subr.mxu0 0.0
    %437 = vmatpush1.xpose.msra.mxu0 0.0
    %438 = vmatprep.subr.mxu0 0.0
    %439 = vmatpush1.xpose.msra.mxu0 0.0
    %440 = vmatprep.subr.mxu0 0.0
    %441 = vmatpush1.xpose.msra.mxu0 0.0
    %442 = vmatprep.subr.mxu0 0.0
    %443 = vmatpush1.xpose.msra.mxu0 0.0
    %444 = vmatprep.subr.mxu0 0.0
    %445 = vmatpush1.xpose.msra.mxu0 0.0
    %446 = vmatprep.subr.mxu0 0.0
    %447 = vmatpush1.xpose.msra.mxu0 0.0
    %448 = vmatprep.subr.mxu0 0.0
    %449 = vmatpush1.xpose.msra.mxu0 0.0
    %450 = vmatprep.subr.mxu0 0.0
    %451 = vmatpush1.xpose.msra.mxu0 0.0
    %452 = vmatprep.subr.mxu0 0.0
    %453 = vmatpush1.xpose.msra.mxu0 0.0
    %454 = vmatprep.subr.mxu0 0.0
    %455 = vmatpush1.xpose.msra.mxu0 0.0
    %456 = vmatprep.subr.mxu0 0.0
    %457 = vmatpush1.xpose.msra.mxu0 0.0
    %458 = vmatprep.subr.mxu0 0.0
    %459 = vmatpush1.xpose.msra.mxu0 0.0
    %460 = vmatprep.subr.mxu0 0.0
    %461 = vmatpush1.xpose.msra.mxu0 0.0
    %462 = vmatprep.mubr.f32.mxu0 0.0
    %v463 = vand.u32 %v41, 4294901760
    %464 = vmatmul.mubr.f32.gmra.mrb[0].mxu0 %v463
    %v465 = vpop.f32.mrb[0].mxu0
    %v466 = vadd.f32 %v381, %v465
    %v467 = vpop.f32.mrb[0].mxu0
    %468 = vmatprep.mubr.f32.mxu0 0.0
    %v469 = vand.u32 %v44, 4294901760
    %470 = vmatmul.mubr.f32.gmra.mrb[0].mxu0 %v469
    %v471 = vpop.f32.mrb[0].mxu0
    %v472 = vadd.f32 %v389, %v471
    %v473 = vpop.f32.mrb[0].mxu0
    %474 = vdwg.mxu0
    %475 = vmatprep.subr.mxu0 0.0
    %v476 = vand.u32 %v47, 4294901760
    %477 = vmatpush1.xpose.msra.mxu0 %v476
    %478 = vmatprep.subr.mxu0 0.0
    %v479 = vand.u32 %v50, 4294901760
    %480 = vmatpush1.xpose.msra.mxu0 %v479
    %481 = vmatprep.subr.mxu0 0.0
    %482 = vmatpush1.xpose.msra.mxu0 0.0
    %483 = vmatprep.subr.mxu0 0.0
    %484 = vmatpush1.xpose.msra.mxu0 0.0
    %485 = vmatprep.subr.mxu0 0.0
    %486 = vmatpush1.xpose.msra.mxu0 0.0
    %487 = vmatprep.subr.mxu0 0.0
    %488 = vmatpush1.xpose.msra.mxu0 0.0
    %489 = vmatprep.subr.mxu0 0.0
    %490 = vmatpush1.xpose.msra.mxu0 0.0
    %491 = vmatprep.subr.mxu0 0.0
    %492 = vmatpush1.xpose.msra.mxu0 0.0
    %493 = vmatprep.subr.mxu0 0.0
    %494 = vmatpush1.xpose.msra.mxu0 0.0
    %495 = vmatprep.subr.mxu0 0.0
    %496 = vmatpush1.xpose.msra.mxu0 0.0
    %497 = vmatprep.subr.mxu0 0.0
    %498 = vmatpush1.xpose.msra.mxu0 0.0
    %499 = vmatprep.subr.mxu0 0.0
    %500 = vmatpush1.xpose.msra.mxu0 0.0
    %501 = vmatprep.subr.mxu0 0.0
    %502 = vmatpush1.xpose.msra.mxu0 0.0
    %503 = vmatprep.subr.mxu0 0.0
    %504 = vmatpush1.xpose.msra.mxu0 0.0
    %505 = vmatprep.subr.mxu0 0.0
    %506 = vmatpush1.xpose.msra.mxu0 0.0
    %507 = vmatprep.subr.mxu0 0.0
    %508 = vmatpush1.xpose.msra.mxu0 0.0
    %509 = vmatprep.subr.mxu0 0.0
    %510 = vmatpush1.xpose.msra.mxu0 0.0
    %511 = vmatprep.subr.mxu0 0.0
    %512 = vmatpush1.xpose.msra.mxu0 0.0
    %513 = vmatprep.subr.mxu0 0.0
    %514 = vmatpush1.xpose.msra.mxu0 0.0
    %515 = vmatprep.subr.mxu0 0.0
    %516 = vmatpush1.xpose.msra.mxu0 0.0
    %517 = vmatprep.subr.mxu0 0.0
    %518 = vmatpush1.xpose.msra.mxu0 0.0
    %519 = vmatprep.subr.mxu0 0.0
    %520 = vmatpush1.xpose.msra.mxu0 0.0
    %521 = vmatprep.subr.mxu0 0.0
    %522 = vmatpush1.xpose.msra.mxu0 0.0
    %523 = vmatprep.subr.mxu0 0.0
    %524 = vmatpush1.xpose.msra.mxu0 0.0
    %525 = vmatprep.subr.mxu0 0.0
    %526 = vmatpush1.xpose.msra.mxu0 0.0
    %527 = vmatprep.subr.mxu0 0.0
    %528 = vmatpush1.xpose.msra.mxu0 0.0
    %529 = vmatprep.subr.mxu0 0.0
    %530 = vmatpush1.xpose.msra.mxu0 0.0
    %531 = vmatprep.subr.mxu0 0.0
    %532 = vmatpush1.xpose.msra.mxu0 0.0
    %533 = vmatprep.subr.mxu0 0.0
    %534 = vmatpush1.xpose.msra.mxu0 0.0
    %535 = vmatprep.subr.mxu0 0.0
    %536 = vmatpush1.xpose.msra.mxu0 0.0
    %537 = vmatprep.subr.mxu0 0.0
    %538 = vmatpush1.xpose.msra.mxu0 0.0
    %539 = vmatprep.subr.mxu0 0.0
    %540 = vmatpush1.xpose.msra.mxu0 0.0
    %541 = vmatprep.mubr.f32.mxu0 0.0
    %v542 = vand.u32 %v41, 4294901760
    %543 = vmatmul.mubr.f32.gmra.mrb[0].mxu0 %v542
    %v544 = vpop.f32.mrb[0].mxu0
    %v545 = vadd.f32 %v466, %v544
    %v546 = vpop.f32.mrb[0].mxu0
    %547 = vmatprep.mubr.f32.mxu0 0.0
    %v548 = vand.u32 %v44, 4294901760
    %549 = vmatmul.mubr.f32.gmra.mrb[0].mxu0 %v548
    %v550 = vpop.f32.mrb[0].mxu0
    %v551 = vadd.f32 %v472, %v550
    %v552 = vpop.f32.mrb[0].mxu0
    %553 = vdwg.mxu0
    %554 = vrot.lane.b32.xlu0 %v37, 112
    %v555 = vpop.permute.xlu0 %554
    %556 = vrot.lane.b32.xlu0 %v38, 112
    %v557 = vpop.permute.xlu0 %556
    %558 = vrot.lane.b32.xlu0 %v26, 112
    %v559 = vpop.permute.xlu0 %558
    %560 = vrot.lane.b32.xlu0 %v27, 112
    %v561 = vpop.permute.xlu0 %560
    %v562 = vsel %vm39, %v555, 0
    %v564 = vsel %vm39, %v557, 0
    %v566 = vsel %vm39, %v559, 0
    %v568 = vsel %vm39, %v561, 0
    %570 = vmatprep.subr.mxu0 0.0
    %v571 = vand.u32 %v566, 4294901760
    %572 = vmatpush1.xpose.msra.mxu0 %v571
    %573 = vmatprep.subr.mxu0 0.0
    %v574 = vand.u32 %v568, 4294901760
    %575 = vmatpush1.xpose.msra.mxu0 %v574
    %576 = vmatprep.subr.mxu0 0.0
    %577 = vmatpush1.xpose.msra.mxu0 0.0
    %578 = vmatprep.subr.mxu0 0.0
    %579 = vmatpush1.xpose.msra.mxu0 0.0
    %580 = vmatprep.subr.mxu0 0.0
    %581 = vmatpush1.xpose.msra.mxu0 0.0
    %582 = vmatprep.subr.mxu0 0.0
    %583 = vmatpush1.xpose.msra.mxu0 0.0
    %584 = vmatprep.subr.mxu0 0.0
    %585 = vmatpush1.xpose.msra.mxu0 0.0
    %586 = vmatprep.subr.mxu0 0.0
    %587 = vmatpush1.xpose.msra.mxu0 0.0
    %588 = vmatprep.subr.mxu0 0.0
    %589 = vmatpush1.xpose.msra.mxu0 0.0
    %590 = vmatprep.subr.mxu0 0.0
    %591 = vmatpush1.xpose.msra.mxu0 0.0
    %592 = vmatprep.subr.mxu0 0.0
    %593 = vmatpush1.xpose.msra.mxu0 0.0
    %594 = vmatprep.subr.mxu0 0.0
    %595 = vmatpush1.xpose.msra.mxu0 0.0
    %596 = vmatprep.subr.mxu0 0.0
    %597 = vmatpush1.xpose.msra.mxu0 0.0
    %598 = vmatprep.subr.mxu0 0.0
    %599 = vmatpush1.xpose.msra.mxu0 0.0
    %600 = vmatprep.subr.mxu0 0.0
    %601 = vmatpush1.xpose.msra.mxu0 0.0
    %602 = vmatprep.subr.mxu0 0.0
    %603 = vmatpush1.xpose.msra.mxu0 0.0
    %604 = vmatprep.subr.mxu0 0.0
    %605 = vmatpush1.xpose.msra.mxu0 0.0
    %606 = vmatprep.subr.mxu0 0.0
    %607 = vmatpush1.xpose.msra.mxu0 0.0
    %608 = vmatprep.subr.mxu0 0.0
    %609 = vmatpush1.xpose.msra.mxu0 0.0
    %610 = vmatprep.subr.mxu0 0.0
    %611 = vmatpush1.xpose.msra.mxu0 0.0
    %612 = vmatprep.subr.mxu0 0.0
    %613 = vmatpush1.xpose.msra.mxu0 0.0
    %614 = vmatprep.subr.mxu0 0.0
    %615 = vmatpush1.xpose.msra.mxu0 0.0
    %616 = vmatprep.subr.mxu0 0.0
    %617 = vmatpush1.xpose.msra.mxu0 0.0
    %618 = vmatprep.subr.mxu0 0.0
    %619 = vmatpush1.xpose.msra.mxu0 0.0
    %620 = vmatprep.subr.mxu0 0.0
    %621 = vmatpush1.xpose.msra.mxu0 0.0
    %622 = vmatprep.subr.mxu0 0.0
    %623 = vmatpush1.xpose.msra.mxu0 0.0
    %624 = vmatprep.subr.mxu0 0.0
    %625 = vmatpush1.xpose.msra.mxu0 0.0
    %626 = vmatprep.subr.mxu0 0.0
    %627 = vmatpush1.xpose.msra.mxu0 0.0
    %628 = vmatprep.subr.mxu0 0.0
    %629 = vmatpush1.xpose.msra.mxu0 0.0
    %630 = vmatprep.subr.mxu0 0.0
    %631 = vmatpush1.xpose.msra.mxu0 0.0
    %632 = vmatprep.subr.mxu0 0.0
    %633 = vmatpush1.xpose.msra.mxu0 0.0
    %634 = vmatprep.subr.mxu0 0.0
    %635 = vmatpush1.xpose.msra.mxu0 0.0
    %636 = vmatprep.mubr.f32.mxu0 0.0
    %v637 = vand.u32 %v562, 4294901760
    %v638 = vsub.f32 %v562, %v637
    %v639 = vand.u32 %v638, 4294901760
    %v640 = vsub.f32 %v638, %v639
    %v641 = vand.u32 %v640, 4294901760
    %642 = vmatmul.mubr.f32.gmra.mrb[0].mxu0 %v641
    %v643 = vpop.f32.mrb[0].mxu0
    %v644 = vadd.f32 0.0, %v643
    %v645 = vpop.f32.mrb[0].mxu0
    %646 = vmatprep.mubr.f32.mxu0 0.0
    %v647 = vand.u32 %v564, 4294901760
    %v648 = vsub.f32 %v564, %v647
    %v649 = vand.u32 %v648, 4294901760
    %v650 = vsub.f32 %v648, %v649
    %v651 = vand.u32 %v650, 4294901760
    %652 = vmatmul.mubr.f32.gmra.mrb[0].mxu0 %v651
    %v653 = vpop.f32.mrb[0].mxu0
    %v654 = vadd.f32 0.0, %v653
    %v655 = vpop.f32.mrb[0].mxu0
    %656 = vdwg.mxu0
    %657 = vmatprep.subr.mxu0 0.0
    %v658 = vand.u32 %v566, 4294901760
    %v659 = vsub.f32 %v566, %v658
    %v660 = vand.u32 %v659, 4294901760
    %v661 = vsub.f32 %v659, %v660
    %v662 = vand.u32 %v661, 4294901760
    %663 = vmatpush1.xpose.msra.mxu0 %v662
    %664 = vmatprep.subr.mxu0 0.0
    %v665 = vand.u32 %v568, 4294901760
    %v666 = vsub.f32 %v568, %v665
    %v667 = vand.u32 %v666, 4294901760
    %v668 = vsub.f32 %v666, %v667
    %v669 = vand.u32 %v668, 4294901760
    %670 = vmatpush1.xpose.msra.mxu0 %v669
    %671 = vmatprep.subr.mxu0 0.0
    %672 = vmatpush1.xpose.msra.mxu0 0.0
    %673 = vmatprep.subr.mxu0 0.0
    %674 = vmatpush1.xpose.msra.mxu0 0.0
    %675 = vmatprep.subr.mxu0 0.0
    %676 = vmatpush1.xpose.msra.mxu0 0.0
    %677 = vmatprep.subr.mxu0 0.0
    %678 = vmatpush1.xpose.msra.mxu0 0.0
    %679 = vmatprep.subr.mxu0 0.0
    %680 = vmatpush1.xpose.msra.mxu0 0.0
    %681 = vmatprep.subr.mxu0 0.0
    %682 = vmatpush1.xpose.msra.mxu0 0.0
    %683 = vmatprep.subr.mxu0 0.0
    %684 = vmatpush1.xpose.msra.mxu0 0.0
    %685 = vmatprep.subr.mxu0 0.0
    %686 = vmatpush1.xpose.msra.mxu0 0.0
    %687 = vmatprep.subr.mxu0 0.0
    %688 = vmatpush1.xpose.msra.mxu0 0.0
    %689 = vmatprep.subr.mxu0 0.0
    %690 = vmatpush1.xpose.msra.mxu0 0.0
    %691 = vmatprep.subr.mxu0 0.0
    %692 = vmatpush1.xpose.msra.mxu0 0.0
    %693 = vmatprep.subr.mxu0 0.0
    %694 = vmatpush1.xpose.msra.mxu0 0.0
    %695 = vmatprep.subr.mxu0 0.0
    %696 = vmatpush1.xpose.msra.mxu0 0.0
    %697 = vmatprep.subr.mxu0 0.0
    %698 = vmatpush1.xpose.msra.mxu0 0.0
    %699 = vmatprep.subr.mxu0 0.0
    %700 = vmatpush1.xpose.msra.mxu0 0.0
    %701 = vmatprep.subr.mxu0 0.0
    %702 = vmatpush1.xpose.msra.mxu0 0.0
    %703 = vmatprep.subr.mxu0 0.0
    %704 = vmatpush1.xpose.msra.mxu0 0.0
    %705 = vmatprep.subr.mxu0 0.0
    %706 = vmatpush1.xpose.msra.mxu0 0.0
    %707 = vmatprep.subr.mxu0 0.0
    %708 = vmatpush1.xpose.msra.mxu0 0.0
    %709 = vmatprep.subr.mxu0 0.0
    %710 = vmatpush1.xpose.msra.mxu0 0.0
    %711 = vmatprep.subr.mxu0 0.0
    %712 = vmatpush1.xpose.msra.mxu0 0.0
    %713 = vmatprep.subr.mxu0 0.0
    %714 = vmatpush1.xpose.msra.mxu0 0.0
    %715 = vmatprep.subr.mxu0 0.0
    %716 = vmatpush1.xpose.msra.mxu0 0.0
    %717 = vmatprep.subr.mxu0 0.0
    %718 = vmatpush1.xpose.msra.mxu0 0.0
    %719 = vmatprep.subr.mxu0 0.0
    %720 = vmatpush1.xpose.msra.mxu0 0.0
    %721 = vmatprep.subr.mxu0 0.0
    %722 = vmatpush1.xpose.msra.mxu0 0.0
    %723 = vmatprep.subr.mxu0 0.0
    %724 = vmatpush1.xpose.msra.mxu0 0.0
    %725 = vmatprep.subr.mxu0 0.0
    %726 = vmatpush1.xpose.msra.mxu0 0.0
    %727 = vmatprep.subr.mxu0 0.0
    %728 = vmatpush1.xpose.msra.mxu0 0.0
    %729 = vmatprep.subr.mxu0 0.0
    %730 = vmatpush1.xpose.msra.mxu0 0.0
    %731 = vmatprep.mubr.f32.mxu0 0.0
    %v732 = vand.u32 %v562, 4294901760
    %733 = vmatmul.mubr.f32.gmra.mrb[0].mxu0 %v732
    %v734 = vpop.f32.mrb[0].mxu0
    %v735 = vadd.f32 %v644, %v734
    %v736 = vpop.f32.mrb[0].mxu0
    %737 = vmatprep.mubr.f32.mxu0 0.0
    %v738 = vand.u32 %v564, 4294901760
    %739 = vmatmul.mubr.f32.gmra.mrb[0].mxu0 %v738
    %v740 = vpop.f32.mrb[0].mxu0
    %v741 = vadd.f32 %v654, %v740
    %v742 = vpop.f32.mrb[0].mxu0
    %743 = vdwg.mxu0
    %744 = vmatprep.subr.mxu0 0.0
    %v745 = vand.u32 %v566, 4294901760
    %v746 = vsub.f32 %v566, %v745
    %747 = vmatpush1.xpose.msra.mxu0 %v746
    %748 = vmatprep.subr.mxu0 0.0
    %v749 = vand.u32 %v568, 4294901760
    %v750 = vsub.f32 %v568, %v749
    %751 = vmatpush1.xpose.msra.mxu0 %v750
    %752 = vmatprep.subr.mxu0 0.0
    %753 = vmatpush1.xpose.msra.mxu0 0.0
    %754 = vmatprep.subr.mxu0 0.0
    %755 = vmatpush1.xpose.msra.mxu0 0.0
    %756 = vmatprep.subr.mxu0 0.0
    %757 = vmatpush1.xpose.msra.mxu0 0.0
    %758 = vmatprep.subr.mxu0 0.0
    %759 = vmatpush1.xpose.msra.mxu0 0.0
    %760 = vmatprep.subr.mxu0 0.0
    %761 = vmatpush1.xpose.msra.mxu0 0.0
    %762 = vmatprep.subr.mxu0 0.0
    %763 = vmatpush1.xpose.msra.mxu0 0.0
    %764 = vmatprep.subr.mxu0 0.0
    %765 = vmatpush1.xpose.msra.mxu0 0.0
    %766 = vmatprep.subr.mxu0 0.0
    %767 = vmatpush1.xpose.msra.mxu0 0.0
    %768 = vmatprep.subr.mxu0 0.0
    %769 = vmatpush1.xpose.msra.mxu0 0.0
    %770 = vmatprep.subr.mxu0 0.0
    %771 = vmatpush1.xpose.msra.mxu0 0.0
    %772 = vmatprep.subr.mxu0 0.0
    %773 = vmatpush1.xpose.msra.mxu0 0.0
    %774 = vmatprep.subr.mxu0 0.0
    %775 = vmatpush1.xpose.msra.mxu0 0.0
    %776 = vmatprep.subr.mxu0 0.0
    %777 = vmatpush1.xpose.msra.mxu0 0.0
    %778 = vmatprep.subr.mxu0 0.0
    %779 = vmatpush1.xpose.msra.mxu0 0.0
    %780 = vmatprep.subr.mxu0 0.0
    %781 = vmatpush1.xpose.msra.mxu0 0.0
    %782 = vmatprep.subr.mxu0 0.0
    %783 = vmatpush1.xpose.msra.mxu0 0.0
    %784 = vmatprep.subr.mxu0 0.0
    %785 = vmatpush1.xpose.msra.mxu0 0.0
    %786 = vmatprep.subr.mxu0 0.0
    %787 = vmatpush1.xpose.msra.mxu0 0.0
    %788 = vmatprep.subr.mxu0 0.0
    %789 = vmatpush1.xpose.msra.mxu0 0.0
    %790 = vmatprep.subr.mxu0 0.0
    %791 = vmatpush1.xpose.msra.mxu0 0.0
    %792 = vmatprep.subr.mxu0 0.0
    %793 = vmatpush1.xpose.msra.mxu0 0.0
    %794 = vmatprep.subr.mxu0 0.0
    %795 = vmatpush1.xpose.msra.mxu0 0.0
    %796 = vmatprep.subr.mxu0 0.0
    %797 = vmatpush1.xpose.msra.mxu0 0.0
    %798 = vmatprep.subr.mxu0 0.0
    %799 = vmatpush1.xpose.msra.mxu0 0.0
    %800 = vmatprep.subr.mxu0 0.0
    %801 = vmatpush1.xpose.msra.mxu0 0.0
    %802 = vmatprep.subr.mxu0 0.0
    %803 = vmatpush1.xpose.msra.mxu0 0.0
    %804 = vmatprep.subr.mxu0 0.0
    %805 = vmatpush1.xpose.msra.mxu0 0.0
    %806 = vmatprep.subr.mxu0 0.0
    %807 = vmatpush1.xpose.msra.mxu0 0.0
    %808 = vmatprep.subr.mxu0 0.0
    %809 = vmatpush1.xpose.msra.mxu0 0.0
    %810 = vmatprep.subr.mxu0 0.0
    %811 = vmatpush1.xpose.msra.mxu0 0.0
    %812 = vmatprep.mubr.f32.mxu0 0.0
    %v813 = vand.u32 %v562, 4294901760
    %v814 = vsub.f32 %v562, %v813
    %815 = vmatmul.mubr.f32.gmra.mrb[0].mxu0 %v814
    %v816 = vpop.f32.mrb[0].mxu0
    %v817 = vadd.f32 %v735, %v816
    %v818 = vpop.f32.mrb[0].mxu0
    %819 = vmatprep.mubr.f32.mxu0 0.0
    %v820 = vand.u32 %v564, 4294901760
    %v821 = vsub.f32 %v564, %v820
    %822 = vmatmul.mubr.f32.gmra.mrb[0].mxu0 %v821
    %v823 = vpop.f32.mrb[0].mxu0
    %v824 = vadd.f32 %v741, %v823
    %v825 = vpop.f32.mrb[0].mxu0
    %826 = vdwg.mxu0
    %827 = vmatprep.subr.mxu0 0.0
    %v828 = vand.u32 %v566, 4294901760
    %829 = vmatpush1.xpose.msra.mxu0 %v828
    %830 = vmatprep.subr.mxu0 0.0
    %v831 = vand.u32 %v568, 4294901760
    %832 = vmatpush1.xpose.msra.mxu0 %v831
    %833 = vmatprep.subr.mxu0 0.0
    %834 = vmatpush1.xpose.msra.mxu0 0.0
    %835 = vmatprep.subr.mxu0 0.0
    %836 = vmatpush1.xpose.msra.mxu0 0.0
    %837 = vmatprep.subr.mxu0 0.0
    %838 = vmatpush1.xpose.msra.mxu0 0.0
    %839 = vmatprep.subr.mxu0 0.0
    %840 = vmatpush1.xpose.msra.mxu0 0.0
    %841 = vmatprep.subr.mxu0 0.0
    %842 = vmatpush1.xpose.msra.mxu0 0.0
    %843 = vmatprep.subr.mxu0 0.0
    %844 = vmatpush1.xpose.msra.mxu0 0.0
    %845 = vmatprep.subr.mxu0 0.0
    %846 = vmatpush1.xpose.msra.mxu0 0.0
    %847 = vmatprep.subr.mxu0 0.0
    %848 = vmatpush1.xpose.msra.mxu0 0.0
    %849 = vmatprep.subr.mxu0 0.0
    %850 = vmatpush1.xpose.msra.mxu0 0.0
    %851 = vmatprep.subr.mxu0 0.0
    %852 = vmatpush1.xpose.msra.mxu0 0.0
    %853 = vmatprep.subr.mxu0 0.0
    %854 = vmatpush1.xpose.msra.mxu0 0.0
    %855 = vmatprep.subr.mxu0 0.0
    %856 = vmatpush1.xpose.msra.mxu0 0.0
    %857 = vmatprep.subr.mxu0 0.0
    %858 = vmatpush1.xpose.msra.mxu0 0.0
    %859 = vmatprep.subr.mxu0 0.0
    %860 = vmatpush1.xpose.msra.mxu0 0.0
    %861 = vmatprep.subr.mxu0 0.0
    %862 = vmatpush1.xpose.msra.mxu0 0.0
    %863 = vmatprep.subr.mxu0 0.0
    %864 = vmatpush1.xpose.msra.mxu0 0.0
    %865 = vmatprep.subr.mxu0 0.0
    %866 = vmatpush1.xpose.msra.mxu0 0.0
    %867 = vmatprep.subr.mxu0 0.0
    %868 = vmatpush1.xpose.msra.mxu0 0.0
    %869 = vmatprep.subr.mxu0 0.0
    %870 = vmatpush1.xpose.msra.mxu0 0.0
    %871 = vmatprep.subr.mxu0 0.0
    %872 = vmatpush1.xpose.msra.mxu0 0.0
    %873 = vmatprep.subr.mxu0 0.0
    %874 = vmatpush1.xpose.msra.mxu0 0.0
    %875 = vmatprep.subr.mxu0 0.0
    %876 = vmatpush1.xpose.msra.mxu0 0.0
    %877 = vmatprep.subr.mxu0 0.0
    %878 = vmatpush1.xpose.msra.mxu0 0.0
    %879 = vmatprep.subr.mxu0 0.0
    %880 = vmatpush1.xpose.msra.mxu0 0.0
    %881 = vmatprep.subr.mxu0 0.0
    %882 = vmatpush1.xpose.msra.mxu0 0.0
    %883 = vmatprep.subr.mxu0 0.0
    %884 = vmatpush1.xpose.msra.mxu0 0.0
    %885 = vmatprep.subr.mxu0 0.0
    %886 = vmatpush1.xpose.msra.mxu0 0.0
    %887 = vmatprep.subr.mxu0 0.0
    %888 = vmatpush1.xpose.msra.mxu0 0.0
    %889 = vmatprep.subr.mxu0 0.0
    %890 = vmatpush1.xpose.msra.mxu0 0.0
    %891 = vmatprep.subr.mxu0 0.0
    %892 = vmatpush1.xpose.msra.mxu0 0.0
    %893 = vmatprep.mubr.f32.mxu0 0.0
    %v894 = vand.u32 %v562, 4294901760
    %v895 = vsub.f32 %v562, %v894
    %v896 = vand.u32 %v895, 4294901760
    %897 = vmatmul.mubr.f32.gmra.mrb[0].mxu0 %v896
    %v898 = vpop.f32.mrb[0].mxu0
    %v899 = vadd.f32 %v817, %v898
    %v900 = vpop.f32.mrb[0].mxu0
    %901 = vmatprep.mubr.f32.mxu0 0.0
    %v902 = vand.u32 %v564, 4294901760
    %v903 = vsub.f32 %v564, %v902
    %v904 = vand.u32 %v903, 4294901760
    %905 = vmatmul.mubr.f32.gmra.mrb[0].mxu0 %v904
    %v906 = vpop.f32.mrb[0].mxu0
    %v907 = vadd.f32 %v824, %v906
    %v908 = vpop.f32.mrb[0].mxu0
    %909 = vdwg.mxu0
    %910 = vmatprep.subr.mxu0 0.0
    %v911 = vand.u32 %v566, 4294901760
    %v912 = vsub.f32 %v566, %v911
    %v913 = vand.u32 %v912, 4294901760
    %914 = vmatpush1.xpose.msra.mxu0 %v913
    %915 = vmatprep.subr.mxu0 0.0
    %v916 = vand.u32 %v568, 4294901760
    %v917 = vsub.f32 %v568, %v916
    %v918 = vand.u32 %v917, 4294901760
    %919 = vmatpush1.xpose.msra.mxu0 %v918
    %920 = vmatprep.subr.mxu0 0.0
    %921 = vmatpush1.xpose.msra.mxu0 0.0
    %922 = vmatprep.subr.mxu0 0.0
    %923 = vmatpush1.xpose.msra.mxu0 0.0
    %924 = vmatprep.subr.mxu0 0.0
    %925 = vmatpush1.xpose.msra.mxu0 0.0
    %926 = vmatprep.subr.mxu0 0.0
    %927 = vmatpush1.xpose.msra.mxu0 0.0
    %928 = vmatprep.subr.mxu0 0.0
    %929 = vmatpush1.xpose.msra.mxu0 0.0
    %930 = vmatprep.subr.mxu0 0.0
    %931 = vmatpush1.xpose.msra.mxu0 0.0
    %932 = vmatprep.subr.mxu0 0.0
    %933 = vmatpush1.xpose.msra.mxu0 0.0
    %934 = vmatprep.subr.mxu0 0.0
    %935 = vmatpush1.xpose.msra.mxu0 0.0
    %936 = vmatprep.subr.mxu0 0.0
    %937 = vmatpush1.xpose.msra.mxu0 0.0
    %938 = vmatprep.subr.mxu0 0.0
    %939 = vmatpush1.xpose.msra.mxu0 0.0
    %940 = vmatprep.subr.mxu0 0.0
    %941 = vmatpush1.xpose.msra.mxu0 0.0
    %942 = vmatprep.subr.mxu0 0.0
    %943 = vmatpush1.xpose.msra.mxu0 0.0
    %944 = vmatprep.subr.mxu0 0.0
    %945 = vmatpush1.xpose.msra.mxu0 0.0
    %946 = vmatprep.subr.mxu0 0.0
    %947 = vmatpush1.xpose.msra.mxu0 0.0
    %948 = vmatprep.subr.mxu0 0.0
    %949 = vmatpush1.xpose.msra.mxu0 0.0
    %950 = vmatprep.subr.mxu0 0.0
    %951 = vmatpush1.xpose.msra.mxu0 0.0
    %952 = vmatprep.subr.mxu0 0.0
    %953 = vmatpush1.xpose.msra.mxu0 0.0
    %954 = vmatprep.subr.mxu0 0.0
    %955 = vmatpush1.xpose.msra.mxu0 0.0
    %956 = vmatprep.subr.mxu0 0.0
    %957 = vmatpush1.xpose.msra.mxu0 0.0
    %958 = vmatprep.subr.mxu0 0.0
    %959 = vmatpush1.xpose.msra.mxu0 0.0
    %960 = vmatprep.subr.mxu0 0.0
    %961 = vmatpush1.xpose.msra.mxu0 0.0
    %962 = vmatprep.subr.mxu0 0.0
    %963 = vmatpush1.xpose.msra.mxu0 0.0
    %964 = vmatprep.subr.mxu0 0.0
    %965 = vmatpush1.xpose.msra.mxu0 0.0
    %966 = vmatprep.subr.mxu0 0.0
    %967 = vmatpush1.xpose.msra.mxu0 0.0
    %968 = vmatprep.subr.mxu0 0.0
    %969 = vmatpush1.xpose.msra.mxu0 0.0
    %970 = vmatprep.subr.mxu0 0.0
    %971 = vmatpush1.xpose.msra.mxu0 0.0
    %972 = vmatprep.subr.mxu0 0.0
    %973 = vmatpush1.xpose.msra.mxu0 0.0
    %974 = vmatprep.subr.mxu0 0.0
    %975 = vmatpush1.xpose.msra.mxu0 0.0
    %976 = vmatprep.subr.mxu0 0.0
    %977 = vmatpush1.xpose.msra.mxu0 0.0
    %978 = vmatprep.subr.mxu0 0.0
    %979 = vmatpush1.xpose.msra.mxu0 0.0
    %980 = vmatprep.mubr.f32.mxu0 0.0
    %v981 = vand.u32 %v562, 4294901760
    %982 = vmatmul.mubr.f32.gmra.mrb[0].mxu0 %v981
    %v983 = vpop.f32.mrb[0].mxu0
    %v984 = vadd.f32 %v899, %v983
    %v985 = vpop.f32.mrb[0].mxu0
    %986 = vmatprep.mubr.f32.mxu0 0.0
    %v987 = vand.u32 %v564, 4294901760
    %988 = vmatmul.mubr.f32.gmra.mrb[0].mxu0 %v987
    %v989 = vpop.f32.mrb[0].mxu0
    %v990 = vadd.f32 %v907, %v989
    %v991 = vpop.f32.mrb[0].mxu0
    %992 = vdwg.mxu0
    %993 = vmatprep.subr.mxu0 0.0
    %v994 = vand.u32 %v566, 4294901760
    %995 = vmatpush1.xpose.msra.mxu0 %v994
    %996 = vmatprep.subr.mxu0 0.0
    %v997 = vand.u32 %v568, 4294901760
    %998 = vmatpush1.xpose.msra.mxu0 %v997
    %999 = vmatprep.subr.mxu0 0.0
    %1000 = vmatpush1.xpose.msra.mxu0 0.0
    %1001 = vmatprep.subr.mxu0 0.0
    %1002 = vmatpush1.xpose.msra.mxu0 0.0
    %1003 = vmatprep.subr.mxu0 0.0
    %1004 = vmatpush1.xpose.msra.mxu0 0.0
    %1005 = vmatprep.subr.mxu0 0.0
    %1006 = vmatpush1.xpose.msra.mxu0 0.0
    %1007 = vmatprep.subr.mxu0 0.0
    %1008 = vmatpush1.xpose.msra.mxu0 0.0
    %1009 = vmatprep.subr.mxu0 0.0
    %1010 = vmatpush1.xpose.msra.mxu0 0.0
    %1011 = vmatprep.subr.mxu0 0.0
    %1012 = vmatpush1.xpose.msra.mxu0 0.0
    %1013 = vmatprep.subr.mxu0 0.0
    %1014 = vmatpush1.xpose.msra.mxu0 0.0
    %1015 = vmatprep.subr.mxu0 0.0
    %1016 = vmatpush1.xpose.msra.mxu0 0.0
    %1017 = vmatprep.subr.mxu0 0.0
    %1018 = vmatpush1.xpose.msra.mxu0 0.0
    %1019 = vmatprep.subr.mxu0 0.0
    %1020 = vmatpush1.xpose.msra.mxu0 0.0
    %1021 = vmatprep.subr.mxu0 0.0
    %1022 = vmatpush1.xpose.msra.mxu0 0.0
    %1023 = vmatprep.subr.mxu0 0.0
    %1024 = vmatpush1.xpose.msra.mxu0 0.0
    %1025 = vmatprep.subr.mxu0 0.0
    %1026 = vmatpush1.xpose.msra.mxu0 0.0
    %1027 = vmatprep.subr.mxu0 0.0
    %1028 = vmatpush1.xpose.msra.mxu0 0.0
    %1029 = vmatprep.subr.mxu0 0.0
    %1030 = vmatpush1.xpose.msra.mxu0 0.0
    %1031 = vmatprep.subr.mxu0 0.0
    %1032 = vmatpush1.xpose.msra.mxu0 0.0
    %1033 = vmatprep.subr.mxu0 0.0
    %1034 = vmatpush1.xpose.msra.mxu0 0.0
    %1035 = vmatprep.subr.mxu0 0.0
    %1036 = vmatpush1.xpose.msra.mxu0 0.0
    %1037 = vmatprep.subr.mxu0 0.0
    %1038 = vmatpush1.xpose.msra.mxu0 0.0
    %1039 = vmatprep.subr.mxu0 0.0
    %1040 = vmatpush1.xpose.msra.mxu0 0.0
    %1041 = vmatprep.subr.mxu0 0.0
    %1042 = vmatpush1.xpose.msra.mxu0 0.0
    %1043 = vmatprep.subr.mxu0 0.0
    %1044 = vmatpush1.xpose.msra.mxu0 0.0
    %1045 = vmatprep.subr.mxu0 0.0
    %1046 = vmatpush1.xpose.msra.mxu0 0.0
    %1047 = vmatprep.subr.mxu0 0.0
    %1048 = vmatpush1.xpose.msra.mxu0 0.0
    %1049 = vmatprep.subr.mxu0 0.0
    %1050 = vmatpush1.xpose.msra.mxu0 0.0
    %1051 = vmatprep.subr.mxu0 0.0
    %1052 = vmatpush1.xpose.msra.mxu0 0.0
    %1053 = vmatprep.subr.mxu0 0.0
    %1054 = vmatpush1.xpose.msra.mxu0 0.0
    %1055 = vmatprep.subr.mxu0 0.0
    %1056 = vmatpush1.xpose.msra.mxu0 0.0
    %1057 = vmatprep.subr.mxu0 0.0
    %1058 = vmatpush1.xpose.msra.mxu0 0.0
    %1059 = vmatprep.mubr.f32.mxu0 0.0
    %v1060 = vand.u32 %v562, 4294901760
    %1061 = vmatmul.mubr.f32.gmra.mrb[0].mxu0 %v1060
    %v1062 = vpop.f32.mrb[0].mxu0
    %v1063 = vadd.f32 %v984, %v1062
    %v1064 = vpop.f32.mrb[0].mxu0
    %1065 = vmatprep.mubr.f32.mxu0 0.0
    %v1066 = vand.u32 %v564, 4294901760
    %1067 = vmatmul.mubr.f32.gmra.mrb[0].mxu0 %v1066
    %v1068 = vpop.f32.mrb[0].mxu0
    %v1069 = vadd.f32 %v990, %v1068
    %v1070 = vpop.f32.mrb[0].mxu0
    %1071 = vdwg.mxu0
    %1072 = vrot.lane.b32.xlu0 %v37, 96
    %v1073 = vpop.permute.xlu0 %1072
    %1074 = vrot.lane.b32.xlu0 %v38, 96
    %v1075 = vpop.permute.xlu0 %1074
    %1076 = vrot.lane.b32.xlu0 %v26, 96
    %v1077 = vpop.permute.xlu0 %1076
    %1078 = vrot.lane.b32.xlu0 %v27, 96
    %v1079 = vpop.permute.xlu0 %1078
    %v1080 = vsel %vm39, %v1073, 0
    %v1082 = vsel %vm39, %v1075, 0
    %v1084 = vsel %vm39, %v1077, 0
    %v1086 = vsel %vm39, %v1079, 0
    %1088 = vmatprep.subr.mxu0 0.0
    %v1089 = vand.u32 %v1084, 4294901760
    %1090 = vmatpush1.xpose.msra.mxu0 %v1089
    %1091 = vmatprep.subr.mxu0 0.0
    %v1092 = vand.u32 %v1086, 4294901760
    %1093 = vmatpush1.xpose.msra.mxu0 %v1092
    %1094 = vmatprep.subr.mxu0 0.0
    %1095 = vmatpush1.xpose.msra.mxu0 0.0
    %1096 = vmatprep.subr.mxu0 0.0
    %1097 = vmatpush1.xpose.msra.mxu0 0.0
    %1098 = vmatprep.subr.mxu0 0.0
    %1099 = vmatpush1.xpose.msra.mxu0 0.0
    %1100 = vmatprep.subr.mxu0 0.0
    %1101 = vmatpush1.xpose.msra.mxu0 0.0
    %1102 = vmatprep.subr.mxu0 0.0
    %1103 = vmatpush1.xpose.msra.mxu0 0.0
    %1104 = vmatprep.subr.mxu0 0.0
    %1105 = vmatpush1.xpose.msra.mxu0 0.0
    %1106 = vmatprep.subr.mxu0 0.0
    %1107 = vmatpush1.xpose.msra.mxu0 0.0
    %1108 = vmatprep.subr.mxu0 0.0
    %1109 = vmatpush1.xpose.msra.mxu0 0.0
    %1110 = vmatprep.subr.mxu0 0.0
    %1111 = vmatpush1.xpose.msra.mxu0 0.0
    %1112 = vmatprep.subr.mxu0 0.0
    %1113 = vmatpush1.xpose.msra.mxu0 0.0
    %1114 = vmatprep.subr.mxu0 0.0
    %1115 = vmatpush1.xpose.msra.mxu0 0.0
    %1116 = vmatprep.subr.mxu0 0.0
    %1117 = vmatpush1.xpose.msra.mxu0 0.0
    %1118 = vmatprep.subr.mxu0 0.0
    %1119 = vmatpush1.xpose.msra.mxu0 0.0
    %1120 = vmatprep.subr.mxu0 0.0
    %1121 = vmatpush1.xpose.msra.mxu0 0.0
    %1122 = vmatprep.subr.mxu0 0.0
    %1123 = vmatpush1.xpose.msra.mxu0 0.0
    %1124 = vmatprep.subr.mxu0 0.0
    %1125 = vmatpush1.xpose.msra.mxu0 0.0
    %1126 = vmatprep.subr.mxu0 0.0
    %1127 = vmatpush1.xpose.msra.mxu0 0.0
    %1128 = vmatprep.subr.mxu0 0.0
    %1129 = vmatpush1.xpose.msra.mxu0 0.0
    %1130 = vmatprep.subr.mxu0 0.0
    %1131 = vmatpush1.xpose.msra.mxu0 0.0
    %1132 = vmatprep.subr.mxu0 0.0
    %1133 = vmatpush1.xpose.msra.mxu0 0.0
    %1134 = vmatprep.subr.mxu0 0.0
    %1135 = vmatpush1.xpose.msra.mxu0 0.0
    %1136 = vmatprep.subr.mxu0 0.0
    %1137 = vmatpush1.xpose.msra.mxu0 0.0
    %1138 = vmatprep.subr.mxu0 0.0
    %1139 = vmatpush1.xpose.msra.mxu0 0.0
    %1140 = vmatprep.subr.mxu0 0.0
    %1141 = vmatpush1.xpose.msra.mxu0 0.0
    %1142 = vmatprep.subr.mxu0 0.0
    %1143 = vmatpush1.xpose.msra.mxu0 0.0
    %1144 = vmatprep.subr.mxu0 0.0
    %1145 = vmatpush1.xpose.msra.mxu0 0.0
    %1146 = vmatprep.subr.mxu0 0.0
    %1147 = vmatpush1.xpose.msra.mxu0 0.0
    %1148 = vmatprep.subr.mxu0 0.0
    %1149 = vmatpush1.xpose.msra.mxu0 0.0
    %1150 = vmatprep.subr.mxu0 0.0
    %1151 = vmatpush1.xpose.msra.mxu0 0.0
    %1152 = vmatprep.subr.mxu0 0.0
    %1153 = vmatpush1.xpose.msra.mxu0 0.0
    %1154 = vmatprep.mubr.f32.mxu0 0.0
    %v1155 = vand.u32 %v1080, 4294901760
    %v1156 = vsub.f32 %v1080, %v1155
    %v1157 = vand.u32 %v1156, 4294901760
    %v1158 = vsub.f32 %v1156, %v1157
    %v1159 = vand.u32 %v1158, 4294901760
    %1160 = vmatmul.mubr.f32.gmra.mrb[0].mxu0 %v1159
    %v1161 = vpop.f32.mrb[0].mxu0
    %v1162 = vadd.f32 0.0, %v1161
    %v1163 = vpop.f32.mrb[0].mxu0
    %1164 = vmatprep.mubr.f32.mxu0 0.0
    %v1165 = vand.u32 %v1082, 4294901760
    %v1166 = vsub.f32 %v1082, %v1165
    %v1167 = vand.u32 %v1166, 4294901760
    %v1168 = vsub.f32 %v1166, %v1167
    %v1169 = vand.u32 %v1168, 4294901760
    %1170 = vmatmul.mubr.f32.gmra.mrb[0].mxu0 %v1169
    %v1171 = vpop.f32.mrb[0].mxu0
    %v1172 = vadd.f32 0.0, %v1171
    %v1173 = vpop.f32.mrb[0].mxu0
    %1174 = vdwg.mxu0
    %1175 = vmatprep.subr.mxu0 0.0
    %v1176 = vand.u32 %v1084, 4294901760
    %v1177 = vsub.f32 %v1084, %v1176
    %v1178 = vand.u32 %v1177, 4294901760
    %v1179 = vsub.f32 %v1177, %v1178
    %v1180 = vand.u32 %v1179, 4294901760
    %1181 = vmatpush1.xpose.msra.mxu0 %v1180
    %1182 = vmatprep.subr.mxu0 0.0
    %v1183 = vand.u32 %v1086, 4294901760
    %v1184 = vsub.f32 %v1086, %v1183
    %v1185 = vand.u32 %v1184, 4294901760
    %v1186 = vsub.f32 %v1184, %v1185
    %v1187 = vand.u32 %v1186, 4294901760
    %1188 = vmatpush1.xpose.msra.mxu0 %v1187
    %1189 = vmatprep.subr.mxu0 0.0
    %1190 = vmatpush1.xpose.msra.mxu0 0.0
    %1191 = vmatprep.subr.mxu0 0.0
    %1192 = vmatpush1.xpose.msra.mxu0 0.0
    %1193 = vmatprep.subr.mxu0 0.0
    %1194 = vmatpush1.xpose.msra.mxu0 0.0
    %1195 = vmatprep.subr.mxu0 0.0
    %1196 = vmatpush1.xpose.msra.mxu0 0.0
    %1197 = vmatprep.subr.mxu0 0.0
    %1198 = vmatpush1.xpose.msra.mxu0 0.0
    %1199 = vmatprep.subr.mxu0 0.0
    %1200 = vmatpush1.xpose.msra.mxu0 0.0
    %1201 = vmatprep.subr.mxu0 0.0
    %1202 = vmatpush1.xpose.msra.mxu0 0.0
    %1203 = vmatprep.subr.mxu0 0.0
    %1204 = vmatpush1.xpose.msra.mxu0 0.0
    %1205 = vmatprep.subr.mxu0 0.0
    %1206 = vmatpush1.xpose.msra.mxu0 0.0
    %1207 = vmatprep.subr.mxu0 0.0
    %1208 = vmatpush1.xpose.msra.mxu0 0.0
    %1209 = vmatprep.subr.mxu0 0.0
    %1210 = vmatpush1.xpose.msra.mxu0 0.0
    %1211 = vmatprep.subr.mxu0 0.0
    %1212 = vmatpush1.xpose.msra.mxu0 0.0
    %1213 = vmatprep.subr.mxu0 0.0
    %1214 = vmatpush1.xpose.msra.mxu0 0.0
    %1215 = vmatprep.subr.mxu0 0.0
    %1216 = vmatpush1.xpose.msra.mxu0 0.0
    %1217 = vmatprep.subr.mxu0 0.0
    %1218 = vmatpush1.xpose.msra.mxu0 0.0
    %1219 = vmatprep.subr.mxu0 0.0
    %1220 = vmatpush1.xpose.msra.mxu0 0.0
    %1221 = vmatprep.subr.mxu0 0.0
    %1222 = vmatpush1.xpose.msra.mxu0 0.0
    %1223 = vmatprep.subr.mxu0 0.0
    %1224 = vmatpush1.xpose.msra.mxu0 0.0
    %1225 = vmatprep.subr.mxu0 0.0
    %1226 = vmatpush1.xpose.msra.mxu0 0.0
    %1227 = vmatprep.subr.mxu0 0.0
    %1228 = vmatpush1.xpose.msra.mxu0 0.0
    %1229 = vmatprep.subr.mxu0 0.0
    %1230 = vmatpush1.xpose.msra.mxu0 0.0
    %1231 = vmatprep.subr.mxu0 0.0
    %1232 = vmatpush1.xpose.msra.mxu0 0.0
    %1233 = vmatprep.subr.mxu0 0.0
    %1234 = vmatpush1.xpose.msra.mxu0 0.0
    %1235 = vmatprep.subr.mxu0 0.0
    %1236 = vmatpush1.xpose.msra.mxu0 0.0
    %1237 = vmatprep.subr.mxu0 0.0
    %1238 = vmatpush1.xpose.msra.mxu0 0.0
    %1239 = vmatprep.subr.mxu0 0.0
    %1240 = vmatpush1.xpose.msra.mxu0 0.0
    %1241 = vmatprep.subr.mxu0 0.0
    %1242 = vmatpush1.xpose.msra.mxu0 0.0
    %1243 = vmatprep.subr.mxu0 0.0
    %1244 = vmatpush1.xpose.msra.mxu0 0.0
    %1245 = vmatprep.subr.mxu0 0.0
    %1246 = vmatpush1.xpose.msra.mxu0 0.0
    %1247 = vmatprep.subr.mxu0 0.0
    %1248 = vmatpush1.xpose.msra.mxu0 0.0
    %1249 = vmatprep.mubr.f32.mxu0 0.0
    %v1250 = vand.u32 %v1080, 4294901760
    %1251 = vmatmul.mubr.f32.gmra.mrb[0].mxu0 %v1250
    %v1252 = vpop.f32.mrb[0].mxu0
    %v1253 = vadd.f32 %v1162, %v1252
    %v1254 = vpop.f32.mrb[0].mxu0
    %1255 = vmatprep.mubr.f32.mxu0 0.0
    %v1256 = vand.u32 %v1082, 4294901760
    %1257 = vmatmul.mubr.f32.gmra.mrb[0].mxu0 %v1256
    %v1258 = vpop.f32.mrb[0].mxu0
    %v1259 = vadd.f32 %v1172, %v1258
    %v1260 = vpop.f32.mrb[0].mxu0
    %1261 = vdwg.mxu0
    %1262 = vmatprep.subr.mxu0 0.0
    %v1263 = vand.u32 %v1084, 4294901760
    %v1264 = vsub.f32 %v1084, %v1263
    %1265 = vmatpush1.xpose.msra.mxu0 %v1264
    %1266 = vmatprep.subr.mxu0 0.0
    %v1267 = vand.u32 %v1086, 4294901760
    %v1268 = vsub.f32 %v1086, %v1267
    %1269 = vmatpush1.xpose.msra.mxu0 %v1268
    %1270 = vmatprep.subr.mxu0 0.0
    %1271 = vmatpush1.xpose.msra.mxu0 0.0
    %1272 = vmatprep.subr.mxu0 0.0
    %1273 = vmatpush1.xpose.msra.mxu0 0.0
    %1274 = vmatprep.subr.mxu0 0.0
    %1275 = vmatpush1.xpose.msra.mxu0 0.0
    %1276 = vmatprep.subr.mxu0 0.0
    %1277 = vmatpush1.xpose.msra.mxu0 0.0
    %1278 = vmatprep.subr.mxu0 0.0
    %1279 = vmatpush1.xpose.msra.mxu0 0.0
    %1280 = vmatprep.subr.mxu0 0.0
    %1281 = vmatpush1.xpose.msra.mxu0 0.0
    %1282 = vmatprep.subr.mxu0 0.0
    %1283 = vmatpush1.xpose.msra.mxu0 0.0
    %1284 = vmatprep.subr.mxu0 0.0
    %1285 = vmatpush1.xpose.msra.mxu0 0.0
    %1286 = vmatprep.subr.mxu0 0.0
    %1287 = vmatpush1.xpose.msra.mxu0 0.0
    %1288 = vmatprep.subr.mxu0 0.0
    %1289 = vmatpush1.xpose.msra.mxu0 0.0
    %1290 = vmatprep.subr.mxu0 0.0
    %1291 = vmatpush1.xpose.msra.mxu0 0.0
    %1292 = vmatprep.subr.mxu0 0.0
    %1293 = vmatpush1.xpose.msra.mxu0 0.0
    %1294 = vmatprep.subr.mxu0 0.0
    %1295 = vmatpush1.xpose.msra.mxu0 0.0
    %1296 = vmatprep.subr.mxu0 0.0
    %1297 = vmatpush1.xpose.msra.mxu0 0.0
    %1298 = vmatprep.subr.mxu0 0.0
    %1299 = vmatpush1.xpose.msra.mxu0 0.0
    %1300 = vmatprep.subr.mxu0 0.0
    %1301 = vmatpush1.xpose.msra.mxu0 0.0
    %1302 = vmatprep.subr.mxu0 0.0
    %1303 = vmatpush1.xpose.msra.mxu0 0.0
    %1304 = vmatprep.subr.mxu0 0.0
    %1305 = vmatpush1.xpose.msra.mxu0 0.0
    %1306 = vmatprep.subr.mxu0 0.0
    %1307 = vmatpush1.xpose.msra.mxu0 0.0
    %1308 = vmatprep.subr.mxu0 0.0
    %1309 = vmatpush1.xpose.msra.mxu0 0.0
    %1310 = vmatprep.subr.mxu0 0.0
    %1311 = vmatpush1.xpose.msra.mxu0 0.0
    %1312 = vmatprep.subr.mxu0 0.0
    %1313 = vmatpush1.xpose.msra.mxu0 0.0
    %1314 = vmatprep.subr.mxu0 0.0
    %1315 = vmatpush1.xpose.msra.mxu0 0.0
    %1316 = vmatprep.subr.mxu0 0.0
    %1317 = vmatpush1.xpose.msra.mxu0 0.0
    %1318 = vmatprep.subr.mxu0 0.0
    %1319 = vmatpush1.xpose.msra.mxu0 0.0
    %1320 = vmatprep.subr.mxu0 0.0
    %1321 = vmatpush1.xpose.msra.mxu0 0.0
    %1322 = vmatprep.subr.mxu0 0.0
    %1323 = vmatpush1.xpose.msra.mxu0 0.0
    %1324 = vmatprep.subr.mxu0 0.0
    %1325 = vmatpush1.xpose.msra.mxu0 0.0
    %1326 = vmatprep.subr.mxu0 0.0
    %1327 = vmatpush1.xpose.msra.mxu0 0.0
    %1328 = vmatprep.subr.mxu0 0.0
    %1329 = vmatpush1.xpose.msra.mxu0 0.0
    %1330 = vmatprep.mubr.f32.mxu0 0.0
    %v1331 = vand.u32 %v1080, 4294901760
    %v1332 = vsub.f32 %v1080, %v1331
    %1333 = vmatmul.mubr.f32.gmra.mrb[0].mxu0 %v1332
    %v1334 = vpop.f32.mrb[0].mxu0
    %v1335 = vadd.f32 %v1253, %v1334
    %v1336 = vpop.f32.mrb[0].mxu0
    %1337 = vmatprep.mubr.f32.mxu0 0.0
    %v1338 = vand.u32 %v1082, 4294901760
    %v1339 = vsub.f32 %v1082, %v1338
    %1340 = vmatmul.mubr.f32.gmra.mrb[0].mxu0 %v1339
    %v1341 = vpop.f32.mrb[0].mxu0
    %v1342 = vadd.f32 %v1259, %v1341
    %v1343 = vpop.f32.mrb[0].mxu0
    %1344 = vdwg.mxu0
    %1345 = vmatprep.subr.mxu0 0.0
    %v1346 = vand.u32 %v1084, 4294901760
    %1347 = vmatpush1.xpose.msra.mxu0 %v1346
    %1348 = vmatprep.subr.mxu0 0.0
    %v1349 = vand.u32 %v1086, 4294901760
    %1350 = vmatpush1.xpose.msra.mxu0 %v1349
    %1351 = vmatprep.subr.mxu0 0.0
    %1352 = vmatpush1.xpose.msra.mxu0 0.0
    %1353 = vmatprep.subr.mxu0 0.0
    %1354 = vmatpush1.xpose.msra.mxu0 0.0
    %1355 = vmatprep.subr.mxu0 0.0
    %1356 = vmatpush1.xpose.msra.mxu0 0.0
    %1357 = vmatprep.subr.mxu0 0.0
    %1358 = vmatpush1.xpose.msra.mxu0 0.0
    %1359 = vmatprep.subr.mxu0 0.0
    %1360 = vmatpush1.xpose.msra.mxu0 0.0
    %1361 = vmatprep.subr.mxu0 0.0
    %1362 = vmatpush1.xpose.msra.mxu0 0.0
    %1363 = vmatprep.subr.mxu0 0.0
    %1364 = vmatpush1.xpose.msra.mxu0 0.0
    %1365 = vmatprep.subr.mxu0 0.0
    %1366 = vmatpush1.xpose.msra.mxu0 0.0
    %1367 = vmatprep.subr.mxu0 0.0
    %1368 = vmatpush1.xpose.msra.mxu0 0.0
    %1369 = vmatprep.subr.mxu0 0.0
    %1370 = vmatpush1.xpose.msra.mxu0 0.0
    %1371 = vmatprep.subr.mxu0 0.0
    %1372 = vmatpush1.xpose.msra.mxu0 0.0
    %1373 = vmatprep.subr.mxu0 0.0
    %1374 = vmatpush1.xpose.msra.mxu0 0.0
    %1375 = vmatprep.subr.mxu0 0.0
    %1376 = vmatpush1.xpose.msra.mxu0 0.0
    %1377 = vmatprep.subr.mxu0 0.0
    %1378 = vmatpush1.xpose.msra.mxu0 0.0
    %1379 = vmatprep.subr.mxu0 0.0
    %1380 = vmatpush1.xpose.msra.mxu0 0.0
    %1381 = vmatprep.subr.mxu0 0.0
    %1382 = vmatpush1.xpose.msra.mxu0 0.0
    %1383 = vmatprep.subr.mxu0 0.0
    %1384 = vmatpush1.xpose.msra.mxu0 0.0
    %1385 = vmatprep.subr.mxu0 0.0
    %1386 = vmatpush1.xpose.msra.mxu0 0.0
    %1387 = vmatprep.subr.mxu0 0.0
    %1388 = vmatpush1.xpose.msra.mxu0 0.0
    %1389 = vmatprep.subr.mxu0 0.0
    %1390 = vmatpush1.xpose.msra.mxu0 0.0
    %1391 = vmatprep.subr.mxu0 0.0
    %1392 = vmatpush1.xpose.msra.mxu0 0.0
    %1393 = vmatprep.subr.mxu0 0.0
    %1394 = vmatpush1.xpose.msra.mxu0 0.0
    %1395 = vmatprep.subr.mxu0 0.0
    %1396 = vmatpush1.xpose.msra.mxu0 0.0
    %1397 = vmatprep.subr.mxu0 0.0
    %1398 = vmatpush1.xpose.msra.mxu0 0.0
    %1399 = vmatprep.subr.mxu0 0.0
    %1400 = vmatpush1.xpose.msra.mxu0 0.0
    %1401 = vmatprep.subr.mxu0 0.0
    %1402 = vmatpush1.xpose.msra.mxu0 0.0
    %1403 = vmatprep.subr.mxu0 0.0
    %1404 = vmatpush1.xpose.msra.mxu0 0.0
    %1405 = vmatprep.subr.mxu0 0.0
    %1406 = vmatpush1.xpose.msra.mxu0 0.0
    %1407 = vmatprep.subr.mxu0 0.0
    %1408 = vmatpush1.xpose.msra.mxu0 0.0
    %1409 = vmatprep.subr.mxu0 0.0
    %1410 = vmatpush1.xpose.msra.mxu0 0.0
    %1411 = vmatprep.mubr.f32.mxu0 0.0
    %v1412 = vand.u32 %v1080, 4294901760
    %v1413 = vsub.f32 %v1080, %v1412
    %v1414 = vand.u32 %v1413, 4294901760
    %1415 = vmatmul.mubr.f32.gmra.mrb[0].mxu0 %v1414
    %v1416 = vpop.f32.mrb[0].mxu0
    %v1417 = vadd.f32 %v1335, %v1416
    %v1418 = vpop.f32.mrb[0].mxu0
    %1419 = vmatprep.mubr.f32.mxu0 0.0
    %v1420 = vand.u32 %v1082, 4294901760
    %v1421 = vsub.f32 %v1082, %v1420
    %v1422 = vand.u32 %v1421, 4294901760
    %1423 = vmatmul.mubr.f32.gmra.mrb[0].mxu0 %v1422
    %v1424 = vpop.f32.mrb[0].mxu0
    %v1425 = vadd.f32 %v1342, %v1424
    %v1426 = vpop.f32.mrb[0].mxu0
    %1427 = vdwg.mxu0
    %1428 = vmatprep.subr.mxu0 0.0
    %v1429 = vand.u32 %v1084, 4294901760
    %v1430 = vsub.f32 %v1084, %v1429
    %v1431 = vand.u32 %v1430, 4294901760
    %1432 = vmatpush1.xpose.msra.mxu0 %v1431
    %1433 = vmatprep.subr.mxu0 0.0
    %v1434 = vand.u32 %v1086, 4294901760
    %v1435 = vsub.f32 %v1086, %v1434
    %v1436 = vand.u32 %v1435, 4294901760
    %1437 = vmatpush1.xpose.msra.mxu0 %v1436
    %1438 = vmatprep.subr.mxu0 0.0
    %1439 = vmatpush1.xpose.msra.mxu0 0.0
    %1440 = vmatprep.subr.mxu0 0.0
    %1441 = vmatpush1.xpose.msra.mxu0 0.0
    %1442 = vmatprep.subr.mxu0 0.0
    %1443 = vmatpush1.xpose.msra.mxu0 0.0
    %1444 = vmatprep.subr.mxu0 0.0
    %1445 = vmatpush1.xpose.msra.mxu0 0.0
    %1446 = vmatprep.subr.mxu0 0.0
    %1447 = vmatpush1.xpose.msra.mxu0 0.0
    %1448 = vmatprep.subr.mxu0 0.0
    %1449 = vmatpush1.xpose.msra.mxu0 0.0
    %1450 = vmatprep.subr.mxu0 0.0
    %1451 = vmatpush1.xpose.msra.mxu0 0.0
    %1452 = vmatprep.subr.mxu0 0.0
    %1453 = vmatpush1.xpose.msra.mxu0 0.0
    %1454 = vmatprep.subr.mxu0 0.0
    %1455 = vmatpush1.xpose.msra.mxu0 0.0
    %1456 = vmatprep.subr.mxu0 0.0
    %1457 = vmatpush1.xpose.msra.mxu0 0.0
    %1458 = vmatprep.subr.mxu0 0.0
    %1459 = vmatpush1.xpose.msra.mxu0 0.0
    %1460 = vmatprep.subr.mxu0 0.0
    %1461 = vmatpush1.xpose.msra.mxu0 0.0
    %1462 = vmatprep.subr.mxu0 0.0
    %1463 = vmatpush1.xpose.msra.mxu0 0.0
    %1464 = vmatprep.subr.mxu0 0.0
    %1465 = vmatpush1.xpose.msra.mxu0 0.0
    %1466 = vmatprep.subr.mxu0 0.0
    %1467 = vmatpush1.xpose.msra.mxu0 0.0
    %1468 = vmatprep.subr.mxu0 0.0
    %1469 = vmatpush1.xpose.msra.mxu0 0.0
    %1470 = vmatprep.subr.mxu0 0.0
    %1471 = vmatpush1.xpose.msra.mxu0 0.0
    %1472 = vmatprep.subr.mxu0 0.0
    %1473 = vmatpush1.xpose.msra.mxu0 0.0
    %1474 = vmatprep.subr.mxu0 0.0
    %1475 = vmatpush1.xpose.msra.mxu0 0.0
    %1476 = vmatprep.subr.mxu0 0.0
    %1477 = vmatpush1.xpose.msra.mxu0 0.0
    %1478 = vmatprep.subr.mxu0 0.0
    %1479 = vmatpush1.xpose.msra.mxu0 0.0
    %1480 = vmatprep.subr.mxu0 0.0
    %1481 = vmatpush1.xpose.msra.mxu0 0.0
    %1482 = vmatprep.subr.mxu0 0.0
    %1483 = vmatpush1.xpose.msra.mxu0 0.0
    %1484 = vmatprep.subr.mxu0 0.0
    %1485 = vmatpush1.xpose.msra.mxu0 0.0
    %1486 = vmatprep.subr.mxu0 0.0
    %1487 = vmatpush1.xpose.msra.mxu0 0.0
    %1488 = vmatprep.subr.mxu0 0.0
    %1489 = vmatpush1.xpose.msra.mxu0 0.0
    %1490 = vmatprep.subr.mxu0 0.0
    %1491 = vmatpush1.xpose.msra.mxu0 0.0
    %1492 = vmatprep.subr.mxu0 0.0
    %1493 = vmatpush1.xpose.msra.mxu0 0.0
    %1494 = vmatprep.subr.mxu0 0.0
    %1495 = vmatpush1.xpose.msra.mxu0 0.0
    %1496 = vmatprep.subr.mxu0 0.0
    %1497 = vmatpush1.xpose.msra.mxu0 0.0
    %1498 = vmatprep.mubr.f32.mxu0 0.0
    %v1499 = vand.u32 %v1080, 4294901760
    %1500 = vmatmul.mubr.f32.gmra.mrb[0].mxu0 %v1499
    %v1501 = vpop.f32.mrb[0].mxu0
    %v1502 = vadd.f32 %v1417, %v1501
    %v1503 = vpop.f32.mrb[0].mxu0
    %1504 = vmatprep.mubr.f32.mxu0 0.0
    %v1505 = vand.u32 %v1082, 4294901760
    %1506 = vmatmul.mubr.f32.gmra.mrb[0].mxu0 %v1505
    %v1507 = vpop.f32.mrb[0].mxu0
    %v1508 = vadd.f32 %v1425, %v1507
    %v1509 = vpop.f32.mrb[0].mxu0
    %1510 = vdwg.mxu0
    %1511 = vmatprep.subr.mxu0 0.0
    %v1512 = vand.u32 %v1084, 4294901760
    %1513 = vmatpush1.xpose.msra.mxu0 %v1512
    %1514 = vmatprep.subr.mxu0 0.0
    %v1515 = vand.u32 %v1086, 4294901760
    %1516 = vmatpush1.xpose.msra.mxu0 %v1515
    %1517 = vmatprep.subr.mxu0 0.0
    %1518 = vmatpush1.xpose.msra.mxu0 0.0
    %1519 = vmatprep.subr.mxu0 0.0
    %1520 = vmatpush1.xpose.msra.mxu0 0.0
    %1521 = vmatprep.subr.mxu0 0.0
    %1522 = vmatpush1.xpose.msra.mxu0 0.0
    %1523 = vmatprep.subr.mxu0 0.0
    %1524 = vmatpush1.xpose.msra.mxu0 0.0
    %1525 = vmatprep.subr.mxu0 0.0
    %1526 = vmatpush1.xpose.msra.mxu0 0.0
    %1527 = vmatprep.subr.mxu0 0.0
    %1528 = vmatpush1.xpose.msra.mxu0 0.0
    %1529 = vmatprep.subr.mxu0 0.0
    %1530 = vmatpush1.xpose.msra.mxu0 0.0
    %1531 = vmatprep.subr.mxu0 0.0
    %1532 = vmatpush1.xpose.msra.mxu0 0.0
    %1533 = vmatprep.subr.mxu0 0.0
    %1534 = vmatpush1.xpose.msra.mxu0 0.0
    %1535 = vmatprep.subr.mxu0 0.0
    %1536 = vmatpush1.xpose.msra.mxu0 0.0
    %1537 = vmatprep.subr.mxu0 0.0
    %1538 = vmatpush1.xpose.msra.mxu0 0.0
    %1539 = vmatprep.subr.mxu0 0.0
    %1540 = vmatpush1.xpose.msra.mxu0 0.0
    %1541 = vmatprep.subr.mxu0 0.0
    %1542 = vmatpush1.xpose.msra.mxu0 0.0
    %1543 = vmatprep.subr.mxu0 0.0
    %1544 = vmatpush1.xpose.msra.mxu0 0.0
    %1545 = vmatprep.subr.mxu0 0.0
    %1546 = vmatpush1.xpose.msra.mxu0 0.0
    %1547 = vmatprep.subr.mxu0 0.0
    %1548 = vmatpush1.xpose.msra.mxu0 0.0
    %1549 = vmatprep.subr.mxu0 0.0
    %1550 = vmatpush1.xpose.msra.mxu0 0.0
    %1551 = vmatprep.subr.mxu0 0.0
    %1552 = vmatpush1.xpose.msra.mxu0 0.0
    %1553 = vmatprep.subr.mxu0 0.0
    %1554 = vmatpush1.xpose.msra.mxu0 0.0
    %1555 = vmatprep.subr.mxu0 0.0
    %1556 = vmatpush1.xpose.msra.mxu0 0.0
    %1557 = vmatprep.subr.mxu0 0.0
    %1558 = vmatpush1.xpose.msra.mxu0 0.0
    %1559 = vmatprep.subr.mxu0 0.0
    %1560 = vmatpush1.xpose.msra.mxu0 0.0
    %1561 = vmatprep.subr.mxu0 0.0
    %1562 = vmatpush1.xpose.msra.mxu0 0.0
    %1563 = vmatprep.subr.mxu0 0.0
    %1564 = vmatpush1.xpose.msra.mxu0 0.0
    %1565 = vmatprep.subr.mxu0 0.0
    %1566 = vmatpush1.xpose.msra.mxu0 0.0
    %1567 = vmatprep.subr.mxu0 0.0
    %1568 = vmatpush1.xpose.msra.mxu0 0.0
    %1569 = vmatprep.subr.mxu0 0.0
    %1570 = vmatpush1.xpose.msra.mxu0 0.0
    %1571 = vmatprep.subr.mxu0 0.0
    %1572 = vmatpush1.xpose.msra.mxu0 0.0
    %1573 = vmatprep.subr.mxu0 0.0
    %1574 = vmatpush1.xpose.msra.mxu0 0.0
    %1575 = vmatprep.subr.mxu0 0.0
    %1576 = vmatpush1.xpose.msra.mxu0 0.0
    %1577 = vmatprep.mubr.f32.mxu0 0.0
    %v1578 = vand.u32 %v1080, 4294901760
    %1579 = vmatmul.mubr.f32.gmra.mrb[0].mxu0 %v1578
    %v1580 = vpop.f32.mrb[0].mxu0
    %v1581 = vadd.f32 %v1502, %v1580
    %v1582 = vpop.f32.mrb[0].mxu0
    %1583 = vmatprep.mubr.f32.mxu0 0.0
    %v1584 = vand.u32 %v1082, 4294901760
    %1585 = vmatmul.mubr.f32.gmra.mrb[0].mxu0 %v1584
    %v1586 = vpop.f32.mrb[0].mxu0
    %v1587 = vadd.f32 %v1508, %v1586
    %v1588 = vpop.f32.mrb[0].mxu0
    %1589 = vdwg.mxu0
    %1590 = vrot.lane.b32.xlu0 %v37, 80
    %v1591 = vpop.permute.xlu0 %1590
    %1592 = vrot.lane.b32.xlu0 %v38, 80
    %v1593 = vpop.permute.xlu0 %1592
    %1594 = vrot.lane.b32.xlu0 %v26, 80
    %v1595 = vpop.permute.xlu0 %1594
    %1596 = vrot.lane.b32.xlu0 %v27, 80
    %v1597 = vpop.permute.xlu0 %1596
    %v1598 = vsel %vm39, %v1591, 0
    %v1600 = vsel %vm39, %v1593, 0
    %v1602 = vsel %vm39, %v1595, 0
    %v1604 = vsel %vm39, %v1597, 0
    %1606 = vmatprep.subr.mxu0 0.0
    %v1607 = vand.u32 %v1602, 4294901760
    %1608 = vmatpush1.xpose.msra.mxu0 %v1607
    %1609 = vmatprep.subr.mxu0 0.0
    %v1610 = vand.u32 %v1604, 4294901760
    %1611 = vmatpush1.xpose.msra.mxu0 %v1610
    %1612 = vmatprep.subr.mxu0 0.0
    %1613 = vmatpush1.xpose.msra.mxu0 0.0
    %1614 = vmatprep.subr.mxu0 0.0
    %1615 = vmatpush1.xpose.msra.mxu0 0.0
    %1616 = vmatprep.subr.mxu0 0.0
    %1617 = vmatpush1.xpose.msra.mxu0 0.0
    %1618 = vmatprep.subr.mxu0 0.0
    %1619 = vmatpush1.xpose.msra.mxu0 0.0
    %1620 = vmatprep.subr.mxu0 0.0
    %1621 = vmatpush1.xpose.msra.mxu0 0.0
    %1622 = vmatprep.subr.mxu0 0.0
    %1623 = vmatpush1.xpose.msra.mxu0 0.0
    %1624 = vmatprep.subr.mxu0 0.0
    %1625 = vmatpush1.xpose.msra.mxu0 0.0
    %1626 = vmatprep.subr.mxu0 0.0
    %1627 = vmatpush1.xpose.msra.mxu0 0.0
    %1628 = vmatprep.subr.mxu0 0.0
    %1629 = vmatpush1.xpose.msra.mxu0 0.0
    %1630 = vmatprep.subr.mxu0 0.0
    %1631 = vmatpush1.xpose.msra.mxu0 0.0
    %1632 = vmatprep.subr.mxu0 0.0
    %1633 = vmatpush1.xpose.msra.mxu0 0.0
    %1634 = vmatprep.subr.mxu0 0.0
    %1635 = vmatpush1.xpose.msra.mxu0 0.0
    %1636 = vmatprep.subr.mxu0 0.0
    %1637 = vmatpush1.xpose.msra.mxu0 0.0
    %1638 = vmatprep.subr.mxu0 0.0
    %1639 = vmatpush1.xpose.msra.mxu0 0.0
    %1640 = vmatprep.subr.mxu0 0.0
    %1641 = vmatpush1.xpose.msra.mxu0 0.0
    %1642 = vmatprep.subr.mxu0 0.0
    %1643 = vmatpush1.xpose.msra.mxu0 0.0
    %1644 = vmatprep.subr.mxu0 0.0
    %1645 = vmatpush1.xpose.msra.mxu0 0.0
    %1646 = vmatprep.subr.mxu0 0.0
    %1647 = vmatpush1.xpose.msra.mxu0 0.0
    %1648 = vmatprep.subr.mxu0 0.0
    %1649 = vmatpush1.xpose.msra.mxu0 0.0
    %1650 = vmatprep.subr.mxu0 0.0
    %1651 = vmatpush1.xpose.msra.mxu0 0.0
    %1652 = vmatprep.subr.mxu0 0.0
    %1653 = vmatpush1.xpose.msra.mxu0 0.0
    %1654 = vmatprep.subr.mxu0 0.0
    %1655 = vmatpush1.xpose.msra.mxu0 0.0
    %1656 = vmatprep.subr.mxu0 0.0
    %1657 = vmatpush1.xpose.msra.mxu0 0.0
    %1658 = vmatprep.subr.mxu0 0.0
    %1659 = vmatpush1.xpose.msra.mxu0 0.0
    %1660 = vmatprep.subr.mxu0 0.0
    %1661 = vmatpush1.xpose.msra.mxu0 0.0
    %1662 = vmatprep.subr.mxu0 0.0
    %1663 = vmatpush1.xpose.msra.mxu0 0.0
    %1664 = vmatprep.subr.mxu0 0.0
    %1665 = vmatpush1.xpose.msra.mxu0 0.0
    %1666 = vmatprep.subr.mxu0 0.0
    %1667 = vmatpush1.xpose.msra.mxu0 0.0
    %1668 = vmatprep.subr.mxu0 0.0
    %1669 = vmatpush1.xpose.msra.mxu0 0.0
    %1670 = vmatprep.subr.mxu0 0.0
    %1671 = vmatpush1.xpose.msra.mxu0 0.0
    %1672 = vmatprep.mubr.f32.mxu0 0.0
    %v1673 = vand.u32 %v1598, 4294901760
    %v1674 = vsub.f32 %v1598, %v1673
    %v1675 = vand.u32 %v1674, 4294901760
    %v1676 = vsub.f32 %v1674, %v1675
    %v1677 = vand.u32 %v1676, 4294901760
    %1678 = vmatmul.mubr.f32.gmra.mrb[0].mxu0 %v1677
    %v1679 = vpop.f32.mrb[0].mxu0
    %v1680 = vadd.f32 0.0, %v1679
    %v1681 = vpop.f32.mrb[0].mxu0
    %1682 = vmatprep.mubr.f32.mxu0 0.0
    %v1683 = vand.u32 %v1600, 4294901760
    %v1684 = vsub.f32 %v1600, %v1683
    %v1685 = vand.u32 %v1684, 4294901760
    %v1686 = vsub.f32 %v1684, %v1685
    %v1687 = vand.u32 %v1686, 4294901760
    %1688 = vmatmul.mubr.f32.gmra.mrb[0].mxu0 %v1687
    %v1689 = vpop.f32.mrb[0].mxu0
    %v1690 = vadd.f32 0.0, %v1689
    %v1691 = vpop.f32.mrb[0].mxu0
    %1692 = vdwg.mxu0
    %1693 = vmatprep.subr.mxu0 0.0
    %v1694 = vand.u32 %v1602, 4294901760
    %v1695 = vsub.f32 %v1602, %v1694
    %v1696 = vand.u32 %v1695, 4294901760
    %v1697 = vsub.f32 %v1695, %v1696
    %v1698 = vand.u32 %v1697, 4294901760
    %1699 = vmatpush1.xpose.msra.mxu0 %v1698
    %1700 = vmatprep.subr.mxu0 0.0
    %v1701 = vand.u32 %v1604, 4294901760
    %v1702 = vsub.f32 %v1604, %v1701
    %v1703 = vand.u32 %v1702, 4294901760
    %v1704 = vsub.f32 %v1702, %v1703
    %v1705 = vand.u32 %v1704, 4294901760
    %1706 = vmatpush1.xpose.msra.mxu0 %v1705
    %1707 = vmatprep.subr.mxu0 0.0
    %1708 = vmatpush1.xpose.msra.mxu0 0.0
    %1709 = vmatprep.subr.mxu0 0.0
    %1710 = vmatpush1.xpose.msra.mxu0 0.0
    %1711 = vmatprep.subr.mxu0 0.0
    %1712 = vmatpush1.xpose.msra.mxu0 0.0
    %1713 = vmatprep.subr.mxu0 0.0
    %1714 = vmatpush1.xpose.msra.mxu0 0.0
    %1715 = vmatprep.subr.mxu0 0.0
    %1716 = vmatpush1.xpose.msra.mxu0 0.0
    %1717 = vmatprep.subr.mxu0 0.0
    %1718 = vmatpush1.xpose.msra.mxu0 0.0
    %1719 = vmatprep.subr.mxu0 0.0
    %1720 = vmatpush1.xpose.msra.mxu0 0.0
    %1721 = vmatprep.subr.mxu0 0.0
    %1722 = vmatpush1.xpose.msra.mxu0 0.0
    %1723 = vmatprep.subr.mxu0 0.0
    %1724 = vmatpush1.xpose.msra.mxu0 0.0
    %1725 = vmatprep.subr.mxu0 0.0
    %1726 = vmatpush1.xpose.msra.mxu0 0.0
    %1727 = vmatprep.subr.mxu0 0.0
    %1728 = vmatpush1.xpose.msra.mxu0 0.0
    %1729 = vmatprep.subr.mxu0 0.0
    %1730 = vmatpush1.xpose.msra.mxu0 0.0
    %1731 = vmatprep.subr.mxu0 0.0
    %1732 = vmatpush1.xpose.msra.mxu0 0.0
    %1733 = vmatprep.subr.mxu0 0.0
    %1734 = vmatpush1.xpose.msra.mxu0 0.0
    %1735 = vmatprep.subr.mxu0 0.0
    %1736 = vmatpush1.xpose.msra.mxu0 0.0
    %1737 = vmatprep.subr.mxu0 0.0
    %1738 = vmatpush1.xpose.msra.mxu0 0.0
    %1739 = vmatprep.subr.mxu0 0.0
    %1740 = vmatpush1.xpose.msra.mxu0 0.0
    %1741 = vmatprep.subr.mxu0 0.0
    %1742 = vmatpush1.xpose.msra.mxu0 0.0
    %1743 = vmatprep.subr.mxu0 0.0
    %1744 = vmatpush1.xpose.msra.mxu0 0.0
    %1745 = vmatprep.subr.mxu0 0.0
    %1746 = vmatpush1.xpose.msra.mxu0 0.0
    %1747 = vmatprep.subr.mxu0 0.0
    %1748 = vmatpush1.xpose.msra.mxu0 0.0
    %1749 = vmatprep.subr.mxu0 0.0
    %1750 = vmatpush1.xpose.msra.mxu0 0.0
    %1751 = vmatprep.subr.mxu0 0.0
    %1752 = vmatpush1.xpose.msra.mxu0 0.0
    %1753 = vmatprep.subr.mxu0 0.0
    %1754 = vmatpush1.xpose.msra.mxu0 0.0
    %1755 = vmatprep.subr.mxu0 0.0
    %1756 = vmatpush1.xpose.msra.mxu0 0.0
    %1757 = vmatprep.subr.mxu0 0.0
    %1758 = vmatpush1.xpose.msra.mxu0 0.0
    %1759 = vmatprep.subr.mxu0 0.0
    %1760 = vmatpush1.xpose.msra.mxu0 0.0
    %1761 = vmatprep.subr.mxu0 0.0
    %1762 = vmatpush1.xpose.msra.mxu0 0.0
    %1763 = vmatprep.subr.mxu0 0.0
    %1764 = vmatpush1.xpose.msra.mxu0 0.0
    %1765 = vmatprep.subr.mxu0 0.0
    %1766 = vmatpush1.xpose.msra.mxu0 0.0
    %1767 = vmatprep.mubr.f32.mxu0 0.0
    %v1768 = vand.u32 %v1598, 4294901760
    %1769 = vmatmul.mubr.f32.gmra.mrb[0].mxu0 %v1768
    %v1770 = vpop.f32.mrb[0].mxu0
    %v1771 = vadd.f32 %v1680, %v1770
    %v1772 = vpop.f32.mrb[0].mxu0
    %1773 = vmatprep.mubr.f32.mxu0 0.0
    %v1774 = vand.u32 %v1600, 4294901760
    %1775 = vmatmul.mubr.f32.gmra.mrb[0].mxu0 %v1774
    %v1776 = vpop.f32.mrb[0].mxu0
    %v1777 = vadd.f32 %v1690, %v1776
    %v1778 = vpop.f32.mrb[0].mxu0
    %1779 = vdwg.mxu0
    %1780 = vmatprep.subr.mxu0 0.0
    %v1781 = vand.u32 %v1602, 4294901760
    %v1782 = vsub.f32 %v1602, %v1781
    %1783 = vmatpush1.xpose.msra.mxu0 %v1782
    %1784 = vmatprep.subr.mxu0 0.0
    %v1785 = vand.u32 %v1604, 4294901760
    %v1786 = vsub.f32 %v1604, %v1785
    %1787 = vmatpush1.xpose.msra.mxu0 %v1786
    %1788 = vmatprep.subr.mxu0 0.0
    %1789 = vmatpush1.xpose.msra.mxu0 0.0
    %1790 = vmatprep.subr.mxu0 0.0
    %1791 = vmatpush1.xpose.msra.mxu0 0.0
    %1792 = vmatprep.subr.mxu0 0.0
    %1793 = vmatpush1.xpose.msra.mxu0 0.0
    %1794 = vmatprep.subr.mxu0 0.0
    %1795 = vmatpush1.xpose.msra.mxu0 0.0
    %1796 = vmatprep.subr.mxu0 0.0
    %1797 = vmatpush1.xpose.msra.mxu0 0.0
    %1798 = vmatprep.subr.mxu0 0.0
    %1799 = vmatpush1.xpose.msra.mxu0 0.0
    %1800 = vmatprep.subr.mxu0 0.0
    %1801 = vmatpush1.xpose.msra.mxu0 0.0
    %1802 = vmatprep.subr.mxu0 0.0
    %1803 = vmatpush1.xpose.msra.mxu0 0.0
    %1804 = vmatprep.subr.mxu0 0.0
    %1805 = vmatpush1.xpose.msra.mxu0 0.0
    %1806 = vmatprep.subr.mxu0 0.0
    %1807 = vmatpush1.xpose.msra.mxu0 0.0
    %1808 = vmatprep.subr.mxu0 0.0
    %1809 = vmatpush1.xpose.msra.mxu0 0.0
    %1810 = vmatprep.subr.mxu0 0.0
    %1811 = vmatpush1.xpose.msra.mxu0 0.0
    %1812 = vmatprep.subr.mxu0 0.0
    %1813 = vmatpush1.xpose.msra.mxu0 0.0
    %1814 = vmatprep.subr.mxu0 0.0
    %1815 = vmatpush1.xpose.msra.mxu0 0.0
    %1816 = vmatprep.subr.mxu0 0.0
    %1817 = vmatpush1.xpose.msra.mxu0 0.0
    %1818 = vmatprep.subr.mxu0 0.0
    %1819 = vmatpush1.xpose.msra.mxu0 0.0
    %1820 = vmatprep.subr.mxu0 0.0
    %1821 = vmatpush1.xpose.msra.mxu0 0.0
    %1822 = vmatprep.subr.mxu0 0.0
    %1823 = vmatpush1.xpose.msra.mxu0 0.0
    %1824 = vmatprep.subr.mxu0 0.0
    %1825 = vmatpush1.xpose.msra.mxu0 0.0
    %1826 = vmatprep.subr.mxu0 0.0
    %1827 = vmatpush1.xpose.msra.mxu0 0.0
    %1828 = vmatprep.subr.mxu0 0.0
    %1829 = vmatpush1.xpose.msra.mxu0 0.0
    %1830 = vmatprep.subr.mxu0 0.0
    %1831 = vmatpush1.xpose.msra.mxu0 0.0
    %1832 = vmatprep.subr.mxu0 0.0
    %1833 = vmatpush1.xpose.msra.mxu0 0.0
    %1834 = vmatprep.subr.mxu0 0.0
    %1835 = vmatpush1.xpose.msra.mxu0 0.0
    %1836 = vmatprep.subr.mxu0 0.0
    %1837 = vmatpush1.xpose.msra.mxu0 0.0
    %1838 = vmatprep.subr.mxu0 0.0
    %1839 = vmatpush1.xpose.msra.mxu0 0.0
    %1840 = vmatprep.subr.mxu0 0.0
    %1841 = vmatpush1.xpose.msra.mxu0 0.0
    %1842 = vmatprep.subr.mxu0 0.0
    %1843 = vmatpush1.xpose.msra.mxu0 0.0
    %1844 = vmatprep.subr.mxu0 0.0
    %1845 = vmatpush1.xpose.msra.mxu0 0.0
    %1846 = vmatprep.subr.mxu0 0.0
    %1847 = vmatpush1.xpose.msra.mxu0 0.0
    %1848 = vmatprep.mubr.f32.mxu0 0.0
    %v1849 = vand.u32 %v1598, 4294901760
    %v1850 = vsub.f32 %v1598, %v1849
    %1851 = vmatmul.mubr.f32.gmra.mrb[0].mxu0 %v1850
    %v1852 = vpop.f32.mrb[0].mxu0
    %v1853 = vadd.f32 %v1771, %v1852
    %v1854 = vpop.f32.mrb[0].mxu0
    %1855 = vmatprep.mubr.f32.mxu0 0.0
    %v1856 = vand.u32 %v1600, 4294901760
    %v1857 = vsub.f32 %v1600, %v1856
    %1858 = vmatmul.mubr.f32.gmra.mrb[0].mxu0 %v1857
    %v1859 = vpop.f32.mrb[0].mxu0
    %v1860 = vadd.f32 %v1777, %v1859
    %v1861 = vpop.f32.mrb[0].mxu0
    %1862 = vdwg.mxu0
    %1863 = vmatprep.subr.mxu0 0.0
    %v1864 = vand.u32 %v1602, 4294901760
    %1865 = vmatpush1.xpose.msra.mxu0 %v1864
    %1866 = vmatprep.subr.mxu0 0.0
    %v1867 = vand.u32 %v1604, 4294901760
    %1868 = vmatpush1.xpose.msra.mxu0 %v1867
    %1869 = vmatprep.subr.mxu0 0.0
    %1870 = vmatpush1.xpose.msra.mxu0 0.0
    %1871 = vmatprep.subr.mxu0 0.0
    %1872 = vmatpush1.xpose.msra.mxu0 0.0
    %1873 = vmatprep.subr.mxu0 0.0
    %1874 = vmatpush1.xpose.msra.mxu0 0.0
    %1875 = vmatprep.subr.mxu0 0.0
    %1876 = vmatpush1.xpose.msra.mxu0 0.0
    %1877 = vmatprep.subr.mxu0 0.0
    %1878 = vmatpush1.xpose.msra.mxu0 0.0
    %1879 = vmatprep.subr.mxu0 0.0
    %1880 = vmatpush1.xpose.msra.mxu0 0.0
    %1881 = vmatprep.subr.mxu0 0.0
    %1882 = vmatpush1.xpose.msra.mxu0 0.0
    %1883 = vmatprep.subr.mxu0 0.0
    %1884 = vmatpush1.xpose.msra.mxu0 0.0
    %1885 = vmatprep.subr.mxu0 0.0
    %1886 = vmatpush1.xpose.msra.mxu0 0.0
    %1887 = vmatprep.subr.mxu0 0.0
    %1888 = vmatpush1.xpose.msra.mxu0 0.0
    %1889 = vmatprep.subr.mxu0 0.0
    %1890 = vmatpush1.xpose.msra.mxu0 0.0
    %1891 = vmatprep.subr.mxu0 0.0
    %1892 = vmatpush1.xpose.msra.mxu0 0.0
    %1893 = vmatprep.subr.mxu0 0.0
    %1894 = vmatpush1.xpose.msra.mxu0 0.0
    %1895 = vmatprep.subr.mxu0 0.0
    %1896 = vmatpush1.xpose.msra.mxu0 0.0
    %1897 = vmatprep.subr.mxu0 0.0
    %1898 = vmatpush1.xpose.msra.mxu0 0.0
    %1899 = vmatprep.subr.mxu0 0.0
    %1900 = vmatpush1.xpose.msra.mxu0 0.0
    %1901 = vmatprep.subr.mxu0 0.0
    %1902 = vmatpush1.xpose.msra.mxu0 0.0
    %1903 = vmatprep.subr.mxu0 0.0
    %1904 = vmatpush1.xpose.msra.mxu0 0.0
    %1905 = vmatprep.subr.mxu0 0.0
    %1906 = vmatpush1.xpose.msra.mxu0 0.0
    %1907 = vmatprep.subr.mxu0 0.0
    %1908 = vmatpush1.xpose.msra.mxu0 0.0
    %1909 = vmatprep.subr.mxu0 0.0
    %1910 = vmatpush1.xpose.msra.mxu0 0.0
    %1911 = vmatprep.subr.mxu0 0.0
    %1912 = vmatpush1.xpose.msra.mxu0 0.0
    %1913 = vmatprep.subr.mxu0 0.0
    %1914 = vmatpush1.xpose.msra.mxu0 0.0
    %1915 = vmatprep.subr.mxu0 0.0
    %1916 = vmatpush1.xpose.msra.mxu0 0.0
    %1917 = vmatprep.subr.mxu0 0.0
    %1918 = vmatpush1.xpose.msra.mxu0 0.0
    %1919 = vmatprep.subr.mxu0 0.0
    %1920 = vmatpush1.xpose.msra.mxu0 0.0
    %1921 = vmatprep.subr.mxu0 0.0
    %1922 = vmatpush1.xpose.msra.mxu0 0.0
    %1923 = vmatprep.subr.mxu0 0.0
    %1924 = vmatpush1.xpose.msra.mxu0 0.0
    %1925 = vmatprep.subr.mxu0 0.0
    %1926 = vmatpush1.xpose.msra.mxu0 0.0
    %1927 = vmatprep.subr.mxu0 0.0
    %1928 = vmatpush1.xpose.msra.mxu0 0.0
    %1929 = vmatprep.mubr.f32.mxu0 0.0
    %v1930 = vand.u32 %v1598, 4294901760
    %v1931 = vsub.f32 %v1598, %v1930
    %v1932 = vand.u32 %v1931, 4294901760
    %1933 = vmatmul.mubr.f32.gmra.mrb[0].mxu0 %v1932
    %v1934 = vpop.f32.mrb[0].mxu0
    %v1935 = vadd.f32 %v1853, %v1934
    %v1936 = vpop.f32.mrb[0].mxu0
    %1937 = vmatprep.mubr.f32.mxu0 0.0
    %v1938 = vand.u32 %v1600, 4294901760
    %v1939 = vsub.f32 %v1600, %v1938
    %v1940 = vand.u32 %v1939, 4294901760
    %1941 = vmatmul.mubr.f32.gmra.mrb[0].mxu0 %v1940
    %v1942 = vpop.f32.mrb[0].mxu0
    %v1943 = vadd.f32 %v1860, %v1942
    %v1944 = vpop.f32.mrb[0].mxu0
    %1945 = vdwg.mxu0
    %1946 = vmatprep.subr.mxu0 0.0
    %v1947 = vand.u32 %v1602, 4294901760
    %v1948 = vsub.f32 %v1602, %v1947
    %v1949 = vand.u32 %v1948, 4294901760
    %1950 = vmatpush1.xpose.msra.mxu0 %v1949
    %1951 = vmatprep.subr.mxu0 0.0
    %v1952 = vand.u32 %v1604, 4294901760
    %v1953 = vsub.f32 %v1604, %v1952
    %v1954 = vand.u32 %v1953, 4294901760
    %1955 = vmatpush1.xpose.msra.mxu0 %v1954
    %1956 = vmatprep.subr.mxu0 0.0
    %1957 = vmatpush1.xpose.msra.mxu0 0.0
    %1958 = vmatprep.subr.mxu0 0.0
    %1959 = vmatpush1.xpose.msra.mxu0 0.0
    %1960 = vmatprep.subr.mxu0 0.0
    %1961 = vmatpush1.xpose.msra.mxu0 0.0
    %1962 = vmatprep.subr.mxu0 0.0
    %1963 = vmatpush1.xpose.msra.mxu0 0.0
    %1964 = vmatprep.subr.mxu0 0.0
    %1965 = vmatpush1.xpose.msra.mxu0 0.0
    %1966 = vmatprep.subr.mxu0 0.0
    %1967 = vmatpush1.xpose.msra.mxu0 0.0
    %1968 = vmatprep.subr.mxu0 0.0
    %1969 = vmatpush1.xpose.msra.mxu0 0.0
    %1970 = vmatprep.subr.mxu0 0.0
    %1971 = vmatpush1.xpose.msra.mxu0 0.0
    %1972 = vmatprep.subr.mxu0 0.0
    %1973 = vmatpush1.xpose.msra.mxu0 0.0
    %1974 = vmatprep.subr.mxu0 0.0
    %1975 = vmatpush1.xpose.msra.mxu0 0.0
    %1976 = vmatprep.subr.mxu0 0.0
    %1977 = vmatpush1.xpose.msra.mxu0 0.0
    %1978 = vmatprep.subr.mxu0 0.0
    %1979 = vmatpush1.xpose.msra.mxu0 0.0
    %1980 = vmatprep.subr.mxu0 0.0
    %1981 = vmatpush1.xpose.msra.mxu0 0.0
    %1982 = vmatprep.subr.mxu0 0.0
    %1983 = vmatpush1.xpose.msra.mxu0 0.0
    %1984 = vmatprep.subr.mxu0 0.0
    %1985 = vmatpush1.xpose.msra.mxu0 0.0
    %1986 = vmatprep.subr.mxu0 0.0
    %1987 = vmatpush1.xpose.msra.mxu0 0.0
    %1988 = vmatprep.subr.mxu0 0.0
    %1989 = vmatpush1.xpose.msra.mxu0 0.0
    %1990 = vmatprep.subr.mxu0 0.0
    %1991 = vmatpush1.xpose.msra.mxu0 0.0
    %1992 = vmatprep.subr.mxu0 0.0
    %1993 = vmatpush1.xpose.msra.mxu0 0.0
    %1994 = vmatprep.subr.mxu0 0.0
    %1995 = vmatpush1.xpose.msra.mxu0 0.0
    %1996 = vmatprep.subr.mxu0 0.0
    %1997 = vmatpush1.xpose.msra.mxu0 0.0
    %1998 = vmatprep.subr.mxu0 0.0
    %1999 = vmatpush1.xpose.msra.mxu0 0.0
    %2000 = vmatprep.subr.mxu0 0.0
    %2001 = vmatpush1.xpose.msra.mxu0 0.0
    %2002 = vmatprep.subr.mxu0 0.0
    %2003 = vmatpush1.xpose.msra.mxu0 0.0
    %2004 = vmatprep.subr.mxu0 0.0
    %2005 = vmatpush1.xpose.msra.mxu0 0.0
    %2006 = vmatprep.subr.mxu0 0.0
    %2007 = vmatpush1.xpose.msra.mxu0 0.0
    %2008 = vmatprep.subr.mxu0 0.0
    %2009 = vmatpush1.xpose.msra.mxu0 0.0
    %2010 = vmatprep.subr.mxu0 0.0
    %2011 = vmatpush1.xpose.msra.mxu0 0.0
    %2012 = vmatprep.subr.mxu0 0.0
    %2013 = vmatpush1.xpose.msra.mxu0 0.0
    %2014 = vmatprep.subr.mxu0 0.0
    %2015 = vmatpush1.xpose.msra.mxu0 0.0
    %2016 = vmatprep.mubr.f32.mxu0 0.0
    %v2017 = vand.u32 %v1598, 4294901760
    %2018 = vmatmul.mubr.f32.gmra.mrb[0].mxu0 %v2017
    %v2019 = vpop.f32.mrb[0].mxu0
    %v2020 = vadd.f32 %v1935, %v2019
    %v2021 = vpop.f32.mrb[0].mxu0
    %2022 = vmatprep.mubr.f32.mxu0 0.0
    %v2023 = vand.u32 %v1600, 4294901760
    %2024 = vmatmul.mubr.f32.gmra.mrb[0].mxu0 %v2023
    %v2025 = vpop.f32.mrb[0].mxu0
    %v2026 = vadd.f32 %v1943, %v2025
    %v2027 = vpop.f32.mrb[0].mxu0
    %2028 = vdwg.mxu0
    %2029 = vmatprep.subr.mxu0 0.0
    %v2030 = vand.u32 %v1602, 4294901760
    %2031 = vmatpush1.xpose.msra.mxu0 %v2030
    %2032 = vmatprep.subr.mxu0 0.0
    %v2033 = vand.u32 %v1604, 4294901760
    %2034 = vmatpush1.xpose.msra.mxu0 %v2033
    %2035 = vmatprep.subr.mxu0 0.0
    %2036 = vmatpush1.xpose.msra.mxu0 0.0
    %2037 = vmatprep.subr.mxu0 0.0
    %2038 = vmatpush1.xpose.msra.mxu0 0.0
    %2039 = vmatprep.subr.mxu0 0.0
    %2040 = vmatpush1.xpose.msra.mxu0 0.0
    %2041 = vmatprep.subr.mxu0 0.0
    %2042 = vmatpush1.xpose.msra.mxu0 0.0
    %2043 = vmatprep.subr.mxu0 0.0
    %2044 = vmatpush1.xpose.msra.mxu0 0.0
    %2045 = vmatprep.subr.mxu0 0.0
    %2046 = vmatpush1.xpose.msra.mxu0 0.0
    %2047 = vmatprep.subr.mxu0 0.0
    %2048 = vmatpush1.xpose.msra.mxu0 0.0
    %2049 = vmatprep.subr.mxu0 0.0
    %2050 = vmatpush1.xpose.msra.mxu0 0.0
    %2051 = vmatprep.subr.mxu0 0.0
    %2052 = vmatpush1.xpose.msra.mxu0 0.0
    %2053 = vmatprep.subr.mxu0 0.0
    %2054 = vmatpush1.xpose.msra.mxu0 0.0
    %2055 = vmatprep.subr.mxu0 0.0
    %2056 = vmatpush1.xpose.msra.mxu0 0.0
    %2057 = vmatprep.subr.mxu0 0.0
    %2058 = vmatpush1.xpose.msra.mxu0 0.0
    %2059 = vmatprep.subr.mxu0 0.0
    %2060 = vmatpush1.xpose.msra.mxu0 0.0
    %2061 = vmatprep.subr.mxu0 0.0
    %2062 = vmatpush1.xpose.msra.mxu0 0.0
    %2063 = vmatprep.subr.mxu0 0.0
    %2064 = vmatpush1.xpose.msra.mxu0 0.0
    %2065 = vmatprep.subr.mxu0 0.0
    %2066 = vmatpush1.xpose.msra.mxu0 0.0
    %2067 = vmatprep.subr.mxu0 0.0
    %2068 = vmatpush1.xpose.msra.mxu0 0.0
    %2069 = vmatprep.subr.mxu0 0.0
    %2070 = vmatpush1.xpose.msra.mxu0 0.0
    %2071 = vmatprep.subr.mxu0 0.0
    %2072 = vmatpush1.xpose.msra.mxu0 0.0
    %2073 = vmatprep.subr.mxu0 0.0
    %2074 = vmatpush1.xpose.msra.mxu0 0.0
    %2075 = vmatprep.subr.mxu0 0.0
    %2076 = vmatpush1.xpose.msra.mxu0 0.0
    %2077 = vmatprep.subr.mxu0 0.0
    %2078 = vmatpush1.xpose.msra.mxu0 0.0
    %2079 = vmatprep.subr.mxu0 0.0
    %2080 = vmatpush1.xpose.msra.mxu0 0.0
    %2081 = vmatprep.subr.mxu0 0.0
    %2082 = vmatpush1.xpose.msra.mxu0 0.0
    %2083 = vmatprep.subr.mxu0 0.0
    %2084 = vmatpush1.xpose.msra.mxu0 0.0
    %2085 = vmatprep.subr.mxu0 0.0
    %2086 = vmatpush1.xpose.msra.mxu0 0.0
    %2087 = vmatprep.subr.mxu0 0.0
    %2088 = vmatpush1.xpose.msra.mxu0 0.0
    %2089 = vmatprep.subr.mxu0 0.0
    %2090 = vmatpush1.xpose.msra.mxu0 0.0
    %2091 = vmatprep.subr.mxu0 0.0
    %2092 = vmatpush1.xpose.msra.mxu0 0.0
    %2093 = vmatprep.subr.mxu0 0.0
    %2094 = vmatpush1.xpose.msra.mxu0 0.0
    %2095 = vmatprep.mubr.f32.mxu0 0.0
    %v2096 = vand.u32 %v1598, 4294901760
    %2097 = vmatmul.mubr.f32.gmra.mrb[0].mxu0 %v2096
    %v2098 = vpop.f32.mrb[0].mxu0
    %v2099 = vadd.f32 %v2020, %v2098
    %v2100 = vpop.f32.mrb[0].mxu0
    %2101 = vmatprep.mubr.f32.mxu0 0.0
    %v2102 = vand.u32 %v1600, 4294901760
    %2103 = vmatmul.mubr.f32.gmra.mrb[0].mxu0 %v2102
    %v2104 = vpop.f32.mrb[0].mxu0
    %v2105 = vadd.f32 %v2026, %v2104
    %v2106 = vpop.f32.mrb[0].mxu0
    %2107 = vdwg.mxu0
    %2108 = vrot.lane.b32.xlu0 %v37, 64
    %v2109 = vpop.permute.xlu0 %2108
    %2110 = vrot.lane.b32.xlu0 %v38, 64
    %v2111 = vpop.permute.xlu0 %2110
    %2112 = vrot.lane.b32.xlu0 %v26, 64
    %v2113 = vpop.permute.xlu0 %2112
    %2114 = vrot.lane.b32.xlu0 %v27, 64
    %v2115 = vpop.permute.xlu0 %2114
    %v2116 = vsel %vm39, %v2109, 0
    %v2118 = vsel %vm39, %v2111, 0
    %v2120 = vsel %vm39, %v2113, 0
    %v2122 = vsel %vm39, %v2115, 0
    %2124 = vmatprep.subr.mxu0 0.0
    %v2125 = vand.u32 %v2120, 4294901760
    %2126 = vmatpush1.xpose.msra.mxu0 %v2125
    %2127 = vmatprep.subr.mxu0 0.0
    %v2128 = vand.u32 %v2122, 4294901760
    %2129 = vmatpush1.xpose.msra.mxu0 %v2128
    %2130 = vmatprep.subr.mxu0 0.0
    %2131 = vmatpush1.xpose.msra.mxu0 0.0
    %2132 = vmatprep.subr.mxu0 0.0
    %2133 = vmatpush1.xpose.msra.mxu0 0.0
    %2134 = vmatprep.subr.mxu0 0.0
    %2135 = vmatpush1.xpose.msra.mxu0 0.0
    %2136 = vmatprep.subr.mxu0 0.0
    %2137 = vmatpush1.xpose.msra.mxu0 0.0
    %2138 = vmatprep.subr.mxu0 0.0
    %2139 = vmatpush1.xpose.msra.mxu0 0.0
    %2140 = vmatprep.subr.mxu0 0.0
    %2141 = vmatpush1.xpose.msra.mxu0 0.0
    %2142 = vmatprep.subr.mxu0 0.0
    %2143 = vmatpush1.xpose.msra.mxu0 0.0
    %2144 = vmatprep.subr.mxu0 0.0
    %2145 = vmatpush1.xpose.msra.mxu0 0.0
    %2146 = vmatprep.subr.mxu0 0.0
    %2147 = vmatpush1.xpose.msra.mxu0 0.0
    %2148 = vmatprep.subr.mxu0 0.0
    %2149 = vmatpush1.xpose.msra.mxu0 0.0
    %2150 = vmatprep.subr.mxu0 0.0
    %2151 = vmatpush1.xpose.msra.mxu0 0.0
    %2152 = vmatprep.subr.mxu0 0.0
    %2153 = vmatpush1.xpose.msra.mxu0 0.0
    %2154 = vmatprep.subr.mxu0 0.0
    %2155 = vmatpush1.xpose.msra.mxu0 0.0
    %2156 = vmatprep.subr.mxu0 0.0
    %2157 = vmatpush1.xpose.msra.mxu0 0.0
    %2158 = vmatprep.subr.mxu0 0.0
    %2159 = vmatpush1.xpose.msra.mxu0 0.0
    %2160 = vmatprep.subr.mxu0 0.0
    %2161 = vmatpush1.xpose.msra.mxu0 0.0
    %2162 = vmatprep.subr.mxu0 0.0
    %2163 = vmatpush1.xpose.msra.mxu0 0.0
    %2164 = vmatprep.subr.mxu0 0.0
    %2165 = vmatpush1.xpose.msra.mxu0 0.0
    %2166 = vmatprep.subr.mxu0 0.0
    %2167 = vmatpush1.xpose.msra.mxu0 0.0
    %2168 = vmatprep.subr.mxu0 0.0
    %2169 = vmatpush1.xpose.msra.mxu0 0.0
    %2170 = vmatprep.subr.mxu0 0.0
    %2171 = vmatpush1.xpose.msra.mxu0 0.0
    %2172 = vmatprep.subr.mxu0 0.0
    %2173 = vmatpush1.xpose.msra.mxu0 0.0
    %2174 = vmatprep.subr.mxu0 0.0
    %2175 = vmatpush1.xpose.msra.mxu0 0.0
    %2176 = vmatprep.subr.mxu0 0.0
    %2177 = vmatpush1.xpose.msra.mxu0 0.0
    %2178 = vmatprep.subr.mxu0 0.0
    %2179 = vmatpush1.xpose.msra.mxu0 0.0
    %2180 = vmatprep.subr.mxu0 0.0
    %2181 = vmatpush1.xpose.msra.mxu0 0.0
    %2182 = vmatprep.subr.mxu0 0.0
    %2183 = vmatpush1.xpose.msra.mxu0 0.0
    %2184 = vmatprep.subr.mxu0 0.0
    %2185 = vmatpush1.xpose.msra.mxu0 0.0
    %2186 = vmatprep.subr.mxu0 0.0
    %2187 = vmatpush1.xpose.msra.mxu0 0.0
    %2188 = vmatprep.subr.mxu0 0.0
    %2189 = vmatpush1.xpose.msra.mxu0 0.0
    %2190 = vmatprep.mubr.f32.mxu0 0.0
    %v2191 = vand.u32 %v2116, 4294901760
    %v2192 = vsub.f32 %v2116, %v2191
    %v2193 = vand.u32 %v2192, 4294901760
    %v2194 = vsub.f32 %v2192, %v2193
    %v2195 = vand.u32 %v2194, 4294901760
    %2196 = vmatmul.mubr.f32.gmra.mrb[0].mxu0 %v2195
    %v2197 = vpop.f32.mrb[0].mxu0
    %v2198 = vadd.f32 0.0, %v2197
    %v2199 = vpop.f32.mrb[0].mxu0
    %2200 = vmatprep.mubr.f32.mxu0 0.0
    %v2201 = vand.u32 %v2118, 4294901760
    %v2202 = vsub.f32 %v2118, %v2201
    %v2203 = vand.u32 %v2202, 4294901760
    %v2204 = vsub.f32 %v2202, %v2203
    %v2205 = vand.u32 %v2204, 4294901760
    %2206 = vmatmul.mubr.f32.gmra.mrb[0].mxu0 %v2205
    %v2207 = vpop.f32.mrb[0].mxu0
    %v2208 = vadd.f32 0.0, %v2207
    %v2209 = vpop.f32.mrb[0].mxu0
    %2210 = vdwg.mxu0
    %2211 = vmatprep.subr.mxu0 0.0
    %v2212 = vand.u32 %v2120, 4294901760
    %v2213 = vsub.f32 %v2120, %v2212
    %v2214 = vand.u32 %v2213, 4294901760
    %v2215 = vsub.f32 %v2213, %v2214
    %v2216 = vand.u32 %v2215, 4294901760
    %2217 = vmatpush1.xpose.msra.mxu0 %v2216
    %2218 = vmatprep.subr.mxu0 0.0
    %v2219 = vand.u32 %v2122, 4294901760
    %v2220 = vsub.f32 %v2122, %v2219
    %v2221 = vand.u32 %v2220, 4294901760
    %v2222 = vsub.f32 %v2220, %v2221
    %v2223 = vand.u32 %v2222, 4294901760
    %2224 = vmatpush1.xpose.msra.mxu0 %v2223
    %2225 = vmatprep.subr.mxu0 0.0
    %2226 = vmatpush1.xpose.msra.mxu0 0.0
    %2227 = vmatprep.subr.mxu0 0.0
    %2228 = vmatpush1.xpose.msra.mxu0 0.0
    %2229 = vmatprep.subr.mxu0 0.0
    %2230 = vmatpush1.xpose.msra.mxu0 0.0
    %2231 = vmatprep.subr.mxu0 0.0
    %2232 = vmatpush1.xpose.msra.mxu0 0.0
    %2233 = vmatprep.subr.mxu0 0.0
    %2234 = vmatpush1.xpose.msra.mxu0 0.0
    %2235 = vmatprep.subr.mxu0 0.0
    %2236 = vmatpush1.xpose.msra.mxu0 0.0
    %2237 = vmatprep.subr.mxu0 0.0
    %2238 = vmatpush1.xpose.msra.mxu0 0.0
    %2239 = vmatprep.subr.mxu0 0.0
    %2240 = vmatpush1.xpose.msra.mxu0 0.0
    %2241 = vmatprep.subr.mxu0 0.0
    %2242 = vmatpush1.xpose.msra.mxu0 0.0
    %2243 = vmatprep.subr.mxu0 0.0
    %2244 = vmatpush1.xpose.msra.mxu0 0.0
    %2245 = vmatprep.subr.mxu0 0.0
    %2246 = vmatpush1.xpose.msra.mxu0 0.0
    %2247 = vmatprep.subr.mxu0 0.0
    %2248 = vmatpush1.xpose.msra.mxu0 0.0
    %2249 = vmatprep.subr.mxu0 0.0
    %2250 = vmatpush1.xpose.msra.mxu0 0.0
    %2251 = vmatprep.subr.mxu0 0.0
    %2252 = vmatpush1.xpose.msra.mxu0 0.0
    %2253 = vmatprep.subr.mxu0 0.0
    %2254 = vmatpush1.xpose.msra.mxu0 0.0
    %2255 = vmatprep.subr.mxu0 0.0
    %2256 = vmatpush1.xpose.msra.mxu0 0.0
    %2257 = vmatprep.subr.mxu0 0.0
    %2258 = vmatpush1.xpose.msra.mxu0 0.0
    %2259 = vmatprep.subr.mxu0 0.0
    %2260 = vmatpush1.xpose.msra.mxu0 0.0
    %2261 = vmatprep.subr.mxu0 0.0
    %2262 = vmatpush1.xpose.msra.mxu0 0.0
    %2263 = vmatprep.subr.mxu0 0.0
    %2264 = vmatpush1.xpose.msra.mxu0 0.0
    %2265 = vmatprep.subr.mxu0 0.0
    %2266 = vmatpush1.xpose.msra.mxu0 0.0
    %2267 = vmatprep.subr.mxu0 0.0
    %2268 = vmatpush1.xpose.msra.mxu0 0.0
    %2269 = vmatprep.subr.mxu0 0.0
    %2270 = vmatpush1.xpose.msra.mxu0 0.0
    %2271 = vmatprep.subr.mxu0 0.0
    %2272 = vmatpush1.xpose.msra.mxu0 0.0
    %2273 = vmatprep.subr.mxu0 0.0
    %2274 = vmatpush1.xpose.msra.mxu0 0.0
    %2275 = vmatprep.subr.mxu0 0.0
    %2276 = vmatpush1.xpose.msra.mxu0 0.0
    %2277 = vmatprep.subr.mxu0 0.0
    %2278 = vmatpush1.xpose.msra.mxu0 0.0
    %2279 = vmatprep.subr.mxu0 0.0
    %2280 = vmatpush1.xpose.msra.mxu0 0.0
    %2281 = vmatprep.subr.mxu0 0.0
    %2282 = vmatpush1.xpose.msra.mxu0 0.0
    %2283 = vmatprep.subr.mxu0 0.0
    %2284 = vmatpush1.xpose.msra.mxu0 0.0
    %2285 = vmatprep.mubr.f32.mxu0 0.0
    %v2286 = vand.u32 %v2116, 4294901760
    %2287 = vmatmul.mubr.f32.gmra.mrb[0].mxu0 %v2286
    %v2288 = vpop.f32.mrb[0].mxu0
    %v2289 = vadd.f32 %v2198, %v2288
    %v2290 = vpop.f32.mrb[0].mxu0
    %2291 = vmatprep.mubr.f32.mxu0 0.0
    %v2292 = vand.u32 %v2118, 4294901760
    %2293 = vmatmul.mubr.f32.gmra.mrb[0].mxu0 %v2292
    %v2294 = vpop.f32.mrb[0].mxu0
    %v2295 = vadd.f32 %v2208, %v2294
    %v2296 = vpop.f32.mrb[0].mxu0
    %2297 = vdwg.mxu0
    %2298 = vmatprep.subr.mxu0 0.0
    %v2299 = vand.u32 %v2120, 4294901760
    %v2300 = vsub.f32 %v2120, %v2299
    %2301 = vmatpush1.xpose.msra.mxu0 %v2300
    %2302 = vmatprep.subr.mxu0 0.0
    %v2303 = vand.u32 %v2122, 4294901760
    %v2304 = vsub.f32 %v2122, %v2303
    %2305 = vmatpush1.xpose.msra.mxu0 %v2304
    %2306 = vmatprep.subr.mxu0 0.0
    %2307 = vmatpush1.xpose.msra.mxu0 0.0
    %2308 = vmatprep.subr.mxu0 0.0
    %2309 = vmatpush1.xpose.msra.mxu0 0.0
    %2310 = vmatprep.subr.mxu0 0.0
    %2311 = vmatpush1.xpose.msra.mxu0 0.0
    %2312 = vmatprep.subr.mxu0 0.0
    %2313 = vmatpush1.xpose.msra.mxu0 0.0
    %2314 = vmatprep.subr.mxu0 0.0
    %2315 = vmatpush1.xpose.msra.mxu0 0.0
    %2316 = vmatprep.subr.mxu0 0.0
    %2317 = vmatpush1.xpose.msra.mxu0 0.0
    %2318 = vmatprep.subr.mxu0 0.0
    %2319 = vmatpush1.xpose.msra.mxu0 0.0
    %2320 = vmatprep.subr.mxu0 0.0
    %2321 = vmatpush1.xpose.msra.mxu0 0.0
    %2322 = vmatprep.subr.mxu0 0.0
    %2323 = vmatpush1.xpose.msra.mxu0 0.0
    %2324 = vmatprep.subr.mxu0 0.0
    %2325 = vmatpush1.xpose.msra.mxu0 0.0
    %2326 = vmatprep.subr.mxu0 0.0
    %2327 = vmatpush1.xpose.msra.mxu0 0.0
    %2328 = vmatprep.subr.mxu0 0.0
    %2329 = vmatpush1.xpose.msra.mxu0 0.0
    %2330 = vmatprep.subr.mxu0 0.0
    %2331 = vmatpush1.xpose.msra.mxu0 0.0
    %2332 = vmatprep.subr.mxu0 0.0
    %2333 = vmatpush1.xpose.msra.mxu0 0.0
    %2334 = vmatprep.subr.mxu0 0.0
    %2335 = vmatpush1.xpose.msra.mxu0 0.0
    %2336 = vmatprep.subr.mxu0 0.0
    %2337 = vmatpush1.xpose.msra.mxu0 0.0
    %2338 = vmatprep.subr.mxu0 0.0
    %2339 = vmatpush1.xpose.msra.mxu0 0.0
    %2340 = vmatprep.subr.mxu0 0.0
    %2341 = vmatpush1.xpose.msra.mxu0 0.0
    %2342 = vmatprep.subr.mxu0 0.0
    %2343 = vmatpush1.xpose.msra.mxu0 0.0
    %2344 = vmatprep.subr.mxu0 0.0
    %2345 = vmatpush1.xpose.msra.mxu0 0.0
    %2346 = vmatprep.subr.mxu0 0.0
    %2347 = vmatpush1.xpose.msra.mxu0 0.0
    %2348 = vmatprep.subr.mxu0 0.0
    %2349 = vmatpush1.xpose.msra.mxu0 0.0
    %2350 = vmatprep.subr.mxu0 0.0
    %2351 = vmatpush1.xpose.msra.mxu0 0.0
    %2352 = vmatprep.subr.mxu0 0.0
    %2353 = vmatpush1.xpose.msra.mxu0 0.0
    %2354 = vmatprep.subr.mxu0 0.0
    %2355 = vmatpush1.xpose.msra.mxu0 0.0
    %2356 = vmatprep.subr.mxu0 0.0
    %2357 = vmatpush1.xpose.msra.mxu0 0.0
    %2358 = vmatprep.subr.mxu0 0.0
    %2359 = vmatpush1.xpose.msra.mxu0 0.0
    %2360 = vmatprep.subr.mxu0 0.0
    %2361 = vmatpush1.xpose.msra.mxu0 0.0
    %2362 = vmatprep.subr.mxu0 0.0
    %2363 = vmatpush1.xpose.msra.mxu0 0.0
    %2364 = vmatprep.subr.mxu0 0.0
    %2365 = vmatpush1.xpose.msra.mxu0 0.0
    %2366 = vmatprep.mubr.f32.mxu0 0.0
    %v2367 = vand.u32 %v2116, 4294901760
    %v2368 = vsub.f32 %v2116, %v2367
    %2369 = vmatmul.mubr.f32.gmra.mrb[0].mxu0 %v2368
    %v2370 = vpop.f32.mrb[0].mxu0
    %v2371 = vadd.f32 %v2289, %v2370
    %v2372 = vpop.f32.mrb[0].mxu0
    %2373 = vmatprep.mubr.f32.mxu0 0.0
    %v2374 = vand.u32 %v2118, 4294901760
    %v2375 = vsub.f32 %v2118, %v2374
    %2376 = vmatmul.mubr.f32.gmra.mrb[0].mxu0 %v2375
    %v2377 = vpop.f32.mrb[0].mxu0
    %v2378 = vadd.f32 %v2295, %v2377
    %v2379 = vpop.f32.mrb[0].mxu0
    %2380 = vdwg.mxu0
    %2381 = vmatprep.subr.mxu0 0.0
    %v2382 = vand.u32 %v2120, 4294901760
    %2383 = vmatpush1.xpose.msra.mxu0 %v2382
    %2384 = vmatprep.subr.mxu0 0.0
    %v2385 = vand.u32 %v2122, 4294901760
    %2386 = vmatpush1.xpose.msra.mxu0 %v2385
    %2387 = vmatprep.subr.mxu0 0.0
    %2388 = vmatpush1.xpose.msra.mxu0 0.0
    %2389 = vmatprep.subr.mxu0 0.0
    %2390 = vmatpush1.xpose.msra.mxu0 0.0
    %2391 = vmatprep.subr.mxu0 0.0
    %2392 = vmatpush1.xpose.msra.mxu0 0.0
    %2393 = vmatprep.subr.mxu0 0.0
    %2394 = vmatpush1.xpose.msra.mxu0 0.0
    %2395 = vmatprep.subr.mxu0 0.0
    %2396 = vmatpush1.xpose.msra.mxu0 0.0
    %2397 = vmatprep.subr.mxu0 0.0
    %2398 = vmatpush1.xpose.msra.mxu0 0.0
    %2399 = vmatprep.subr.mxu0 0.0
    %2400 = vmatpush1.xpose.msra.mxu0 0.0
    %2401 = vmatprep.subr.mxu0 0.0
    %2402 = vmatpush1.xpose.msra.mxu0 0.0
    %2403 = vmatprep.subr.mxu0 0.0
    %2404 = vmatpush1.xpose.msra.mxu0 0.0
    %2405 = vmatprep.subr.mxu0 0.0
    %2406 = vmatpush1.xpose.msra.mxu0 0.0
    %2407 = vmatprep.subr.mxu0 0.0
    %2408 = vmatpush1.xpose.msra.mxu0 0.0
    %2409 = vmatprep.subr.mxu0 0.0
    %2410 = vmatpush1.xpose.msra.mxu0 0.0
    %2411 = vmatprep.subr.mxu0 0.0
    %2412 = vmatpush1.xpose.msra.mxu0 0.0
    %2413 = vmatprep.subr.mxu0 0.0
    %2414 = vmatpush1.xpose.msra.mxu0 0.0
    %2415 = vmatprep.subr.mxu0 0.0
    %2416 = vmatpush1.xpose.msra.mxu0 0.0
    %2417 = vmatprep.subr.mxu0 0.0
    %2418 = vmatpush1.xpose.msra.mxu0 0.0
    %2419 = vmatprep.subr.mxu0 0.0
    %2420 = vmatpush1.xpose.msra.mxu0 0.0
    %2421 = vmatprep.subr.mxu0 0.0
    %2422 = vmatpush1.xpose.msra.mxu0 0.0
    %2423 = vmatprep.subr.mxu0 0.0
    %2424 = vmatpush1.xpose.msra.mxu0 0.0
    %2425 = vmatprep.subr.mxu0 0.0
    %2426 = vmatpush1.xpose.msra.mxu0 0.0
    %2427 = vmatprep.subr.mxu0 0.0
    %2428 = vmatpush1.xpose.msra.mxu0 0.0
    %2429 = vmatprep.subr.mxu0 0.0
    %2430 = vmatpush1.xpose.msra.mxu0 0.0
    %2431 = vmatprep.subr.mxu0 0.0
    %2432 = vmatpush1.xpose.msra.mxu0 0.0
    %2433 = vmatprep.subr.mxu0 0.0
    %2434 = vmatpush1.xpose.msra.mxu0 0.0
    %2435 = vmatprep.subr.mxu0 0.0
    %2436 = vmatpush1.xpose.msra.mxu0 0.0
    %2437 = vmatprep.subr.mxu0 0.0
    %2438 = vmatpush1.xpose.msra.mxu0 0.0
    %2439 = vmatprep.subr.mxu0 0.0
    %2440 = vmatpush1.xpose.msra.mxu0 0.0
    %2441 = vmatprep.subr.mxu0 0.0
    %2442 = vmatpush1.xpose.msra.mxu0 0.0
    %2443 = vmatprep.subr.mxu0 0.0
    %2444 = vmatpush1.xpose.msra.mxu0 0.0
    %2445 = vmatprep.subr.mxu0 0.0
    %2446 = vmatpush1.xpose.msra.mxu0 0.0
    %2447 = vmatprep.mubr.f32.mxu0 0.0
    %v2448 = vand.u32 %v2116, 4294901760
    %v2449 = vsub.f32 %v2116, %v2448
    %v2450 = vand.u32 %v2449, 4294901760
    %2451 = vmatmul.mubr.f32.gmra.mrb[0].mxu0 %v2450
    %v2452 = vpop.f32.mrb[0].mxu0
    %v2453 = vadd.f32 %v2371, %v2452
    %v2454 = vpop.f32.mrb[0].mxu0
    %2455 = vmatprep.mubr.f32.mxu0 0.0
    %v2456 = vand.u32 %v2118, 4294901760
    %v2457 = vsub.f32 %v2118, %v2456
    %v2458 = vand.u32 %v2457, 4294901760
    %2459 = vmatmul.mubr.f32.gmra.mrb[0].mxu0 %v2458
    %v2460 = vpop.f32.mrb[0].mxu0
    %v2461 = vadd.f32 %v2378, %v2460
    %v2462 = vpop.f32.mrb[0].mxu0
    %2463 = vdwg.mxu0
    %2464 = vmatprep.subr.mxu0 0.0
    %v2465 = vand.u32 %v2120, 4294901760
    %v2466 = vsub.f32 %v2120, %v2465
    %v2467 = vand.u32 %v2466, 4294901760
    %2468 = vmatpush1.xpose.msra.mxu0 %v2467
    %2469 = vmatprep.subr.mxu0 0.0
    %v2470 = vand.u32 %v2122, 4294901760
    %v2471 = vsub.f32 %v2122, %v2470
    %v2472 = vand.u32 %v2471, 4294901760
    %2473 = vmatpush1.xpose.msra.mxu0 %v2472
    %2474 = vmatprep.subr.mxu0 0.0
    %2475 = vmatpush1.xpose.msra.mxu0 0.0
    %2476 = vmatprep.subr.mxu0 0.0
    %2477 = vmatpush1.xpose.msra.mxu0 0.0
    %2478 = vmatprep.subr.mxu0 0.0
    %2479 = vmatpush1.xpose.msra.mxu0 0.0
    %2480 = vmatprep.subr.mxu0 0.0
    %2481 = vmatpush1.xpose.msra.mxu0 0.0
    %2482 = vmatprep.subr.mxu0 0.0
    %2483 = vmatpush1.xpose.msra.mxu0 0.0
    %2484 = vmatprep.subr.mxu0 0.0
    %2485 = vmatpush1.xpose.msra.mxu0 0.0
    %2486 = vmatprep.subr.mxu0 0.0
    %2487 = vmatpush1.xpose.msra.mxu0 0.0
    %2488 = vmatprep.subr.mxu0 0.0
    %2489 = vmatpush1.xpose.msra.mxu0 0.0
    %2490 = vmatprep.subr.mxu0 0.0
    %2491 = vmatpush1.xpose.msra.mxu0 0.0
    %2492 = vmatprep.subr.mxu0 0.0
    %2493 = vmatpush1.xpose.msra.mxu0 0.0
    %2494 = vmatprep.subr.mxu0 0.0
    %2495 = vmatpush1.xpose.msra.mxu0 0.0
    %2496 = vmatprep.subr.mxu0 0.0
    %2497 = vmatpush1.xpose.msra.mxu0 0.0
    %2498 = vmatprep.subr.mxu0 0.0
    %2499 = vmatpush1.xpose.msra.mxu0 0.0
    %2500 = vmatprep.subr.mxu0 0.0
    %2501 = vmatpush1.xpose.msra.mxu0 0.0
    %2502 = vmatprep.subr.mxu0 0.0
    %2503 = vmatpush1.xpose.msra.mxu0 0.0
    %2504 = vmatprep.subr.mxu0 0.0
    %2505 = vmatpush1.xpose.msra.mxu0 0.0
    %2506 = vmatprep.subr.mxu0 0.0
    %2507 = vmatpush1.xpose.msra.mxu0 0.0
    %2508 = vmatprep.subr.mxu0 0.0
    %2509 = vmatpush1.xpose.msra.mxu0 0.0
    %2510 = vmatprep.subr.mxu0 0.0
    %2511 = vmatpush1.xpose.msra.mxu0 0.0
    %2512 = vmatprep.subr.mxu0 0.0
    %2513 = vmatpush1.xpose.msra.mxu0 0.0
    %2514 = vmatprep.subr.mxu0 0.0
    %2515 = vmatpush1.xpose.msra.mxu0 0.0
    %2516 = vmatprep.subr.mxu0 0.0
    %2517 = vmatpush1.xpose.msra.mxu0 0.0
    %2518 = vmatprep.subr.mxu0 0.0
    %2519 = vmatpush1.xpose.msra.mxu0 0.0
    %2520 = vmatprep.subr.mxu0 0.0
    %2521 = vmatpush1.xpose.msra.mxu0 0.0
    %2522 = vmatprep.subr.mxu0 0.0
    %2523 = vmatpush1.xpose.msra.mxu0 0.0
    %2524 = vmatprep.subr.mxu0 0.0
    %2525 = vmatpush1.xpose.msra.mxu0 0.0
    %2526 = vmatprep.subr.mxu0 0.0
    %2527 = vmatpush1.xpose.msra.mxu0 0.0
    %2528 = vmatprep.subr.mxu0 0.0
    %2529 = vmatpush1.xpose.msra.mxu0 0.0
    %2530 = vmatprep.subr.mxu0 0.0
    %2531 = vmatpush1.xpose.msra.mxu0 0.0
    %2532 = vmatprep.subr.mxu0 0.0
    %2533 = vmatpush1.xpose.msra.mxu0 0.0
    %2534 = vmatprep.mubr.f32.mxu0 0.0
    %v2535 = vand.u32 %v2116, 4294901760
    %2536 = vmatmul.mubr.f32.gmra.mrb[0].mxu0 %v2535
    %v2537 = vpop.f32.mrb[0].mxu0
    %v2538 = vadd.f32 %v2453, %v2537
    %v2539 = vpop.f32.mrb[0].mxu0
    %2540 = vmatprep.mubr.f32.mxu0 0.0
    %v2541 = vand.u32 %v2118, 4294901760
    %2542 = vmatmul.mubr.f32.gmra.mrb[0].mxu0 %v2541
    %v2543 = vpop.f32.mrb[0].mxu0
    %v2544 = vadd.f32 %v2461, %v2543
    %v2545 = vpop.f32.mrb[0].mxu0
    %2546 = vdwg.mxu0
    %2547 = vmatprep.subr.mxu0 0.0
    %v2548 = vand.u32 %v2120, 4294901760
    %2549 = vmatpush1.xpose.msra.mxu0 %v2548
    %2550 = vmatprep.subr.mxu0 0.0
    %v2551 = vand.u32 %v2122, 4294901760
    %2552 = vmatpush1.xpose.msra.mxu0 %v2551
    %2553 = vmatprep.subr.mxu0 0.0
    %2554 = vmatpush1.xpose.msra.mxu0 0.0
    %2555 = vmatprep.subr.mxu0 0.0
    %2556 = vmatpush1.xpose.msra.mxu0 0.0
    %2557 = vmatprep.subr.mxu0 0.0
    %2558 = vmatpush1.xpose.msra.mxu0 0.0
    %2559 = vmatprep.subr.mxu0 0.0
    %2560 = vmatpush1.xpose.msra.mxu0 0.0
    %2561 = vmatprep.subr.mxu0 0.0
    %2562 = vmatpush1.xpose.msra.mxu0 0.0
    %2563 = vmatprep.subr.mxu0 0.0
    %2564 = vmatpush1.xpose.msra.mxu0 0.0
    %2565 = vmatprep.subr.mxu0 0.0
    %2566 = vmatpush1.xpose.msra.mxu0 0.0
    %2567 = vmatprep.subr.mxu0 0.0
    %2568 = vmatpush1.xpose.msra.mxu0 0.0
    %2569 = vmatprep.subr.mxu0 0.0
    %2570 = vmatpush1.xpose.msra.mxu0 0.0
    %2571 = vmatprep.subr.mxu0 0.0
    %2572 = vmatpush1.xpose.msra.mxu0 0.0
    %2573 = vmatprep.subr.mxu0 0.0
    %2574 = vmatpush1.xpose.msra.mxu0 0.0
    %2575 = vmatprep.subr.mxu0 0.0
    %2576 = vmatpush1.xpose.msra.mxu0 0.0
    %2577 = vmatprep.subr.mxu0 0.0
    %2578 = vmatpush1.xpose.msra.mxu0 0.0
    %2579 = vmatprep.subr.mxu0 0.0
    %2580 = vmatpush1.xpose.msra.mxu0 0.0
    %2581 = vmatprep.subr.mxu0 0.0
    %2582 = vmatpush1.xpose.msra.mxu0 0.0
    %2583 = vmatprep.subr.mxu0 0.0
    %2584 = vmatpush1.xpose.msra.mxu0 0.0
    %2585 = vmatprep.subr.mxu0 0.0
    %2586 = vmatpush1.xpose.msra.mxu0 0.0
    %2587 = vmatprep.subr.mxu0 0.0
    %2588 = vmatpush1.xpose.msra.mxu0 0.0
    %2589 = vmatprep.subr.mxu0 0.0
    %2590 = vmatpush1.xpose.msra.mxu0 0.0
    %2591 = vmatprep.subr.mxu0 0.0
    %2592 = vmatpush1.xpose.msra.mxu0 0.0
    %2593 = vmatprep.subr.mxu0 0.0
    %2594 = vmatpush1.xpose.msra.mxu0 0.0
    %2595 = vmatprep.subr.mxu0 0.0
    %2596 = vmatpush1.xpose.msra.mxu0 0.0
    %2597 = vmatprep.subr.mxu0 0.0
    %2598 = vmatpush1.xpose.msra.mxu0 0.0
    %2599 = vmatprep.subr.mxu0 0.0
    %2600 = vmatpush1.xpose.msra.mxu0 0.0
    %2601 = vmatprep.subr.mxu0 0.0
    %2602 = vmatpush1.xpose.msra.mxu0 0.0
    %2603 = vmatprep.subr.mxu0 0.0
    %2604 = vmatpush1.xpose.msra.mxu0 0.0
    %2605 = vmatprep.subr.mxu0 0.0
    %2606 = vmatpush1.xpose.msra.mxu0 0.0
    %2607 = vmatprep.subr.mxu0 0.0
    %2608 = vmatpush1.xpose.msra.mxu0 0.0
    %2609 = vmatprep.subr.mxu0 0.0
    %2610 = vmatpush1.xpose.msra.mxu0 0.0
    %2611 = vmatprep.subr.mxu0 0.0
    %2612 = vmatpush1.xpose.msra.mxu0 0.0
    %2613 = vmatprep.mubr.f32.mxu0 0.0
    %v2614 = vand.u32 %v2116, 4294901760
    %2615 = vmatmul.mubr.f32.gmra.mrb[0].mxu0 %v2614
    %v2616 = vpop.f32.mrb[0].mxu0
    %v2617 = vadd.f32 %v2538, %v2616
    %v2618 = vpop.f32.mrb[0].mxu0
    %2619 = vmatprep.mubr.f32.mxu0 0.0
    %v2620 = vand.u32 %v2118, 4294901760
    %2621 = vmatmul.mubr.f32.gmra.mrb[0].mxu0 %v2620
    %v2622 = vpop.f32.mrb[0].mxu0
    %v2623 = vadd.f32 %v2544, %v2622
    %v2624 = vpop.f32.mrb[0].mxu0
    %2625 = vdwg.mxu0
    %2626 = vrot.lane.b32.xlu0 %v37, 48
    %v2627 = vpop.permute.xlu0 %2626
    %2628 = vrot.lane.b32.xlu0 %v38, 48
    %v2629 = vpop.permute.xlu0 %2628
    %2630 = vrot.lane.b32.xlu0 %v26, 48
    %v2631 = vpop.permute.xlu0 %2630
    %2632 = vrot.lane.b32.xlu0 %v27, 48
    %v2633 = vpop.permute.xlu0 %2632
    %v2634 = vsel %vm39, %v2627, 0
    %v2636 = vsel %vm39, %v2629, 0
    %v2638 = vsel %vm39, %v2631, 0
    %v2640 = vsel %vm39, %v2633, 0
    %2642 = vmatprep.subr.mxu0 0.0
    %v2643 = vand.u32 %v2638, 4294901760
    %2644 = vmatpush1.xpose.msra.mxu0 %v2643
    %2645 = vmatprep.subr.mxu0 0.0
    %v2646 = vand.u32 %v2640, 4294901760
    %2647 = vmatpush1.xpose.msra.mxu0 %v2646
    %2648 = vmatprep.subr.mxu0 0.0
    %2649 = vmatpush1.xpose.msra.mxu0 0.0
    %2650 = vmatprep.subr.mxu0 0.0
    %2651 = vmatpush1.xpose.msra.mxu0 0.0
    %2652 = vmatprep.subr.mxu0 0.0
    %2653 = vmatpush1.xpose.msra.mxu0 0.0
    %2654 = vmatprep.subr.mxu0 0.0
    %2655 = vmatpush1.xpose.msra.mxu0 0.0
    %2656 = vmatprep.subr.mxu0 0.0
    %2657 = vmatpush1.xpose.msra.mxu0 0.0
    %2658 = vmatprep.subr.mxu0 0.0
    %2659 = vmatpush1.xpose.msra.mxu0 0.0
    %2660 = vmatprep.subr.mxu0 0.0
    %2661 = vmatpush1.xpose.msra.mxu0 0.0
    %2662 = vmatprep.subr.mxu0 0.0
    %2663 = vmatpush1.xpose.msra.mxu0 0.0
    %2664 = vmatprep.subr.mxu0 0.0
    %2665 = vmatpush1.xpose.msra.mxu0 0.0
    %2666 = vmatprep.subr.mxu0 0.0
    %2667 = vmatpush1.xpose.msra.mxu0 0.0
    %2668 = vmatprep.subr.mxu0 0.0
    %2669 = vmatpush1.xpose.msra.mxu0 0.0
    %2670 = vmatprep.subr.mxu0 0.0
    %2671 = vmatpush1.xpose.msra.mxu0 0.0
    %2672 = vmatprep.subr.mxu0 0.0
    %2673 = vmatpush1.xpose.msra.mxu0 0.0
    %2674 = vmatprep.subr.mxu0 0.0
    %2675 = vmatpush1.xpose.msra.mxu0 0.0
    %2676 = vmatprep.subr.mxu0 0.0
    %2677 = vmatpush1.xpose.msra.mxu0 0.0
    %2678 = vmatprep.subr.mxu0 0.0
    %2679 = vmatpush1.xpose.msra.mxu0 0.0
    %2680 = vmatprep.subr.mxu0 0.0
    %2681 = vmatpush1.xpose.msra.mxu0 0.0
    %2682 = vmatprep.subr.mxu0 0.0
    %2683 = vmatpush1.xpose.msra.mxu0 0.0
    %2684 = vmatprep.subr.mxu0 0.0
    %2685 = vmatpush1.xpose.msra.mxu0 0.0
    %2686 = vmatprep.subr.mxu0 0.0
    %2687 = vmatpush1.xpose.msra.mxu0 0.0
    %2688 = vmatprep.subr.mxu0 0.0
    %2689 = vmatpush1.xpose.msra.mxu0 0.0
    %2690 = vmatprep.subr.mxu0 0.0
    %2691 = vmatpush1.xpose.msra.mxu0 0.0
    %2692 = vmatprep.subr.mxu0 0.0
    %2693 = vmatpush1.xpose.msra.mxu0 0.0
    %2694 = vmatprep.subr.mxu0 0.0
    %2695 = vmatpush1.xpose.msra.mxu0 0.0
    %2696 = vmatprep.subr.mxu0 0.0
    %2697 = vmatpush1.xpose.msra.mxu0 0.0
    %2698 = vmatprep.subr.mxu0 0.0
    %2699 = vmatpush1.xpose.msra.mxu0 0.0
    %2700 = vmatprep.subr.mxu0 0.0
    %2701 = vmatpush1.xpose.msra.mxu0 0.0
    %2702 = vmatprep.subr.mxu0 0.0
    %2703 = vmatpush1.xpose.msra.mxu0 0.0
    %2704 = vmatprep.subr.mxu0 0.0
    %2705 = vmatpush1.xpose.msra.mxu0 0.0
    %2706 = vmatprep.subr.mxu0 0.0
    %2707 = vmatpush1.xpose.msra.mxu0 0.0
    %2708 = vmatprep.mubr.f32.mxu0 0.0
    %v2709 = vand.u32 %v2634, 4294901760
    %v2710 = vsub.f32 %v2634, %v2709
    %v2711 = vand.u32 %v2710, 4294901760
    %v2712 = vsub.f32 %v2710, %v2711
    %v2713 = vand.u32 %v2712, 4294901760
    %2714 = vmatmul.mubr.f32.gmra.mrb[0].mxu0 %v2713
    %v2715 = vpop.f32.mrb[0].mxu0
    %v2716 = vadd.f32 0.0, %v2715
    %v2717 = vpop.f32.mrb[0].mxu0
    %2718 = vmatprep.mubr.f32.mxu0 0.0
    %v2719 = vand.u32 %v2636, 4294901760
    %v2720 = vsub.f32 %v2636, %v2719
    %v2721 = vand.u32 %v2720, 4294901760
    %v2722 = vsub.f32 %v2720, %v2721
    %v2723 = vand.u32 %v2722, 4294901760
    %2724 = vmatmul.mubr.f32.gmra.mrb[0].mxu0 %v2723
    %v2725 = vpop.f32.mrb[0].mxu0
    %v2726 = vadd.f32 0.0, %v2725
    %v2727 = vpop.f32.mrb[0].mxu0
    %2728 = vdwg.mxu0
    %2729 = vmatprep.subr.mxu0 0.0
    %v2730 = vand.u32 %v2638, 4294901760
    %v2731 = vsub.f32 %v2638, %v2730
    %v2732 = vand.u32 %v2731, 4294901760
    %v2733 = vsub.f32 %v2731, %v2732
    %v2734 = vand.u32 %v2733, 4294901760
    %2735 = vmatpush1.xpose.msra.mxu0 %v2734
    %2736 = vmatprep.subr.mxu0 0.0
    %v2737 = vand.u32 %v2640, 4294901760
    %v2738 = vsub.f32 %v2640, %v2737
    %v2739 = vand.u32 %v2738, 4294901760
    %v2740 = vsub.f32 %v2738, %v2739
    %v2741 = vand.u32 %v2740, 4294901760
    %2742 = vmatpush1.xpose.msra.mxu0 %v2741
    %2743 = vmatprep.subr.mxu0 0.0
    %2744 = vmatpush1.xpose.msra.mxu0 0.0
    %2745 = vmatprep.subr.mxu0 0.0
    %2746 = vmatpush1.xpose.msra.mxu0 0.0
    %2747 = vmatprep.subr.mxu0 0.0
    %2748 = vmatpush1.xpose.msra.mxu0 0.0
    %2749 = vmatprep.subr.mxu0 0.0
    %2750 = vmatpush1.xpose.msra.mxu0 0.0
    %2751 = vmatprep.subr.mxu0 0.0
    %2752 = vmatpush1.xpose.msra.mxu0 0.0
    %2753 = vmatprep.subr.mxu0 0.0
    %2754 = vmatpush1.xpose.msra.mxu0 0.0
    %2755 = vmatprep.subr.mxu0 0.0
    %2756 = vmatpush1.xpose.msra.mxu0 0.0
    %2757 = vmatprep.subr.mxu0 0.0
    %2758 = vmatpush1.xpose.msra.mxu0 0.0
    %2759 = vmatprep.subr.mxu0 0.0
    %2760 = vmatpush1.xpose.msra.mxu0 0.0
    %2761 = vmatprep.subr.mxu0 0.0
    %2762 = vmatpush1.xpose.msra.mxu0 0.0
    %2763 = vmatprep.subr.mxu0 0.0
    %2764 = vmatpush1.xpose.msra.mxu0 0.0
    %2765 = vmatprep.subr.mxu0 0.0
    %2766 = vmatpush1.xpose.msra.mxu0 0.0
    %2767 = vmatprep.subr.mxu0 0.0
    %2768 = vmatpush1.xpose.msra.mxu0 0.0
    %2769 = vmatprep.subr.mxu0 0.0
    %2770 = vmatpush1.xpose.msra.mxu0 0.0
    %2771 = vmatprep.subr.mxu0 0.0
    %2772 = vmatpush1.xpose.msra.mxu0 0.0
    %2773 = vmatprep.subr.mxu0 0.0
    %2774 = vmatpush1.xpose.msra.mxu0 0.0
    %2775 = vmatprep.subr.mxu0 0.0
    %2776 = vmatpush1.xpose.msra.mxu0 0.0
    %2777 = vmatprep.subr.mxu0 0.0
    %2778 = vmatpush1.xpose.msra.mxu0 0.0
    %2779 = vmatprep.subr.mxu0 0.0
    %2780 = vmatpush1.xpose.msra.mxu0 0.0
    %2781 = vmatprep.subr.mxu0 0.0
    %2782 = vmatpush1.xpose.msra.mxu0 0.0
    %2783 = vmatprep.subr.mxu0 0.0
    %2784 = vmatpush1.xpose.msra.mxu0 0.0
    %2785 = vmatprep.subr.mxu0 0.0
    %2786 = vmatpush1.xpose.msra.mxu0 0.0
    %2787 = vmatprep.subr.mxu0 0.0
    %2788 = vmatpush1.xpose.msra.mxu0 0.0
    %2789 = vmatprep.subr.mxu0 0.0
    %2790 = vmatpush1.xpose.msra.mxu0 0.0
    %2791 = vmatprep.subr.mxu0 0.0
    %2792 = vmatpush1.xpose.msra.mxu0 0.0
    %2793 = vmatprep.subr.mxu0 0.0
    %2794 = vmatpush1.xpose.msra.mxu0 0.0
    %2795 = vmatprep.subr.mxu0 0.0
    %2796 = vmatpush1.xpose.msra.mxu0 0.0
    %2797 = vmatprep.subr.mxu0 0.0
    %2798 = vmatpush1.xpose.msra.mxu0 0.0
    %2799 = vmatprep.subr.mxu0 0.0
    %2800 = vmatpush1.xpose.msra.mxu0 0.0
    %2801 = vmatprep.subr.mxu0 0.0
    %2802 = vmatpush1.xpose.msra.mxu0 0.0
    %2803 = vmatprep.mubr.f32.mxu0 0.0
    %v2804 = vand.u32 %v2634, 4294901760
    %2805 = vmatmul.mubr.f32.gmra.mrb[0].mxu0 %v2804
    %v2806 = vpop.f32.mrb[0].mxu0
    %v2807 = vadd.f32 %v2716, %v2806
    %v2808 = vpop.f32.mrb[0].mxu0
    %2809 = vmatprep.mubr.f32.mxu0 0.0
    %v2810 = vand.u32 %v2636, 4294901760
    %2811 = vmatmul.mubr.f32.gmra.mrb[0].mxu0 %v2810
    %v2812 = vpop.f32.mrb[0].mxu0
    %v2813 = vadd.f32 %v2726, %v2812
    %v2814 = vpop.f32.mrb[0].mxu0
    %2815 = vdwg.mxu0
    %2816 = vmatprep.subr.mxu0 0.0
    %v2817 = vand.u32 %v2638, 4294901760
    %v2818 = vsub.f32 %v2638, %v2817
    %2819 = vmatpush1.xpose.msra.mxu0 %v2818
    %2820 = vmatprep.subr.mxu0 0.0
    %v2821 = vand.u32 %v2640, 4294901760
    %v2822 = vsub.f32 %v2640, %v2821
    %2823 = vmatpush1.xpose.msra.mxu0 %v2822
    %2824 = vmatprep.subr.mxu0 0.0
    %2825 = vmatpush1.xpose.msra.mxu0 0.0
    %2826 = vmatprep.subr.mxu0 0.0
    %2827 = vmatpush1.xpose.msra.mxu0 0.0
    %2828 = vmatprep.subr.mxu0 0.0
    %2829 = vmatpush1.xpose.msra.mxu0 0.0
    %2830 = vmatprep.subr.mxu0 0.0
    %2831 = vmatpush1.xpose.msra.mxu0 0.0
    %2832 = vmatprep.subr.mxu0 0.0
    %2833 = vmatpush1.xpose.msra.mxu0 0.0
    %2834 = vmatprep.subr.mxu0 0.0
    %2835 = vmatpush1.xpose.msra.mxu0 0.0
    %2836 = vmatprep.subr.mxu0 0.0
    %2837 = vmatpush1.xpose.msra.mxu0 0.0
    %2838 = vmatprep.subr.mxu0 0.0
    %2839 = vmatpush1.xpose.msra.mxu0 0.0
    %2840 = vmatprep.subr.mxu0 0.0
    %2841 = vmatpush1.xpose.msra.mxu0 0.0
    %2842 = vmatprep.subr.mxu0 0.0
    %2843 = vmatpush1.xpose.msra.mxu0 0.0
    %2844 = vmatprep.subr.mxu0 0.0
    %2845 = vmatpush1.xpose.msra.mxu0 0.0
    %2846 = vmatprep.subr.mxu0 0.0
    %2847 = vmatpush1.xpose.msra.mxu0 0.0
    %2848 = vmatprep.subr.mxu0 0.0
    %2849 = vmatpush1.xpose.msra.mxu0 0.0
    %2850 = vmatprep.subr.mxu0 0.0
    %2851 = vmatpush1.xpose.msra.mxu0 0.0
    %2852 = vmatprep.subr.mxu0 0.0
    %2853 = vmatpush1.xpose.msra.mxu0 0.0
    %2854 = vmatprep.subr.mxu0 0.0
    %2855 = vmatpush1.xpose.msra.mxu0 0.0
    %2856 = vmatprep.subr.mxu0 0.0
    %2857 = vmatpush1.xpose.msra.mxu0 0.0
    %2858 = vmatprep.subr.mxu0 0.0
    %2859 = vmatpush1.xpose.msra.mxu0 0.0
    %2860 = vmatprep.subr.mxu0 0.0
    %2861 = vmatpush1.xpose.msra.mxu0 0.0
    %2862 = vmatprep.subr.mxu0 0.0
    %2863 = vmatpush1.xpose.msra.mxu0 0.0
    %2864 = vmatprep.subr.mxu0 0.0
    %2865 = vmatpush1.xpose.msra.mxu0 0.0
    %2866 = vmatprep.subr.mxu0 0.0
    %2867 = vmatpush1.xpose.msra.mxu0 0.0
    %2868 = vmatprep.subr.mxu0 0.0
    %2869 = vmatpush1.xpose.msra.mxu0 0.0
    %2870 = vmatprep.subr.mxu0 0.0
    %2871 = vmatpush1.xpose.msra.mxu0 0.0
    %2872 = vmatprep.subr.mxu0 0.0
    %2873 = vmatpush1.xpose.msra.mxu0 0.0
    %2874 = vmatprep.subr.mxu0 0.0
    %2875 = vmatpush1.xpose.msra.mxu0 0.0
    %2876 = vmatprep.subr.mxu0 0.0
    %2877 = vmatpush1.xpose.msra.mxu0 0.0
    %2878 = vmatprep.subr.mxu0 0.0
    %2879 = vmatpush1.xpose.msra.mxu0 0.0
    %2880 = vmatprep.subr.mxu0 0.0
    %2881 = vmatpush1.xpose.msra.mxu0 0.0
    %2882 = vmatprep.subr.mxu0 0.0
    %2883 = vmatpush1.xpose.msra.mxu0 0.0
    %2884 = vmatprep.mubr.f32.mxu0 0.0
    %v2885 = vand.u32 %v2634, 4294901760
    %v2886 = vsub.f32 %v2634, %v2885
    %2887 = vmatmul.mubr.f32.gmra.mrb[0].mxu0 %v2886
    %v2888 = vpop.f32.mrb[0].mxu0
    %v2889 = vadd.f32 %v2807, %v2888
    %v2890 = vpop.f32.mrb[0].mxu0
    %2891 = vmatprep.mubr.f32.mxu0 0.0
    %v2892 = vand.u32 %v2636, 4294901760
    %v2893 = vsub.f32 %v2636, %v2892
    %2894 = vmatmul.mubr.f32.gmra.mrb[0].mxu0 %v2893
    %v2895 = vpop.f32.mrb[0].mxu0
    %v2896 = vadd.f32 %v2813, %v2895
    %v2897 = vpop.f32.mrb[0].mxu0
    %2898 = vdwg.mxu0
    %2899 = vmatprep.subr.mxu0 0.0
    %v2900 = vand.u32 %v2638, 4294901760
    %2901 = vmatpush1.xpose.msra.mxu0 %v2900
    %2902 = vmatprep.subr.mxu0 0.0
    %v2903 = vand.u32 %v2640, 4294901760
    %2904 = vmatpush1.xpose.msra.mxu0 %v2903
    %2905 = vmatprep.subr.mxu0 0.0
    %2906 = vmatpush1.xpose.msra.mxu0 0.0
    %2907 = vmatprep.subr.mxu0 0.0
    %2908 = vmatpush1.xpose.msra.mxu0 0.0
    %2909 = vmatprep.subr.mxu0 0.0
    %2910 = vmatpush1.xpose.msra.mxu0 0.0
    %2911 = vmatprep.subr.mxu0 0.0
    %2912 = vmatpush1.xpose.msra.mxu0 0.0
    %2913 = vmatprep.subr.mxu0 0.0
    %2914 = vmatpush1.xpose.msra.mxu0 0.0
    %2915 = vmatprep.subr.mxu0 0.0
    %2916 = vmatpush1.xpose.msra.mxu0 0.0
    %2917 = vmatprep.subr.mxu0 0.0
    %2918 = vmatpush1.xpose.msra.mxu0 0.0
    %2919 = vmatprep.subr.mxu0 0.0
    %2920 = vmatpush1.xpose.msra.mxu0 0.0
    %2921 = vmatprep.subr.mxu0 0.0
    %2922 = vmatpush1.xpose.msra.mxu0 0.0
    %2923 = vmatprep.subr.mxu0 0.0
    %2924 = vmatpush1.xpose.msra.mxu0 0.0
    %2925 = vmatprep.subr.mxu0 0.0
    %2926 = vmatpush1.xpose.msra.mxu0 0.0
    %2927 = vmatprep.subr.mxu0 0.0
    %2928 = vmatpush1.xpose.msra.mxu0 0.0
    %2929 = vmatprep.subr.mxu0 0.0
    %2930 = vmatpush1.xpose.msra.mxu0 0.0
    %2931 = vmatprep.subr.mxu0 0.0
    %2932 = vmatpush1.xpose.msra.mxu0 0.0
    %2933 = vmatprep.subr.mxu0 0.0
    %2934 = vmatpush1.xpose.msra.mxu0 0.0
    %2935 = vmatprep.subr.mxu0 0.0
    %2936 = vmatpush1.xpose.msra.mxu0 0.0
    %2937 = vmatprep.subr.mxu0 0.0
    %2938 = vmatpush1.xpose.msra.mxu0 0.0
    %2939 = vmatprep.subr.mxu0 0.0
    %2940 = vmatpush1.xpose.msra.mxu0 0.0
    %2941 = vmatprep.subr.mxu0 0.0
    %2942 = vmatpush1.xpose.msra.mxu0 0.0
    %2943 = vmatprep.subr.mxu0 0.0
    %2944 = vmatpush1.xpose.msra.mxu0 0.0
    %2945 = vmatprep.subr.mxu0 0.0
    %2946 = vmatpush1.xpose.msra.mxu0 0.0
    %2947 = vmatprep.subr.mxu0 0.0
    %2948 = vmatpush1.xpose.msra.mxu0 0.0
    %2949 = vmatprep.subr.mxu0 0.0
    %2950 = vmatpush1.xpose.msra.mxu0 0.0
    %2951 = vmatprep.subr.mxu0 0.0
    %2952 = vmatpush1.xpose.msra.mxu0 0.0
    %2953 = vmatprep.subr.mxu0 0.0
    %2954 = vmatpush1.xpose.msra.mxu0 0.0
    %2955 = vmatprep.subr.mxu0 0.0
    %2956 = vmatpush1.xpose.msra.mxu0 0.0
    %2957 = vmatprep.subr.mxu0 0.0
    %2958 = vmatpush1.xpose.msra.mxu0 0.0
    %2959 = vmatprep.subr.mxu0 0.0
    %2960 = vmatpush1.xpose.msra.mxu0 0.0
    %2961 = vmatprep.subr.mxu0 0.0
    %2962 = vmatpush1.xpose.msra.mxu0 0.0
    %2963 = vmatprep.subr.mxu0 0.0
    %2964 = vmatpush1.xpose.msra.mxu0 0.0
    %2965 = vmatprep.mubr.f32.mxu0 0.0
    %v2966 = vand.u32 %v2634, 4294901760
    %v2967 = vsub.f32 %v2634, %v2966
    %v2968 = vand.u32 %v2967, 4294901760
    %2969 = vmatmul.mubr.f32.gmra.mrb[0].mxu0 %v2968
    %v2970 = vpop.f32.mrb[0].mxu0
    %v2971 = vadd.f32 %v2889, %v2970
    %v2972 = vpop.f32.mrb[0].mxu0
    %2973 = vmatprep.mubr.f32.mxu0 0.0
    %v2974 = vand.u32 %v2636, 4294901760
    %v2975 = vsub.f32 %v2636, %v2974
    %v2976 = vand.u32 %v2975, 4294901760
    %2977 = vmatmul.mubr.f32.gmra.mrb[0].mxu0 %v2976
    %v2978 = vpop.f32.mrb[0].mxu0
    %v2979 = vadd.f32 %v2896, %v2978
    %v2980 = vpop.f32.mrb[0].mxu0
    %2981 = vdwg.mxu0
    %2982 = vmatprep.subr.mxu0 0.0
    %v2983 = vand.u32 %v2638, 4294901760
    %v2984 = vsub.f32 %v2638, %v2983
    %v2985 = vand.u32 %v2984, 4294901760
    %2986 = vmatpush1.xpose.msra.mxu0 %v2985
    %2987 = vmatprep.subr.mxu0 0.0
    %v2988 = vand.u32 %v2640, 4294901760
    %v2989 = vsub.f32 %v2640, %v2988
    %v2990 = vand.u32 %v2989, 4294901760
    %2991 = vmatpush1.xpose.msra.mxu0 %v2990
    %2992 = vmatprep.subr.mxu0 0.0
    %2993 = vmatpush1.xpose.msra.mxu0 0.0
    %2994 = vmatprep.subr.mxu0 0.0
    %2995 = vmatpush1.xpose.msra.mxu0 0.0
    %2996 = vmatprep.subr.mxu0 0.0
    %2997 = vmatpush1.xpose.msra.mxu0 0.0
    %2998 = vmatprep.subr.mxu0 0.0
    %2999 = vmatpush1.xpose.msra.mxu0 0.0
    %3000 = vmatprep.subr.mxu0 0.0
    %3001 = vmatpush1.xpose.msra.mxu0 0.0
    %3002 = vmatprep.subr.mxu0 0.0
    %3003 = vmatpush1.xpose.msra.mxu0 0.0
    %3004 = vmatprep.subr.mxu0 0.0
    %3005 = vmatpush1.xpose.msra.mxu0 0.0
    %3006 = vmatprep.subr.mxu0 0.0
    %3007 = vmatpush1.xpose.msra.mxu0 0.0
    %3008 = vmatprep.subr.mxu0 0.0
    %3009 = vmatpush1.xpose.msra.mxu0 0.0
    %3010 = vmatprep.subr.mxu0 0.0
    %3011 = vmatpush1.xpose.msra.mxu0 0.0
    %3012 = vmatprep.subr.mxu0 0.0
    %3013 = vmatpush1.xpose.msra.mxu0 0.0
    %3014 = vmatprep.subr.mxu0 0.0
    %3015 = vmatpush1.xpose.msra.mxu0 0.0
    %3016 = vmatprep.subr.mxu0 0.0
    %3017 = vmatpush1.xpose.msra.mxu0 0.0
    %3018 = vmatprep.subr.mxu0 0.0
    %3019 = vmatpush1.xpose.msra.mxu0 0.0
    %3020 = vmatprep.subr.mxu0 0.0
    %3021 = vmatpush1.xpose.msra.mxu0 0.0
    %3022 = vmatprep.subr.mxu0 0.0
    %3023 = vmatpush1.xpose.msra.mxu0 0.0
    %3024 = vmatprep.subr.mxu0 0.0
    %3025 = vmatpush1.xpose.msra.mxu0 0.0
    %3026 = vmatprep.subr.mxu0 0.0
    %3027 = vmatpush1.xpose.msra.mxu0 0.0
    %3028 = vmatprep.subr.mxu0 0.0
    %3029 = vmatpush1.xpose.msra.mxu0 0.0
    %3030 = vmatprep.subr.mxu0 0.0
    %3031 = vmatpush1.xpose.msra.mxu0 0.0
    %3032 = vmatprep.subr.mxu0 0.0
    %3033 = vmatpush1.xpose.msra.mxu0 0.0
    %3034 = vmatprep.subr.mxu0 0.0
    %3035 = vmatpush1.xpose.msra.mxu0 0.0
    %3036 = vmatprep.subr.mxu0 0.0
    %3037 = vmatpush1.xpose.msra.mxu0 0.0
    %3038 = vmatprep.subr.mxu0 0.0
    %3039 = vmatpush1.xpose.msra.mxu0 0.0
    %3040 = vmatprep.subr.mxu0 0.0
    %3041 = vmatpush1.xpose.msra.mxu0 0.0
    %3042 = vmatprep.subr.mxu0 0.0
    %3043 = vmatpush1.xpose.msra.mxu0 0.0
    %3044 = vmatprep.subr.mxu0 0.0
    %3045 = vmatpush1.xpose.msra.mxu0 0.0
    %3046 = vmatprep.subr.mxu0 0.0
    %3047 = vmatpush1.xpose.msra.mxu0 0.0
    %3048 = vmatprep.subr.mxu0 0.0
    %3049 = vmatpush1.xpose.msra.mxu0 0.0
    %3050 = vmatprep.subr.mxu0 0.0
    %3051 = vmatpush1.xpose.msra.mxu0 0.0
    %3052 = vmatprep.mubr.f32.mxu0 0.0
    %v3053 = vand.u32 %v2634, 4294901760
    %3054 = vmatmul.mubr.f32.gmra.mrb[0].mxu0 %v3053
    %v3055 = vpop.f32.mrb[0].mxu0
    %v3056 = vadd.f32 %v2971, %v3055
    %v3057 = vpop.f32.mrb[0].mxu0
    %3058 = vmatprep.mubr.f32.mxu0 0.0
    %v3059 = vand.u32 %v2636, 4294901760
    %3060 = vmatmul.mubr.f32.gmra.mrb[0].mxu0 %v3059
    %v3061 = vpop.f32.mrb[0].mxu0
    %v3062 = vadd.f32 %v2979, %v3061
    %v3063 = vpop.f32.mrb[0].mxu0
    %3064 = vdwg.mxu0
    %3065 = vmatprep.subr.mxu0 0.0
    %v3066 = vand.u32 %v2638, 4294901760
    %3067 = vmatpush1.xpose.msra.mxu0 %v3066
    %3068 = vmatprep.subr.mxu0 0.0
    %v3069 = vand.u32 %v2640, 4294901760
    %3070 = vmatpush1.xpose.msra.mxu0 %v3069
    %3071 = vmatprep.subr.mxu0 0.0
    %3072 = vmatpush1.xpose.msra.mxu0 0.0
    %3073 = vmatprep.subr.mxu0 0.0
    %3074 = vmatpush1.xpose.msra.mxu0 0.0
    %3075 = vmatprep.subr.mxu0 0.0
    %3076 = vmatpush1.xpose.msra.mxu0 0.0
    %3077 = vmatprep.subr.mxu0 0.0
    %3078 = vmatpush1.xpose.msra.mxu0 0.0
    %3079 = vmatprep.subr.mxu0 0.0
    %3080 = vmatpush1.xpose.msra.mxu0 0.0
    %3081 = vmatprep.subr.mxu0 0.0
    %3082 = vmatpush1.xpose.msra.mxu0 0.0
    %3083 = vmatprep.subr.mxu0 0.0
    %3084 = vmatpush1.xpose.msra.mxu0 0.0
    %3085 = vmatprep.subr.mxu0 0.0
    %3086 = vmatpush1.xpose.msra.mxu0 0.0
    %3087 = vmatprep.subr.mxu0 0.0
    %3088 = vmatpush1.xpose.msra.mxu0 0.0
    %3089 = vmatprep.subr.mxu0 0.0
    %3090 = vmatpush1.xpose.msra.mxu0 0.0
    %3091 = vmatprep.subr.mxu0 0.0
    %3092 = vmatpush1.xpose.msra.mxu0 0.0
    %3093 = vmatprep.subr.mxu0 0.0
    %3094 = vmatpush1.xpose.msra.mxu0 0.0
    %3095 = vmatprep.subr.mxu0 0.0
    %3096 = vmatpush1.xpose.msra.mxu0 0.0
    %3097 = vmatprep.subr.mxu0 0.0
    %3098 = vmatpush1.xpose.msra.mxu0 0.0
    %3099 = vmatprep.subr.mxu0 0.0
    %3100 = vmatpush1.xpose.msra.mxu0 0.0
    %3101 = vmatprep.subr.mxu0 0.0
    %3102 = vmatpush1.xpose.msra.mxu0 0.0
    %3103 = vmatprep.subr.mxu0 0.0
    %3104 = vmatpush1.xpose.msra.mxu0 0.0
    %3105 = vmatprep.subr.mxu0 0.0
    %3106 = vmatpush1.xpose.msra.mxu0 0.0
    %3107 = vmatprep.subr.mxu0 0.0
    %3108 = vmatpush1.xpose.msra.mxu0 0.0
    %3109 = vmatprep.subr.mxu0 0.0
    %3110 = vmatpush1.xpose.msra.mxu0 0.0
    %3111 = vmatprep.subr.mxu0 0.0
    %3112 = vmatpush1.xpose.msra.mxu0 0.0
    %3113 = vmatprep.subr.mxu0 0.0
    %3114 = vmatpush1.xpose.msra.mxu0 0.0
    %3115 = vmatprep.subr.mxu0 0.0
    %3116 = vmatpush1.xpose.msra.mxu0 0.0
    %3117 = vmatprep.subr.mxu0 0.0
    %3118 = vmatpush1.xpose.msra.mxu0 0.0
    %3119 = vmatprep.subr.mxu0 0.0
    %3120 = vmatpush1.xpose.msra.mxu0 0.0
    %3121 = vmatprep.subr.mxu0 0.0
    %3122 = vmatpush1.xpose.msra.mxu0 0.0
    %3123 = vmatprep.subr.mxu0 0.0
    %3124 = vmatpush1.xpose.msra.mxu0 0.0
    %3125 = vmatprep.subr.mxu0 0.0
    %3126 = vmatpush1.xpose.msra.mxu0 0.0
    %3127 = vmatprep.subr.mxu0 0.0
    %3128 = vmatpush1.xpose.msra.mxu0 0.0
    %3129 = vmatprep.subr.mxu0 0.0
    %3130 = vmatpush1.xpose.msra.mxu0 0.0
    %3131 = vmatprep.mubr.f32.mxu0 0.0
    %v3132 = vand.u32 %v2634, 4294901760
    %3133 = vmatmul.mubr.f32.gmra.mrb[0].mxu0 %v3132
    %v3134 = vpop.f32.mrb[0].mxu0
    %v3135 = vadd.f32 %v3056, %v3134
    %v3136 = vpop.f32.mrb[0].mxu0
    %3137 = vmatprep.mubr.f32.mxu0 0.0
    %v3138 = vand.u32 %v2636, 4294901760
    %3139 = vmatmul.mubr.f32.gmra.mrb[0].mxu0 %v3138
    %v3140 = vpop.f32.mrb[0].mxu0
    %v3141 = vadd.f32 %v3062, %v3140
    %v3142 = vpop.f32.mrb[0].mxu0
    %3143 = vdwg.mxu0
    %3144 = vrot.lane.b32.xlu0 %v37, 32
    %v3145 = vpop.permute.xlu0 %3144
    %3146 = vrot.lane.b32.xlu0 %v38, 32
    %v3147 = vpop.permute.xlu0 %3146
    %3148 = vrot.lane.b32.xlu0 %v26, 32
    %v3149 = vpop.permute.xlu0 %3148
    %3150 = vrot.lane.b32.xlu0 %v27, 32
    %v3151 = vpop.permute.xlu0 %3150
    %v3152 = vsel %vm39, %v3145, 0
    %v3154 = vsel %vm39, %v3147, 0
    %v3156 = vsel %vm39, %v3149, 0
    %v3158 = vsel %vm39, %v3151, 0
    %3160 = vmatprep.subr.mxu0 0.0
    %v3161 = vand.u32 %v3156, 4294901760
    %3162 = vmatpush1.xpose.msra.mxu0 %v3161
    %3163 = vmatprep.subr.mxu0 0.0
    %v3164 = vand.u32 %v3158, 4294901760
    %3165 = vmatpush1.xpose.msra.mxu0 %v3164
    %3166 = vmatprep.subr.mxu0 0.0
    %3167 = vmatpush1.xpose.msra.mxu0 0.0
    %3168 = vmatprep.subr.mxu0 0.0
    %3169 = vmatpush1.xpose.msra.mxu0 0.0
    %3170 = vmatprep.subr.mxu0 0.0
    %3171 = vmatpush1.xpose.msra.mxu0 0.0
    %3172 = vmatprep.subr.mxu0 0.0
    %3173 = vmatpush1.xpose.msra.mxu0 0.0
    %3174 = vmatprep.subr.mxu0 0.0
    %3175 = vmatpush1.xpose.msra.mxu0 0.0
    %3176 = vmatprep.subr.mxu0 0.0
    %3177 = vmatpush1.xpose.msra.mxu0 0.0
    %3178 = vmatprep.subr.mxu0 0.0
    %3179 = vmatpush1.xpose.msra.mxu0 0.0
    %3180 = vmatprep.subr.mxu0 0.0
    %3181 = vmatpush1.xpose.msra.mxu0 0.0
    %3182 = vmatprep.subr.mxu0 0.0
    %3183 = vmatpush1.xpose.msra.mxu0 0.0
    %3184 = vmatprep.subr.mxu0 0.0
    %3185 = vmatpush1.xpose.msra.mxu0 0.0
    %3186 = vmatprep.subr.mxu0 0.0
    %3187 = vmatpush1.xpose.msra.mxu0 0.0
    %3188 = vmatprep.subr.mxu0 0.0
    %3189 = vmatpush1.xpose.msra.mxu0 0.0
    %3190 = vmatprep.subr.mxu0 0.0
    %3191 = vmatpush1.xpose.msra.mxu0 0.0
    %3192 = vmatprep.subr.mxu0 0.0
    %3193 = vmatpush1.xpose.msra.mxu0 0.0
    %3194 = vmatprep.subr.mxu0 0.0
    %3195 = vmatpush1.xpose.msra.mxu0 0.0
    %3196 = vmatprep.subr.mxu0 0.0
    %3197 = vmatpush1.xpose.msra.mxu0 0.0
    %3198 = vmatprep.subr.mxu0 0.0
    %3199 = vmatpush1.xpose.msra.mxu0 0.0
    %3200 = vmatprep.subr.mxu0 0.0
    %3201 = vmatpush1.xpose.msra.mxu0 0.0
    %3202 = vmatprep.subr.mxu0 0.0
    %3203 = vmatpush1.xpose.msra.mxu0 0.0
    %3204 = vmatprep.subr.mxu0 0.0
    %3205 = vmatpush1.xpose.msra.mxu0 0.0
    %3206 = vmatprep.subr.mxu0 0.0
    %3207 = vmatpush1.xpose.msra.mxu0 0.0
    %3208 = vmatprep.subr.mxu0 0.0
    %3209 = vmatpush1.xpose.msra.mxu0 0.0
    %3210 = vmatprep.subr.mxu0 0.0
    %3211 = vmatpush1.xpose.msra.mxu0 0.0
    %3212 = vmatprep.subr.mxu0 0.0
    %3213 = vmatpush1.xpose.msra.mxu0 0.0
    %3214 = vmatprep.subr.mxu0 0.0
    %3215 = vmatpush1.xpose.msra.mxu0 0.0
    %3216 = vmatprep.subr.mxu0 0.0
    %3217 = vmatpush1.xpose.msra.mxu0 0.0
    %3218 = vmatprep.subr.mxu0 0.0
    %3219 = vmatpush1.xpose.msra.mxu0 0.0
    %3220 = vmatprep.subr.mxu0 0.0
    %3221 = vmatpush1.xpose.msra.mxu0 0.0
    %3222 = vmatprep.subr.mxu0 0.0
    %3223 = vmatpush1.xpose.msra.mxu0 0.0
    %3224 = vmatprep.subr.mxu0 0.0
    %3225 = vmatpush1.xpose.msra.mxu0 0.0
    %3226 = vmatprep.mubr.f32.mxu0 0.0
    %v3227 = vand.u32 %v3152, 4294901760
    %v3228 = vsub.f32 %v3152, %v3227
    %v3229 = vand.u32 %v3228, 4294901760
    %v3230 = vsub.f32 %v3228, %v3229
    %v3231 = vand.u32 %v3230, 4294901760
    %3232 = vmatmul.mubr.f32.gmra.mrb[0].mxu0 %v3231
    %v3233 = vpop.f32.mrb[0].mxu0
    %v3234 = vadd.f32 0.0, %v3233
    %v3235 = vpop.f32.mrb[0].mxu0
    %3236 = vmatprep.mubr.f32.mxu0 0.0
    %v3237 = vand.u32 %v3154, 4294901760
    %v3238 = vsub.f32 %v3154, %v3237
    %v3239 = vand.u32 %v3238, 4294901760
    %v3240 = vsub.f32 %v3238, %v3239
    %v3241 = vand.u32 %v3240, 4294901760
    %3242 = vmatmul.mubr.f32.gmra.mrb[0].mxu0 %v3241
    %v3243 = vpop.f32.mrb[0].mxu0
    %v3244 = vadd.f32 0.0, %v3243
    %v3245 = vpop.f32.mrb[0].mxu0
    %3246 = vdwg.mxu0
    %3247 = vmatprep.subr.mxu0 0.0
    %v3248 = vand.u32 %v3156, 4294901760
    %v3249 = vsub.f32 %v3156, %v3248
    %v3250 = vand.u32 %v3249, 4294901760
    %v3251 = vsub.f32 %v3249, %v3250
    %v3252 = vand.u32 %v3251, 4294901760
    %3253 = vmatpush1.xpose.msra.mxu0 %v3252
    %3254 = vmatprep.subr.mxu0 0.0
    %v3255 = vand.u32 %v3158, 4294901760
    %v3256 = vsub.f32 %v3158, %v3255
    %v3257 = vand.u32 %v3256, 4294901760
    %v3258 = vsub.f32 %v3256, %v3257
    %v3259 = vand.u32 %v3258, 4294901760
    %3260 = vmatpush1.xpose.msra.mxu0 %v3259
    %3261 = vmatprep.subr.mxu0 0.0
    %3262 = vmatpush1.xpose.msra.mxu0 0.0
    %3263 = vmatprep.subr.mxu0 0.0
    %3264 = vmatpush1.xpose.msra.mxu0 0.0
    %3265 = vmatprep.subr.mxu0 0.0
    %3266 = vmatpush1.xpose.msra.mxu0 0.0
    %3267 = vmatprep.subr.mxu0 0.0
    %3268 = vmatpush1.xpose.msra.mxu0 0.0
    %3269 = vmatprep.subr.mxu0 0.0
    %3270 = vmatpush1.xpose.msra.mxu0 0.0
    %3271 = vmatprep.subr.mxu0 0.0
    %3272 = vmatpush1.xpose.msra.mxu0 0.0
    %3273 = vmatprep.subr.mxu0 0.0
    %3274 = vmatpush1.xpose.msra.mxu0 0.0
    %3275 = vmatprep.subr.mxu0 0.0
    %3276 = vmatpush1.xpose.msra.mxu0 0.0
    %3277 = vmatprep.subr.mxu0 0.0
    %3278 = vmatpush1.xpose.msra.mxu0 0.0
    %3279 = vmatprep.subr.mxu0 0.0
    %3280 = vmatpush1.xpose.msra.mxu0 0.0
    %3281 = vmatprep.subr.mxu0 0.0
    %3282 = vmatpush1.xpose.msra.mxu0 0.0
    %3283 = vmatprep.subr.mxu0 0.0
    %3284 = vmatpush1.xpose.msra.mxu0 0.0
    %3285 = vmatprep.subr.mxu0 0.0
    %3286 = vmatpush1.xpose.msra.mxu0 0.0
    %3287 = vmatprep.subr.mxu0 0.0
    %3288 = vmatpush1.xpose.msra.mxu0 0.0
    %3289 = vmatprep.subr.mxu0 0.0
    %3290 = vmatpush1.xpose.msra.mxu0 0.0
    %3291 = vmatprep.subr.mxu0 0.0
    %3292 = vmatpush1.xpose.msra.mxu0 0.0
    %3293 = vmatprep.subr.mxu0 0.0
    %3294 = vmatpush1.xpose.msra.mxu0 0.0
    %3295 = vmatprep.subr.mxu0 0.0
    %3296 = vmatpush1.xpose.msra.mxu0 0.0
    %3297 = vmatprep.subr.mxu0 0.0
    %3298 = vmatpush1.xpose.msra.mxu0 0.0
    %3299 = vmatprep.subr.mxu0 0.0
    %3300 = vmatpush1.xpose.msra.mxu0 0.0
    %3301 = vmatprep.subr.mxu0 0.0
    %3302 = vmatpush1.xpose.msra.mxu0 0.0
    %3303 = vmatprep.subr.mxu0 0.0
    %3304 = vmatpush1.xpose.msra.mxu0 0.0
    %3305 = vmatprep.subr.mxu0 0.0
    %3306 = vmatpush1.xpose.msra.mxu0 0.0
    %3307 = vmatprep.subr.mxu0 0.0
    %3308 = vmatpush1.xpose.msra.mxu0 0.0
    %3309 = vmatprep.subr.mxu0 0.0
    %3310 = vmatpush1.xpose.msra.mxu0 0.0
    %3311 = vmatprep.subr.mxu0 0.0
    %3312 = vmatpush1.xpose.msra.mxu0 0.0
    %3313 = vmatprep.subr.mxu0 0.0
    %3314 = vmatpush1.xpose.msra.mxu0 0.0
    %3315 = vmatprep.subr.mxu0 0.0
    %3316 = vmatpush1.xpose.msra.mxu0 0.0
    %3317 = vmatprep.subr.mxu0 0.0
    %3318 = vmatpush1.xpose.msra.mxu0 0.0
    %3319 = vmatprep.subr.mxu0 0.0
    %3320 = vmatpush1.xpose.msra.mxu0 0.0
    %3321 = vmatprep.mubr.f32.mxu0 0.0
    %v3322 = vand.u32 %v3152, 4294901760
    %3323 = vmatmul.mubr.f32.gmra.mrb[0].mxu0 %v3322
    %v3324 = vpop.f32.mrb[0].mxu0
    %v3325 = vadd.f32 %v3234, %v3324
    %v3326 = vpop.f32.mrb[0].mxu0
    %3327 = vmatprep.mubr.f32.mxu0 0.0
    %v3328 = vand.u32 %v3154, 4294901760
    %3329 = vmatmul.mubr.f32.gmra.mrb[0].mxu0 %v3328
    %v3330 = vpop.f32.mrb[0].mxu0
    %v3331 = vadd.f32 %v3244, %v3330
    %v3332 = vpop.f32.mrb[0].mxu0
    %3333 = vdwg.mxu0
    %3334 = vmatprep.subr.mxu0 0.0
    %v3335 = vand.u32 %v3156, 4294901760
    %v3336 = vsub.f32 %v3156, %v3335
    %3337 = vmatpush1.xpose.msra.mxu0 %v3336
    %3338 = vmatprep.subr.mxu0 0.0
    %v3339 = vand.u32 %v3158, 4294901760
    %v3340 = vsub.f32 %v3158, %v3339
    %3341 = vmatpush1.xpose.msra.mxu0 %v3340
    %3342 = vmatprep.subr.mxu0 0.0
    %3343 = vmatpush1.xpose.msra.mxu0 0.0
    %3344 = vmatprep.subr.mxu0 0.0
    %3345 = vmatpush1.xpose.msra.mxu0 0.0
    %3346 = vmatprep.subr.mxu0 0.0
    %3347 = vmatpush1.xpose.msra.mxu0 0.0
    %3348 = vmatprep.subr.mxu0 0.0
    %3349 = vmatpush1.xpose.msra.mxu0 0.0
    %3350 = vmatprep.subr.mxu0 0.0
    %3351 = vmatpush1.xpose.msra.mxu0 0.0
    %3352 = vmatprep.subr.mxu0 0.0
    %3353 = vmatpush1.xpose.msra.mxu0 0.0
    %3354 = vmatprep.subr.mxu0 0.0
    %3355 = vmatpush1.xpose.msra.mxu0 0.0
    %3356 = vmatprep.subr.mxu0 0.0
    %3357 = vmatpush1.xpose.msra.mxu0 0.0
    %3358 = vmatprep.subr.mxu0 0.0
    %3359 = vmatpush1.xpose.msra.mxu0 0.0
    %3360 = vmatprep.subr.mxu0 0.0
    %3361 = vmatpush1.xpose.msra.mxu0 0.0
    %3362 = vmatprep.subr.mxu0 0.0
    %3363 = vmatpush1.xpose.msra.mxu0 0.0
    %3364 = vmatprep.subr.mxu0 0.0
    %3365 = vmatpush1.xpose.msra.mxu0 0.0
    %3366 = vmatprep.subr.mxu0 0.0
    %3367 = vmatpush1.xpose.msra.mxu0 0.0
    %3368 = vmatprep.subr.mxu0 0.0
    %3369 = vmatpush1.xpose.msra.mxu0 0.0
    %3370 = vmatprep.subr.mxu0 0.0
    %3371 = vmatpush1.xpose.msra.mxu0 0.0
    %3372 = vmatprep.subr.mxu0 0.0
    %3373 = vmatpush1.xpose.msra.mxu0 0.0
    %3374 = vmatprep.subr.mxu0 0.0
    %3375 = vmatpush1.xpose.msra.mxu0 0.0
    %3376 = vmatprep.subr.mxu0 0.0
    %3377 = vmatpush1.xpose.msra.mxu0 0.0
    %3378 = vmatprep.subr.mxu0 0.0
    %3379 = vmatpush1.xpose.msra.mxu0 0.0
    %3380 = vmatprep.subr.mxu0 0.0
    %3381 = vmatpush1.xpose.msra.mxu0 0.0
    %3382 = vmatprep.subr.mxu0 0.0
    %3383 = vmatpush1.xpose.msra.mxu0 0.0
    %3384 = vmatprep.subr.mxu0 0.0
    %3385 = vmatpush1.xpose.msra.mxu0 0.0
    %3386 = vmatprep.subr.mxu0 0.0
    %3387 = vmatpush1.xpose.msra.mxu0 0.0
    %3388 = vmatprep.subr.mxu0 0.0
    %3389 = vmatpush1.xpose.msra.mxu0 0.0
    %3390 = vmatprep.subr.mxu0 0.0
    %3391 = vmatpush1.xpose.msra.mxu0 0.0
    %3392 = vmatprep.subr.mxu0 0.0
    %3393 = vmatpush1.xpose.msra.mxu0 0.0
    %3394 = vmatprep.subr.mxu0 0.0
    %3395 = vmatpush1.xpose.msra.mxu0 0.0
    %3396 = vmatprep.subr.mxu0 0.0
    %3397 = vmatpush1.xpose.msra.mxu0 0.0
    %3398 = vmatprep.subr.mxu0 0.0
    %3399 = vmatpush1.xpose.msra.mxu0 0.0
    %3400 = vmatprep.subr.mxu0 0.0
    %3401 = vmatpush1.xpose.msra.mxu0 0.0
    %3402 = vmatprep.mubr.f32.mxu0 0.0
    %v3403 = vand.u32 %v3152, 4294901760
    %v3404 = vsub.f32 %v3152, %v3403
    %3405 = vmatmul.mubr.f32.gmra.mrb[0].mxu0 %v3404
    %v3406 = vpop.f32.mrb[0].mxu0
    %v3407 = vadd.f32 %v3325, %v3406
    %v3408 = vpop.f32.mrb[0].mxu0
    %3409 = vmatprep.mubr.f32.mxu0 0.0
    %v3410 = vand.u32 %v3154, 4294901760
    %v3411 = vsub.f32 %v3154, %v3410
    %3412 = vmatmul.mubr.f32.gmra.mrb[0].mxu0 %v3411
    %v3413 = vpop.f32.mrb[0].mxu0
    %v3414 = vadd.f32 %v3331, %v3413
    %v3415 = vpop.f32.mrb[0].mxu0
    %3416 = vdwg.mxu0
    %3417 = vmatprep.subr.mxu0 0.0
    %v3418 = vand.u32 %v3156, 4294901760
    %3419 = vmatpush1.xpose.msra.mxu0 %v3418
    %3420 = vmatprep.subr.mxu0 0.0
    %v3421 = vand.u32 %v3158, 4294901760
    %3422 = vmatpush1.xpose.msra.mxu0 %v3421
    %3423 = vmatprep.subr.mxu0 0.0
    %3424 = vmatpush1.xpose.msra.mxu0 0.0
    %3425 = vmatprep.subr.mxu0 0.0
    %3426 = vmatpush1.xpose.msra.mxu0 0.0
    %3427 = vmatprep.subr.mxu0 0.0
    %3428 = vmatpush1.xpose.msra.mxu0 0.0
    %3429 = vmatprep.subr.mxu0 0.0
    %3430 = vmatpush1.xpose.msra.mxu0 0.0
    %3431 = vmatprep.subr.mxu0 0.0
    %3432 = vmatpush1.xpose.msra.mxu0 0.0
    %3433 = vmatprep.subr.mxu0 0.0
    %3434 = vmatpush1.xpose.msra.mxu0 0.0
    %3435 = vmatprep.subr.mxu0 0.0
    %3436 = vmatpush1.xpose.msra.mxu0 0.0
    %3437 = vmatprep.subr.mxu0 0.0
    %3438 = vmatpush1.xpose.msra.mxu0 0.0
    %3439 = vmatprep.subr.mxu0 0.0
    %3440 = vmatpush1.xpose.msra.mxu0 0.0
    %3441 = vmatprep.subr.mxu0 0.0
    %3442 = vmatpush1.xpose.msra.mxu0 0.0
    %3443 = vmatprep.subr.mxu0 0.0
    %3444 = vmatpush1.xpose.msra.mxu0 0.0
    %3445 = vmatprep.subr.mxu0 0.0
    %3446 = vmatpush1.xpose.msra.mxu0 0.0
    %3447 = vmatprep.subr.mxu0 0.0
    %3448 = vmatpush1.xpose.msra.mxu0 0.0
    %3449 = vmatprep.subr.mxu0 0.0
    %3450 = vmatpush1.xpose.msra.mxu0 0.0
    %3451 = vmatprep.subr.mxu0 0.0
    %3452 = vmatpush1.xpose.msra.mxu0 0.0
    %3453 = vmatprep.subr.mxu0 0.0
    %3454 = vmatpush1.xpose.msra.mxu0 0.0
    %3455 = vmatprep.subr.mxu0 0.0
    %3456 = vmatpush1.xpose.msra.mxu0 0.0
    %3457 = vmatprep.subr.mxu0 0.0
    %3458 = vmatpush1.xpose.msra.mxu0 0.0
    %3459 = vmatprep.subr.mxu0 0.0
    %3460 = vmatpush1.xpose.msra.mxu0 0.0
    %3461 = vmatprep.subr.mxu0 0.0
    %3462 = vmatpush1.xpose.msra.mxu0 0.0
    %3463 = vmatprep.subr.mxu0 0.0
    %3464 = vmatpush1.xpose.msra.mxu0 0.0
    %3465 = vmatprep.subr.mxu0 0.0
    %3466 = vmatpush1.xpose.msra.mxu0 0.0
    %3467 = vmatprep.subr.mxu0 0.0
    %3468 = vmatpush1.xpose.msra.mxu0 0.0
    %3469 = vmatprep.subr.mxu0 0.0
    %3470 = vmatpush1.xpose.msra.mxu0 0.0
    %3471 = vmatprep.subr.mxu0 0.0
    %3472 = vmatpush1.xpose.msra.mxu0 0.0
    %3473 = vmatprep.subr.mxu0 0.0
    %3474 = vmatpush1.xpose.msra.mxu0 0.0
    %3475 = vmatprep.subr.mxu0 0.0
    %3476 = vmatpush1.xpose.msra.mxu0 0.0
    %3477 = vmatprep.subr.mxu0 0.0
    %3478 = vmatpush1.xpose.msra.mxu0 0.0
    %3479 = vmatprep.subr.mxu0 0.0
    %3480 = vmatpush1.xpose.msra.mxu0 0.0
    %3481 = vmatprep.subr.mxu0 0.0
    %3482 = vmatpush1.xpose.msra.mxu0 0.0
    %3483 = vmatprep.mubr.f32.mxu0 0.0
    %v3484 = vand.u32 %v3152, 4294901760
    %v3485 = vsub.f32 %v3152, %v3484
    %v3486 = vand.u32 %v3485, 4294901760
    %3487 = vmatmul.mubr.f32.gmra.mrb[0].mxu0 %v3486
    %v3488 = vpop.f32.mrb[0].mxu0
    %v3489 = vadd.f32 %v3407, %v3488
    %v3490 = vpop.f32.mrb[0].mxu0
    %3491 = vmatprep.mubr.f32.mxu0 0.0
    %v3492 = vand.u32 %v3154, 4294901760
    %v3493 = vsub.f32 %v3154, %v3492
    %v3494 = vand.u32 %v3493, 4294901760
    %3495 = vmatmul.mubr.f32.gmra.mrb[0].mxu0 %v3494
    %v3496 = vpop.f32.mrb[0].mxu0
    %v3497 = vadd.f32 %v3414, %v3496
    %v3498 = vpop.f32.mrb[0].mxu0
    %3499 = vdwg.mxu0
    %3500 = vmatprep.subr.mxu0 0.0
    %v3501 = vand.u32 %v3156, 4294901760
    %v3502 = vsub.f32 %v3156, %v3501
    %v3503 = vand.u32 %v3502, 4294901760
    %3504 = vmatpush1.xpose.msra.mxu0 %v3503
    %3505 = vmatprep.subr.mxu0 0.0
    %v3506 = vand.u32 %v3158, 4294901760
    %v3507 = vsub.f32 %v3158, %v3506
    %v3508 = vand.u32 %v3507, 4294901760
    %3509 = vmatpush1.xpose.msra.mxu0 %v3508
    %3510 = vmatprep.subr.mxu0 0.0
    %3511 = vmatpush1.xpose.msra.mxu0 0.0
    %3512 = vmatprep.subr.mxu0 0.0
    %3513 = vmatpush1.xpose.msra.mxu0 0.0
    %3514 = vmatprep.subr.mxu0 0.0
    %3515 = vmatpush1.xpose.msra.mxu0 0.0
    %3516 = vmatprep.subr.mxu0 0.0
    %3517 = vmatpush1.xpose.msra.mxu0 0.0
    %3518 = vmatprep.subr.mxu0 0.0
    %3519 = vmatpush1.xpose.msra.mxu0 0.0
    %3520 = vmatprep.subr.mxu0 0.0
    %3521 = vmatpush1.xpose.msra.mxu0 0.0
    %3522 = vmatprep.subr.mxu0 0.0
    %3523 = vmatpush1.xpose.msra.mxu0 0.0
    %3524 = vmatprep.subr.mxu0 0.0
    %3525 = vmatpush1.xpose.msra.mxu0 0.0
    %3526 = vmatprep.subr.mxu0 0.0
    %3527 = vmatpush1.xpose.msra.mxu0 0.0
    %3528 = vmatprep.subr.mxu0 0.0
    %3529 = vmatpush1.xpose.msra.mxu0 0.0
    %3530 = vmatprep.subr.mxu0 0.0
    %3531 = vmatpush1.xpose.msra.mxu0 0.0
    %3532 = vmatprep.subr.mxu0 0.0
    %3533 = vmatpush1.xpose.msra.mxu0 0.0
    %3534 = vmatprep.subr.mxu0 0.0
    %3535 = vmatpush1.xpose.msra.mxu0 0.0
    %3536 = vmatprep.subr.mxu0 0.0
    %3537 = vmatpush1.xpose.msra.mxu0 0.0
    %3538 = vmatprep.subr.mxu0 0.0
    %3539 = vmatpush1.xpose.msra.mxu0 0.0
    %3540 = vmatprep.subr.mxu0 0.0
    %3541 = vmatpush1.xpose.msra.mxu0 0.0
    %3542 = vmatprep.subr.mxu0 0.0
    %3543 = vmatpush1.xpose.msra.mxu0 0.0
    %3544 = vmatprep.subr.mxu0 0.0
    %3545 = vmatpush1.xpose.msra.mxu0 0.0
    %3546 = vmatprep.subr.mxu0 0.0
    %3547 = vmatpush1.xpose.msra.mxu0 0.0
    %3548 = vmatprep.subr.mxu0 0.0
    %3549 = vmatpush1.xpose.msra.mxu0 0.0
    %3550 = vmatprep.subr.mxu0 0.0
    %3551 = vmatpush1.xpose.msra.mxu0 0.0
    %3552 = vmatprep.subr.mxu0 0.0
    %3553 = vmatpush1.xpose.msra.mxu0 0.0
    %3554 = vmatprep.subr.mxu0 0.0
    %3555 = vmatpush1.xpose.msra.mxu0 0.0
    %3556 = vmatprep.subr.mxu0 0.0
    %3557 = vmatpush1.xpose.msra.mxu0 0.0
    %3558 = vmatprep.subr.mxu0 0.0
    %3559 = vmatpush1.xpose.msra.mxu0 0.0
    %3560 = vmatprep.subr.mxu0 0.0
    %3561 = vmatpush1.xpose.msra.mxu0 0.0
    %3562 = vmatprep.subr.mxu0 0.0
    %3563 = vmatpush1.xpose.msra.mxu0 0.0
    %3564 = vmatprep.subr.mxu0 0.0
    %3565 = vmatpush1.xpose.msra.mxu0 0.0
    %3566 = vmatprep.subr.mxu0 0.0
    %3567 = vmatpush1.xpose.msra.mxu0 0.0
    %3568 = vmatprep.subr.mxu0 0.0
    %3569 = vmatpush1.xpose.msra.mxu0 0.0
    %3570 = vmatprep.mubr.f32.mxu0 0.0
    %v3571 = vand.u32 %v3152, 4294901760
    %3572 = vmatmul.mubr.f32.gmra.mrb[0].mxu0 %v3571
    %v3573 = vpop.f32.mrb[0].mxu0
    %v3574 = vadd.f32 %v3489, %v3573
    %v3575 = vpop.f32.mrb[0].mxu0
    %3576 = vmatprep.mubr.f32.mxu0 0.0
    %v3577 = vand.u32 %v3154, 4294901760
    %3578 = vmatmul.mubr.f32.gmra.mrb[0].mxu0 %v3577
    %v3579 = vpop.f32.mrb[0].mxu0
    %v3580 = vadd.f32 %v3497, %v3579
    %v3581 = vpop.f32.mrb[0].mxu0
    %3582 = vdwg.mxu0
    %3583 = vmatprep.subr.mxu0 0.0
    %v3584 = vand.u32 %v3156, 4294901760
    %3585 = vmatpush1.xpose.msra.mxu0 %v3584
    %3586 = vmatprep.subr.mxu0 0.0
    %v3587 = vand.u32 %v3158, 4294901760
    %3588 = vmatpush1.xpose.msra.mxu0 %v3587
    %3589 = vmatprep.subr.mxu0 0.0
    %3590 = vmatpush1.xpose.msra.mxu0 0.0
    %3591 = vmatprep.subr.mxu0 0.0
    %3592 = vmatpush1.xpose.msra.mxu0 0.0
    %3593 = vmatprep.subr.mxu0 0.0
    %3594 = vmatpush1.xpose.msra.mxu0 0.0
    %3595 = vmatprep.subr.mxu0 0.0
    %3596 = vmatpush1.xpose.msra.mxu0 0.0
    %3597 = vmatprep.subr.mxu0 0.0
    %3598 = vmatpush1.xpose.msra.mxu0 0.0
    %3599 = vmatprep.subr.mxu0 0.0
    %3600 = vmatpush1.xpose.msra.mxu0 0.0
    %3601 = vmatprep.subr.mxu0 0.0
    %3602 = vmatpush1.xpose.msra.mxu0 0.0
    %3603 = vmatprep.subr.mxu0 0.0
    %3604 = vmatpush1.xpose.msra.mxu0 0.0
    %3605 = vmatprep.subr.mxu0 0.0
    %3606 = vmatpush1.xpose.msra.mxu0 0.0
    %3607 = vmatprep.subr.mxu0 0.0
    %3608 = vmatpush1.xpose.msra.mxu0 0.0
    %3609 = vmatprep.subr.mxu0 0.0
    %3610 = vmatpush1.xpose.msra.mxu0 0.0
    %3611 = vmatprep.subr.mxu0 0.0
    %3612 = vmatpush1.xpose.msra.mxu0 0.0
    %3613 = vmatprep.subr.mxu0 0.0
    %3614 = vmatpush1.xpose.msra.mxu0 0.0
    %3615 = vmatprep.subr.mxu0 0.0
    %3616 = vmatpush1.xpose.msra.mxu0 0.0
    %3617 = vmatprep.subr.mxu0 0.0
    %3618 = vmatpush1.xpose.msra.mxu0 0.0
    %3619 = vmatprep.subr.mxu0 0.0
    %3620 = vmatpush1.xpose.msra.mxu0 0.0
    %3621 = vmatprep.subr.mxu0 0.0
    %3622 = vmatpush1.xpose.msra.mxu0 0.0
    %3623 = vmatprep.subr.mxu0 0.0
    %3624 = vmatpush1.xpose.msra.mxu0 0.0
    %3625 = vmatprep.subr.mxu0 0.0
    %3626 = vmatpush1.xpose.msra.mxu0 0.0
    %3627 = vmatprep.subr.mxu0 0.0
    %3628 = vmatpush1.xpose.msra.mxu0 0.0
    %3629 = vmatprep.subr.mxu0 0.0
    %3630 = vmatpush1.xpose.msra.mxu0 0.0
    %3631 = vmatprep.subr.mxu0 0.0
    %3632 = vmatpush1.xpose.msra.mxu0 0.0
    %3633 = vmatprep.subr.mxu0 0.0
    %3634 = vmatpush1.xpose.msra.mxu0 0.0
    %3635 = vmatprep.subr.mxu0 0.0
    %3636 = vmatpush1.xpose.msra.mxu0 0.0
    %3637 = vmatprep.subr.mxu0 0.0
    %3638 = vmatpush1.xpose.msra.mxu0 0.0
    %3639 = vmatprep.subr.mxu0 0.0
    %3640 = vmatpush1.xpose.msra.mxu0 0.0
    %3641 = vmatprep.subr.mxu0 0.0
    %3642 = vmatpush1.xpose.msra.mxu0 0.0
    %3643 = vmatprep.subr.mxu0 0.0
    %3644 = vmatpush1.xpose.msra.mxu0 0.0
    %3645 = vmatprep.subr.mxu0 0.0
    %3646 = vmatpush1.xpose.msra.mxu0 0.0
    %3647 = vmatprep.subr.mxu0 0.0
    %3648 = vmatpush1.xpose.msra.mxu0 0.0
    %3649 = vmatprep.mubr.f32.mxu0 0.0
    %v3650 = vand.u32 %v3152, 4294901760
    %3651 = vmatmul.mubr.f32.gmra.mrb[0].mxu0 %v3650
    %v3652 = vpop.f32.mrb[0].mxu0
    %v3653 = vadd.f32 %v3574, %v3652
    %v3654 = vpop.f32.mrb[0].mxu0
    %3655 = vmatprep.mubr.f32.mxu0 0.0
    %v3656 = vand.u32 %v3154, 4294901760
    %3657 = vmatmul.mubr.f32.gmra.mrb[0].mxu0 %v3656
    %v3658 = vpop.f32.mrb[0].mxu0
    %v3659 = vadd.f32 %v3580, %v3658
    %v3660 = vpop.f32.mrb[0].mxu0
    %3661 = vdwg.mxu0
    %3662 = vrot.lane.b32.xlu0 %v37, 16
    %v3663 = vpop.permute.xlu0 %3662
    %3664 = vrot.lane.b32.xlu0 %v38, 16
    %v3665 = vpop.permute.xlu0 %3664
    %3666 = vrot.lane.b32.xlu0 %v26, 16
    %v3667 = vpop.permute.xlu0 %3666
    %3668 = vrot.lane.b32.xlu0 %v27, 16
    %v3669 = vpop.permute.xlu0 %3668
    %v3670 = vsel %vm39, %v3663, 0
    %v3672 = vsel %vm39, %v3665, 0
    %v3674 = vsel %vm39, %v3667, 0
    %v3676 = vsel %vm39, %v3669, 0
    %3678 = vmatprep.subr.mxu0 0.0
    %v3679 = vand.u32 %v3674, 4294901760
    %3680 = vmatpush1.xpose.msra.mxu0 %v3679
    %3681 = vmatprep.subr.mxu0 0.0
    %v3682 = vand.u32 %v3676, 4294901760
    %3683 = vmatpush1.xpose.msra.mxu0 %v3682
    %3684 = vmatprep.subr.mxu0 0.0
    %3685 = vmatpush1.xpose.msra.mxu0 0.0
    %3686 = vmatprep.subr.mxu0 0.0
    %3687 = vmatpush1.xpose.msra.mxu0 0.0
    %3688 = vmatprep.subr.mxu0 0.0
    %3689 = vmatpush1.xpose.msra.mxu0 0.0
    %3690 = vmatprep.subr.mxu0 0.0
    %3691 = vmatpush1.xpose.msra.mxu0 0.0
    %3692 = vmatprep.subr.mxu0 0.0
    %3693 = vmatpush1.xpose.msra.mxu0 0.0
    %3694 = vmatprep.subr.mxu0 0.0
    %3695 = vmatpush1.xpose.msra.mxu0 0.0
    %3696 = vmatprep.subr.mxu0 0.0
    %3697 = vmatpush1.xpose.msra.mxu0 0.0
    %3698 = vmatprep.subr.mxu0 0.0
    %3699 = vmatpush1.xpose.msra.mxu0 0.0
    %3700 = vmatprep.subr.mxu0 0.0
    %3701 = vmatpush1.xpose.msra.mxu0 0.0
    %3702 = vmatprep.subr.mxu0 0.0
    %3703 = vmatpush1.xpose.msra.mxu0 0.0
    %3704 = vmatprep.subr.mxu0 0.0
    %3705 = vmatpush1.xpose.msra.mxu0 0.0
    %3706 = vmatprep.subr.mxu0 0.0
    %3707 = vmatpush1.xpose.msra.mxu0 0.0
    %3708 = vmatprep.subr.mxu0 0.0
    %3709 = vmatpush1.xpose.msra.mxu0 0.0
    %3710 = vmatprep.subr.mxu0 0.0
    %3711 = vmatpush1.xpose.msra.mxu0 0.0
    %3712 = vmatprep.subr.mxu0 0.0
    %3713 = vmatpush1.xpose.msra.mxu0 0.0
    %3714 = vmatprep.subr.mxu0 0.0
    %3715 = vmatpush1.xpose.msra.mxu0 0.0
    %3716 = vmatprep.subr.mxu0 0.0
    %3717 = vmatpush1.xpose.msra.mxu0 0.0
    %3718 = vmatprep.subr.mxu0 0.0
    %3719 = vmatpush1.xpose.msra.mxu0 0.0
    %3720 = vmatprep.subr.mxu0 0.0
    %3721 = vmatpush1.xpose.msra.mxu0 0.0
    %3722 = vmatprep.subr.mxu0 0.0
    %3723 = vmatpush1.xpose.msra.mxu0 0.0
    %3724 = vmatprep.subr.mxu0 0.0
    %3725 = vmatpush1.xpose.msra.mxu0 0.0
    %3726 = vmatprep.subr.mxu0 0.0
    %3727 = vmatpush1.xpose.msra.mxu0 0.0
    %3728 = vmatprep.subr.mxu0 0.0
    %3729 = vmatpush1.xpose.msra.mxu0 0.0
    %3730 = vmatprep.subr.mxu0 0.0
    %3731 = vmatpush1.xpose.msra.mxu0 0.0
    %3732 = vmatprep.subr.mxu0 0.0
    %3733 = vmatpush1.xpose.msra.mxu0 0.0
    %3734 = vmatprep.subr.mxu0 0.0
    %3735 = vmatpush1.xpose.msra.mxu0 0.0
    %3736 = vmatprep.subr.mxu0 0.0
    %3737 = vmatpush1.xpose.msra.mxu0 0.0
    %3738 = vmatprep.subr.mxu0 0.0
    %3739 = vmatpush1.xpose.msra.mxu0 0.0
    %3740 = vmatprep.subr.mxu0 0.0
    %3741 = vmatpush1.xpose.msra.mxu0 0.0
    %3742 = vmatprep.subr.mxu0 0.0
    %3743 = vmatpush1.xpose.msra.mxu0 0.0
    %3744 = vmatprep.mubr.f32.mxu0 0.0
    %v3745 = vand.u32 %v3670, 4294901760
    %v3746 = vsub.f32 %v3670, %v3745
    %v3747 = vand.u32 %v3746, 4294901760
    %v3748 = vsub.f32 %v3746, %v3747
    %v3749 = vand.u32 %v3748, 4294901760
    %3750 = vmatmul.mubr.f32.gmra.mrb[0].mxu0 %v3749
    %v3751 = vpop.f32.mrb[0].mxu0
    %v3752 = vadd.f32 0.0, %v3751
    %v3753 = vpop.f32.mrb[0].mxu0
    %3754 = vmatprep.mubr.f32.mxu0 0.0
    %v3755 = vand.u32 %v3672, 4294901760
    %v3756 = vsub.f32 %v3672, %v3755
    %v3757 = vand.u32 %v3756, 4294901760
    %v3758 = vsub.f32 %v3756, %v3757
    %v3759 = vand.u32 %v3758, 4294901760
    %3760 = vmatmul.mubr.f32.gmra.mrb[0].mxu0 %v3759
    %v3761 = vpop.f32.mrb[0].mxu0
    %v3762 = vadd.f32 0.0, %v3761
    %v3763 = vpop.f32.mrb[0].mxu0
    %3764 = vdwg.mxu0
    %3765 = vmatprep.subr.mxu0 0.0
    %v3766 = vand.u32 %v3674, 4294901760
    %v3767 = vsub.f32 %v3674, %v3766
    %v3768 = vand.u32 %v3767, 4294901760
    %v3769 = vsub.f32 %v3767, %v3768
    %v3770 = vand.u32 %v3769, 4294901760
    %3771 = vmatpush1.xpose.msra.mxu0 %v3770
    %3772 = vmatprep.subr.mxu0 0.0
    %v3773 = vand.u32 %v3676, 4294901760
    %v3774 = vsub.f32 %v3676, %v3773
    %v3775 = vand.u32 %v3774, 4294901760
    %v3776 = vsub.f32 %v3774, %v3775
    %v3777 = vand.u32 %v3776, 4294901760
    %3778 = vmatpush1.xpose.msra.mxu0 %v3777
    %3779 = vmatprep.subr.mxu0 0.0
    %3780 = vmatpush1.xpose.msra.mxu0 0.0
    %3781 = vmatprep.subr.mxu0 0.0
    %3782 = vmatpush1.xpose.msra.mxu0 0.0
    %3783 = vmatprep.subr.mxu0 0.0
    %3784 = vmatpush1.xpose.msra.mxu0 0.0
    %3785 = vmatprep.subr.mxu0 0.0
    %3786 = vmatpush1.xpose.msra.mxu0 0.0
    %3787 = vmatprep.subr.mxu0 0.0
    %3788 = vmatpush1.xpose.msra.mxu0 0.0
    %3789 = vmatprep.subr.mxu0 0.0
    %3790 = vmatpush1.xpose.msra.mxu0 0.0
    %3791 = vmatprep.subr.mxu0 0.0
    %3792 = vmatpush1.xpose.msra.mxu0 0.0
    %3793 = vmatprep.subr.mxu0 0.0
    %3794 = vmatpush1.xpose.msra.mxu0 0.0
    %3795 = vmatprep.subr.mxu0 0.0
    %3796 = vmatpush1.xpose.msra.mxu0 0.0
    %3797 = vmatprep.subr.mxu0 0.0
    %3798 = vmatpush1.xpose.msra.mxu0 0.0
    %3799 = vmatprep.subr.mxu0 0.0
    %3800 = vmatpush1.xpose.msra.mxu0 0.0
    %3801 = vmatprep.subr.mxu0 0.0
    %3802 = vmatpush1.xpose.msra.mxu0 0.0
    %3803 = vmatprep.subr.mxu0 0.0
    %3804 = vmatpush1.xpose.msra.mxu0 0.0
    %3805 = vmatprep.subr.mxu0 0.0
    %3806 = vmatpush1.xpose.msra.mxu0 0.0
    %3807 = vmatprep.subr.mxu0 0.0
    %3808 = vmatpush1.xpose.msra.mxu0 0.0
    %3809 = vmatprep.subr.mxu0 0.0
    %3810 = vmatpush1.xpose.msra.mxu0 0.0
    %3811 = vmatprep.subr.mxu0 0.0
    %3812 = vmatpush1.xpose.msra.mxu0 0.0
    %3813 = vmatprep.subr.mxu0 0.0
    %3814 = vmatpush1.xpose.msra.mxu0 0.0
    %3815 = vmatprep.subr.mxu0 0.0
    %3816 = vmatpush1.xpose.msra.mxu0 0.0
    %3817 = vmatprep.subr.mxu0 0.0
    %3818 = vmatpush1.xpose.msra.mxu0 0.0
    %3819 = vmatprep.subr.mxu0 0.0
    %3820 = vmatpush1.xpose.msra.mxu0 0.0
    %3821 = vmatprep.subr.mxu0 0.0
    %3822 = vmatpush1.xpose.msra.mxu0 0.0
    %3823 = vmatprep.subr.mxu0 0.0
    %3824 = vmatpush1.xpose.msra.mxu0 0.0
    %3825 = vmatprep.subr.mxu0 0.0
    %3826 = vmatpush1.xpose.msra.mxu0 0.0
    %3827 = vmatprep.subr.mxu0 0.0
    %3828 = vmatpush1.xpose.msra.mxu0 0.0
    %3829 = vmatprep.subr.mxu0 0.0
    %3830 = vmatpush1.xpose.msra.mxu0 0.0
    %3831 = vmatprep.subr.mxu0 0.0
    %3832 = vmatpush1.xpose.msra.mxu0 0.0
    %3833 = vmatprep.subr.mxu0 0.0
    %3834 = vmatpush1.xpose.msra.mxu0 0.0
    %3835 = vmatprep.subr.mxu0 0.0
    %3836 = vmatpush1.xpose.msra.mxu0 0.0
    %3837 = vmatprep.subr.mxu0 0.0
    %3838 = vmatpush1.xpose.msra.mxu0 0.0
    %3839 = vmatprep.mubr.f32.mxu0 0.0
    %v3840 = vand.u32 %v3670, 4294901760
    %3841 = vmatmul.mubr.f32.gmra.mrb[0].mxu0 %v3840
    %v3842 = vpop.f32.mrb[0].mxu0
    %v3843 = vadd.f32 %v3752, %v3842
    %v3844 = vpop.f32.mrb[0].mxu0
    %3845 = vmatprep.mubr.f32.mxu0 0.0
    %v3846 = vand.u32 %v3672, 4294901760
    %3847 = vmatmul.mubr.f32.gmra.mrb[0].mxu0 %v3846
    %v3848 = vpop.f32.mrb[0].mxu0
    %v3849 = vadd.f32 %v3762, %v3848
    %v3850 = vpop.f32.mrb[0].mxu0
    %3851 = vdwg.mxu0
    %3852 = vmatprep.subr.mxu0 0.0
    %v3853 = vand.u32 %v3674, 4294901760
    %v3854 = vsub.f32 %v3674, %v3853
    %3855 = vmatpush1.xpose.msra.mxu0 %v3854
    %3856 = vmatprep.subr.mxu0 0.0
    %v3857 = vand.u32 %v3676, 4294901760
    %v3858 = vsub.f32 %v3676, %v3857
    %3859 = vmatpush1.xpose.msra.mxu0 %v3858
    %3860 = vmatprep.subr.mxu0 0.0
    %3861 = vmatpush1.xpose.msra.mxu0 0.0
    %3862 = vmatprep.subr.mxu0 0.0
    %3863 = vmatpush1.xpose.msra.mxu0 0.0
    %3864 = vmatprep.subr.mxu0 0.0
    %3865 = vmatpush1.xpose.msra.mxu0 0.0
    %3866 = vmatprep.subr.mxu0 0.0
    %3867 = vmatpush1.xpose.msra.mxu0 0.0
    %3868 = vmatprep.subr.mxu0 0.0
    %3869 = vmatpush1.xpose.msra.mxu0 0.0
    %3870 = vmatprep.subr.mxu0 0.0
    %3871 = vmatpush1.xpose.msra.mxu0 0.0
    %3872 = vmatprep.subr.mxu0 0.0
    %3873 = vmatpush1.xpose.msra.mxu0 0.0
    %3874 = vmatprep.subr.mxu0 0.0
    %3875 = vmatpush1.xpose.msra.mxu0 0.0
    %3876 = vmatprep.subr.mxu0 0.0
    %3877 = vmatpush1.xpose.msra.mxu0 0.0
    %3878 = vmatprep.subr.mxu0 0.0
    %3879 = vmatpush1.xpose.msra.mxu0 0.0
    %3880 = vmatprep.subr.mxu0 0.0
    %3881 = vmatpush1.xpose.msra.mxu0 0.0
    %3882 = vmatprep.subr.mxu0 0.0
    %3883 = vmatpush1.xpose.msra.mxu0 0.0
    %3884 = vmatprep.subr.mxu0 0.0
    %3885 = vmatpush1.xpose.msra.mxu0 0.0
    %3886 = vmatprep.subr.mxu0 0.0
    %3887 = vmatpush1.xpose.msra.mxu0 0.0
    %3888 = vmatprep.subr.mxu0 0.0
    %3889 = vmatpush1.xpose.msra.mxu0 0.0
    %3890 = vmatprep.subr.mxu0 0.0
    %3891 = vmatpush1.xpose.msra.mxu0 0.0
    %3892 = vmatprep.subr.mxu0 0.0
    %3893 = vmatpush1.xpose.msra.mxu0 0.0
    %3894 = vmatprep.subr.mxu0 0.0
    %3895 = vmatpush1.xpose.msra.mxu0 0.0
    %3896 = vmatprep.subr.mxu0 0.0
    %3897 = vmatpush1.xpose.msra.mxu0 0.0
    %3898 = vmatprep.subr.mxu0 0.0
    %3899 = vmatpush1.xpose.msra.mxu0 0.0
    %3900 = vmatprep.subr.mxu0 0.0
    %3901 = vmatpush1.xpose.msra.mxu0 0.0
    %3902 = vmatprep.subr.mxu0 0.0
    %3903 = vmatpush1.xpose.msra.mxu0 0.0
    %3904 = vmatprep.subr.mxu0 0.0
    %3905 = vmatpush1.xpose.msra.mxu0 0.0
    %3906 = vmatprep.subr.mxu0 0.0
    %3907 = vmatpush1.xpose.msra.mxu0 0.0
    %3908 = vmatprep.subr.mxu0 0.0
    %3909 = vmatpush1.xpose.msra.mxu0 0.0
    %3910 = vmatprep.subr.mxu0 0.0
    %3911 = vmatpush1.xpose.msra.mxu0 0.0
    %3912 = vmatprep.subr.mxu0 0.0
    %3913 = vmatpush1.xpose.msra.mxu0 0.0
    %3914 = vmatprep.subr.mxu0 0.0
    %3915 = vmatpush1.xpose.msra.mxu0 0.0
    %3916 = vmatprep.subr.mxu0 0.0
    %3917 = vmatpush1.xpose.msra.mxu0 0.0
    %3918 = vmatprep.subr.mxu0 0.0
    %3919 = vmatpush1.xpose.msra.mxu0 0.0
    %3920 = vmatprep.mubr.f32.mxu0 0.0
    %v3921 = vand.u32 %v3670, 4294901760
    %v3922 = vsub.f32 %v3670, %v3921
    %3923 = vmatmul.mubr.f32.gmra.mrb[0].mxu0 %v3922
    %v3924 = vpop.f32.mrb[0].mxu0
    %v3925 = vadd.f32 %v3843, %v3924
    %v3926 = vpop.f32.mrb[0].mxu0
    %3927 = vmatprep.mubr.f32.mxu0 0.0
    %v3928 = vand.u32 %v3672, 4294901760
    %v3929 = vsub.f32 %v3672, %v3928
    %3930 = vmatmul.mubr.f32.gmra.mrb[0].mxu0 %v3929
    %v3931 = vpop.f32.mrb[0].mxu0
    %v3932 = vadd.f32 %v3849, %v3931
    %v3933 = vpop.f32.mrb[0].mxu0
    %3934 = vdwg.mxu0
    %3935 = vmatprep.subr.mxu0 0.0
    %v3936 = vand.u32 %v3674, 4294901760
    %3937 = vmatpush1.xpose.msra.mxu0 %v3936
    %3938 = vmatprep.subr.mxu0 0.0
    %v3939 = vand.u32 %v3676, 4294901760
    %3940 = vmatpush1.xpose.msra.mxu0 %v3939
    %3941 = vmatprep.subr.mxu0 0.0
    %3942 = vmatpush1.xpose.msra.mxu0 0.0
    %3943 = vmatprep.subr.mxu0 0.0
    %3944 = vmatpush1.xpose.msra.mxu0 0.0
    %3945 = vmatprep.subr.mxu0 0.0
    %3946 = vmatpush1.xpose.msra.mxu0 0.0
    %3947 = vmatprep.subr.mxu0 0.0
    %3948 = vmatpush1.xpose.msra.mxu0 0.0
    %3949 = vmatprep.subr.mxu0 0.0
    %3950 = vmatpush1.xpose.msra.mxu0 0.0
    %3951 = vmatprep.subr.mxu0 0.0
    %3952 = vmatpush1.xpose.msra.mxu0 0.0
    %3953 = vmatprep.subr.mxu0 0.0
    %3954 = vmatpush1.xpose.msra.mxu0 0.0
    %3955 = vmatprep.subr.mxu0 0.0
    %3956 = vmatpush1.xpose.msra.mxu0 0.0
    %3957 = vmatprep.subr.mxu0 0.0
    %3958 = vmatpush1.xpose.msra.mxu0 0.0
    %3959 = vmatprep.subr.mxu0 0.0
    %3960 = vmatpush1.xpose.msra.mxu0 0.0
    %3961 = vmatprep.subr.mxu0 0.0
    %3962 = vmatpush1.xpose.msra.mxu0 0.0
    %3963 = vmatprep.subr.mxu0 0.0
    %3964 = vmatpush1.xpose.msra.mxu0 0.0
    %3965 = vmatprep.subr.mxu0 0.0
    %3966 = vmatpush1.xpose.msra.mxu0 0.0
    %3967 = vmatprep.subr.mxu0 0.0
    %3968 = vmatpush1.xpose.msra.mxu0 0.0
    %3969 = vmatprep.subr.mxu0 0.0
    %3970 = vmatpush1.xpose.msra.mxu0 0.0
    %3971 = vmatprep.subr.mxu0 0.0
    %3972 = vmatpush1.xpose.msra.mxu0 0.0
    %3973 = vmatprep.subr.mxu0 0.0
    %3974 = vmatpush1.xpose.msra.mxu0 0.0
    %3975 = vmatprep.subr.mxu0 0.0
    %3976 = vmatpush1.xpose.msra.mxu0 0.0
    %3977 = vmatprep.subr.mxu0 0.0
    %3978 = vmatpush1.xpose.msra.mxu0 0.0
    %3979 = vmatprep.subr.mxu0 0.0
    %3980 = vmatpush1.xpose.msra.mxu0 0.0
    %3981 = vmatprep.subr.mxu0 0.0
    %3982 = vmatpush1.xpose.msra.mxu0 0.0
    %3983 = vmatprep.subr.mxu0 0.0
    %3984 = vmatpush1.xpose.msra.mxu0 0.0
    %3985 = vmatprep.subr.mxu0 0.0
    %3986 = vmatpush1.xpose.msra.mxu0 0.0
    %3987 = vmatprep.subr.mxu0 0.0
    %3988 = vmatpush1.xpose.msra.mxu0 0.0
    %3989 = vmatprep.subr.mxu0 0.0
    %3990 = vmatpush1.xpose.msra.mxu0 0.0
    %3991 = vmatprep.subr.mxu0 0.0
    %3992 = vmatpush1.xpose.msra.mxu0 0.0
    %3993 = vmatprep.subr.mxu0 0.0
    %3994 = vmatpush1.xpose.msra.mxu0 0.0
    %3995 = vmatprep.subr.mxu0 0.0
    %3996 = vmatpush1.xpose.msra.mxu0 0.0
    %3997 = vmatprep.subr.mxu0 0.0
    %3998 = vmatpush1.xpose.msra.mxu0 0.0
    %3999 = vmatprep.subr.mxu0 0.0
    %4000 = vmatpush1.xpose.msra.mxu0 0.0
    %4001 = vmatprep.mubr.f32.mxu0 0.0
    %v4002 = vand.u32 %v3670, 4294901760
    %v4003 = vsub.f32 %v3670, %v4002
    %v4004 = vand.u32 %v4003, 4294901760
    %4005 = vmatmul.mubr.f32.gmra.mrb[0].mxu0 %v4004
    %v4006 = vpop.f32.mrb[0].mxu0
    %v4007 = vadd.f32 %v3925, %v4006
    %v4008 = vpop.f32.mrb[0].mxu0
    %4009 = vmatprep.mubr.f32.mxu0 0.0
    %v4010 = vand.u32 %v3672, 4294901760
    %v4011 = vsub.f32 %v3672, %v4010
    %v4012 = vand.u32 %v4011, 4294901760
    %4013 = vmatmul.mubr.f32.gmra.mrb[0].mxu0 %v4012
    %v4014 = vpop.f32.mrb[0].mxu0
    %v4015 = vadd.f32 %v3932, %v4014
    %v4016 = vpop.f32.mrb[0].mxu0
    %4017 = vdwg.mxu0
    %4018 = vmatprep.subr.mxu0 0.0
    %v4019 = vand.u32 %v3674, 4294901760
    %v4020 = vsub.f32 %v3674, %v4019
    %v4021 = vand.u32 %v4020, 4294901760
    %4022 = vmatpush1.xpose.msra.mxu0 %v4021
    %4023 = vmatprep.subr.mxu0 0.0
    %v4024 = vand.u32 %v3676, 4294901760
    %v4025 = vsub.f32 %v3676, %v4024
    %v4026 = vand.u32 %v4025, 4294901760
    %4027 = vmatpush1.xpose.msra.mxu0 %v4026
    %4028 = vmatprep.subr.mxu0 0.0
    %4029 = vmatpush1.xpose.msra.mxu0 0.0
    %4030 = vmatprep.subr.mxu0 0.0
    %4031 = vmatpush1.xpose.msra.mxu0 0.0
    %4032 = vmatprep.subr.mxu0 0.0
    %4033 = vmatpush1.xpose.msra.mxu0 0.0
    %4034 = vmatprep.subr.mxu0 0.0
    %4035 = vmatpush1.xpose.msra.mxu0 0.0
    %4036 = vmatprep.subr.mxu0 0.0
    %4037 = vmatpush1.xpose.msra.mxu0 0.0
    %4038 = vmatprep.subr.mxu0 0.0
    %4039 = vmatpush1.xpose.msra.mxu0 0.0
    %4040 = vmatprep.subr.mxu0 0.0
    %4041 = vmatpush1.xpose.msra.mxu0 0.0
    %4042 = vmatprep.subr.mxu0 0.0
    %4043 = vmatpush1.xpose.msra.mxu0 0.0
    %4044 = vmatprep.subr.mxu0 0.0
    %4045 = vmatpush1.xpose.msra.mxu0 0.0
    %4046 = vmatprep.subr.mxu0 0.0
    %4047 = vmatpush1.xpose.msra.mxu0 0.0
    %4048 = vmatprep.subr.mxu0 0.0
    %4049 = vmatpush1.xpose.msra.mxu0 0.0
    %4050 = vmatprep.subr.mxu0 0.0
    %4051 = vmatpush1.xpose.msra.mxu0 0.0
    %4052 = vmatprep.subr.mxu0 0.0
    %4053 = vmatpush1.xpose.msra.mxu0 0.0
    %4054 = vmatprep.subr.mxu0 0.0
    %4055 = vmatpush1.xpose.msra.mxu0 0.0
    %4056 = vmatprep.subr.mxu0 0.0
    %4057 = vmatpush1.xpose.msra.mxu0 0.0
    %4058 = vmatprep.subr.mxu0 0.0
    %4059 = vmatpush1.xpose.msra.mxu0 0.0
    %4060 = vmatprep.subr.mxu0 0.0
    %4061 = vmatpush1.xpose.msra.mxu0 0.0
    %4062 = vmatprep.subr.mxu0 0.0
    %4063 = vmatpush1.xpose.msra.mxu0 0.0
    %4064 = vmatprep.subr.mxu0 0.0
    %4065 = vmatpush1.xpose.msra.mxu0 0.0
    %4066 = vmatprep.subr.mxu0 0.0
    %4067 = vmatpush1.xpose.msra.mxu0 0.0
    %4068 = vmatprep.subr.mxu0 0.0
    %4069 = vmatpush1.xpose.msra.mxu0 0.0
    %4070 = vmatprep.subr.mxu0 0.0
    %4071 = vmatpush1.xpose.msra.mxu0 0.0
    %4072 = vmatprep.subr.mxu0 0.0
    %4073 = vmatpush1.xpose.msra.mxu0 0.0
    %4074 = vmatprep.subr.mxu0 0.0
    %4075 = vmatpush1.xpose.msra.mxu0 0.0
    %4076 = vmatprep.subr.mxu0 0.0
    %4077 = vmatpush1.xpose.msra.mxu0 0.0
    %4078 = vmatprep.subr.mxu0 0.0
    %4079 = vmatpush1.xpose.msra.mxu0 0.0
    %4080 = vmatprep.subr.mxu0 0.0
    %4081 = vmatpush1.xpose.msra.mxu0 0.0
    %4082 = vmatprep.subr.mxu0 0.0
    %4083 = vmatpush1.xpose.msra.mxu0 0.0
    %4084 = vmatprep.subr.mxu0 0.0
    %4085 = vmatpush1.xpose.msra.mxu0 0.0
    %4086 = vmatprep.subr.mxu0 0.0
    %4087 = vmatpush1.xpose.msra.mxu0 0.0
    %4088 = vmatprep.mubr.f32.mxu0 0.0
    %v4089 = vand.u32 %v3670, 4294901760
    %4090 = vmatmul.mubr.f32.gmra.mrb[0].mxu0 %v4089
    %v4091 = vpop.f32.mrb[0].mxu0
    %v4092 = vadd.f32 %v4007, %v4091
    %v4093 = vpop.f32.mrb[0].mxu0
    %4094 = vmatprep.mubr.f32.mxu0 0.0
    %v4095 = vand.u32 %v3672, 4294901760
    %4096 = vmatmul.mubr.f32.gmra.mrb[0].mxu0 %v4095
    %v4097 = vpop.f32.mrb[0].mxu0
    %v4098 = vadd.f32 %v4015, %v4097
    %v4099 = vpop.f32.mrb[0].mxu0
    %4100 = vdwg.mxu0
    %4101 = vmatprep.subr.mxu0 0.0
    %v4102 = vand.u32 %v3674, 4294901760
    %4103 = vmatpush1.xpose.msra.mxu0 %v4102
    %4104 = vmatprep.subr.mxu0 0.0
    %v4105 = vand.u32 %v3676, 4294901760
    %4106 = vmatpush1.xpose.msra.mxu0 %v4105
    %4107 = vmatprep.subr.mxu0 0.0
    %4108 = vmatpush1.xpose.msra.mxu0 0.0
    %4109 = vmatprep.subr.mxu0 0.0
    %4110 = vmatpush1.xpose.msra.mxu0 0.0
    %4111 = vmatprep.subr.mxu0 0.0
    %4112 = vmatpush1.xpose.msra.mxu0 0.0
    %4113 = vmatprep.subr.mxu0 0.0
    %4114 = vmatpush1.xpose.msra.mxu0 0.0
    %4115 = vmatprep.subr.mxu0 0.0
    %4116 = vmatpush1.xpose.msra.mxu0 0.0
    %4117 = vmatprep.subr.mxu0 0.0
    %4118 = vmatpush1.xpose.msra.mxu0 0.0
    %4119 = vmatprep.subr.mxu0 0.0
    %4120 = vmatpush1.xpose.msra.mxu0 0.0
    %4121 = vmatprep.subr.mxu0 0.0
    %4122 = vmatpush1.xpose.msra.mxu0 0.0
    %4123 = vmatprep.subr.mxu0 0.0
    %4124 = vmatpush1.xpose.msra.mxu0 0.0
    %4125 = vmatprep.subr.mxu0 0.0
    %4126 = vmatpush1.xpose.msra.mxu0 0.0
    %4127 = vmatprep.subr.mxu0 0.0
    %4128 = vmatpush1.xpose.msra.mxu0 0.0
    %4129 = vmatprep.subr.mxu0 0.0
    %4130 = vmatpush1.xpose.msra.mxu0 0.0
    %4131 = vmatprep.subr.mxu0 0.0
    %4132 = vmatpush1.xpose.msra.mxu0 0.0
    %4133 = vmatprep.subr.mxu0 0.0
    %4134 = vmatpush1.xpose.msra.mxu0 0.0
    %4135 = vmatprep.subr.mxu0 0.0
    %4136 = vmatpush1.xpose.msra.mxu0 0.0
    %4137 = vmatprep.subr.mxu0 0.0
    %4138 = vmatpush1.xpose.msra.mxu0 0.0
    %4139 = vmatprep.subr.mxu0 0.0
    %4140 = vmatpush1.xpose.msra.mxu0 0.0
    %4141 = vmatprep.subr.mxu0 0.0
    %4142 = vmatpush1.xpose.msra.mxu0 0.0
    %4143 = vmatprep.subr.mxu0 0.0
    %4144 = vmatpush1.xpose.msra.mxu0 0.0
    %4145 = vmatprep.subr.mxu0 0.0
    %4146 = vmatpush1.xpose.msra.mxu0 0.0
    %4147 = vmatprep.subr.mxu0 0.0
    %4148 = vmatpush1.xpose.msra.mxu0 0.0
    %4149 = vmatprep.subr.mxu0 0.0
    %4150 = vmatpush1.xpose.msra.mxu0 0.0
    %4151 = vmatprep.subr.mxu0 0.0
    %4152 = vmatpush1.xpose.msra.mxu0 0.0
    %4153 = vmatprep.subr.mxu0 0.0
    %4154 = vmatpush1.xpose.msra.mxu0 0.0
    %4155 = vmatprep.subr.mxu0 0.0
    %4156 = vmatpush1.xpose.msra.mxu0 0.0
    %4157 = vmatprep.subr.mxu0 0.0
    %4158 = vmatpush1.xpose.msra.mxu0 0.0
    %4159 = vmatprep.subr.mxu0 0.0
    %4160 = vmatpush1.xpose.msra.mxu0 0.0
    %4161 = vmatprep.subr.mxu0 0.0
    %4162 = vmatpush1.xpose.msra.mxu0 0.0
    %4163 = vmatprep.subr.mxu0 0.0
    %4164 = vmatpush1.xpose.msra.mxu0 0.0
    %4165 = vmatprep.subr.mxu0 0.0
    %4166 = vmatpush1.xpose.msra.mxu0 0.0
    %4167 = vmatprep.mubr.f32.mxu0 0.0
    %v4168 = vand.u32 %v3670, 4294901760
    %4169 = vmatmul.mubr.f32.gmra.mrb[0].mxu0 %v4168
    %v4170 = vpop.f32.mrb[0].mxu0
    %v4171 = vadd.f32 %v4092, %v4170
    %v4172 = vpop.f32.mrb[0].mxu0
    %4173 = vmatprep.mubr.f32.mxu0 0.0
    %v4174 = vand.u32 %v3672, 4294901760
    %4175 = vmatmul.mubr.f32.gmra.mrb[0].mxu0 %v4174
    %v4176 = vpop.f32.mrb[0].mxu0
    %v4177 = vadd.f32 %v4098, %v4176
    %v4178 = vpop.f32.mrb[0].mxu0
    %4179 = vdwg.mxu0
    %4182 = vrot.lane.b32.xlu0 %v1063, 16
    %v4183 = vpop.permute.xlu0 %4182
    %4184 = vrot.lane.b32.xlu0 %v1069, 16
    %v4185 = vpop.permute.xlu0 %4184
    %4190 = vrot.lane.b32.xlu0 %v1581, 32
    %v4191 = vpop.permute.xlu0 %4190
    %4192 = vrot.lane.b32.xlu0 %v1587, 32
    %v4193 = vpop.permute.xlu0 %4192
    %4198 = vrot.lane.b32.xlu0 %v2099, 48
    %v4199 = vpop.permute.xlu0 %4198
    %4200 = vrot.lane.b32.xlu0 %v2105, 48
    %v4201 = vpop.permute.xlu0 %4200
    %4206 = vrot.lane.b32.xlu0 %v2617, 64
    %v4207 = vpop.permute.xlu0 %4206
    %4208 = vrot.lane.b32.xlu0 %v2623, 64
    %v4209 = vpop.permute.xlu0 %4208
    %4214 = vrot.lane.b32.xlu0 %v3135, 80
    %v4215 = vpop.permute.xlu0 %4214
    %4216 = vrot.lane.b32.xlu0 %v3141, 80
    %v4217 = vpop.permute.xlu0 %4216
    %4222 = vrot.lane.b32.xlu0 %v3653, 96
    %v4223 = vpop.permute.xlu0 %4222
    %4224 = vrot.lane.b32.xlu0 %v3659, 96
    %v4225 = vpop.permute.xlu0 %4224
    %4230 = vrot.lane.b32.xlu0 %v4171, 112
    %v4231 = vpop.permute.xlu0 %4230
    %4232 = vrot.lane.b32.xlu0 %v4177, 112
    %v4233 = vpop.permute.xlu0 %4232
    %v4236 = vsel %vm39, %v545, %v4183
    %v4237 = vsel %vm39, %v551, %v4185
    %vm4238 = vcmask 261120
    %v4239 = vsel %vm4238, %v4236, %v4191
    %v4240 = vsel %vm4238, %v4237, %v4193
    %vm4241 = vcmask 392192
    %v4242 = vsel %vm4241, %v4239, %v4199
    %v4243 = vsel %vm4241, %v4240, %v4201
    %vm4244 = vcmask 523264
    %v4245 = vsel %vm4244, %v4242, %v4207
    %v4246 = vsel %vm4244, %v4243, %v4209
    %vm4247 = vcmask 654336
    %v4248 = vsel %vm4247, %v4245, %v4215
    %v4249 = vsel %vm4247, %v4246, %v4217
    %vm4250 = vcmask 785408
    %v4251 = vsel %vm4250, %v4248, %v4223
    %v4252 = vsel %vm4250, %v4249, %v4225
    %vm4253 = vcmask 916480
    %v4254 = vsel %vm4253, %v4251, %v4231
    %v4255 = vsel %vm4253, %v4252, %v4233
    %4256 = vst [vmem:[#allocation5] sm:$0xff] %v4254
    %4257 = vst [vmem:[#allocation5 + $0x8] sm:$0xff] %v4255
    // Predicated region
    $region14: #{tpu_custom_call.1} parent=1 // pred_check
      _
    $region15: #{tpu_custom_call.1} parent=1 // pred_check_branch
      %4259 = sbr.rel (0) target = $region17
    $region16: #{tpu_custom_call.1} parent=1 // pred_region
      %s4261 = ssub.s32 256, 256
      %4262 = vsyncadd [#allocation4], %s4261
      %s4263 = sshll.u32 [#allocation5], 4
      %s4264 = int_to_ptr.vmem [resolvable:$true] %s4263
      %4269 = dma.vmem_to_hbm [thread:$0]  %s4264, 256, %s2, [#allocation4], 128, 128, 8
    $region17: #{tpu_custom_call.1} parent=1 // pred_fallthru
      _
    // Predicated region
    $region18: #{tpu_custom_call.1} parent=1 // pred_check
      _
    $region19: #{tpu_custom_call.1} parent=1 // pred_check_branch
      %4271 = sbr.rel (0) target = $region21
    $region20: #{tpu_custom_call.1} parent=1 // pred_region
      %4272 = dma.done [#allocation4], 256
    $region21: #{tpu_custom_call.1} parent=1 // pred_fallthru
      _
    %4273 = vsyncpa [#allocation3], 1
    %4274 = vsyncpa [#allocation4], 1

</llo_original>
